<compile_context>
chip_gen: v7x
topology: tpu7x:2x2x1
jax: 0.10.0
libtpu: 0.0.40
codegen_flags: <defaults>
</compile_context>

<pallas_src>
import functools

import jax
import jax.numpy as jnp
import numpy as np
from jax.experimental import pallas as pl
from jax.experimental.pallas import tpu as pltpu


def _build_hw_bands(conv_weight, height, width):
    """Fold (kh, kw) taps + H/W zero padding into per-(c, kd) band matrices.

    conv_weight : (1, 2, ks, ks, ks) f32, PyTorch Conv3d weight (OIDHW).
    Returns (2*ks, H*W, H*W) f32 with
        band[c*ks + kd, h_in*W + w_in, h_out*W + w_out]
            = conv_weight[0, c, kd, h_in - h_out + p, w_in - w_out + p]
    Entries whose tap falls outside the image are zero -> implements the H/W
    zero padding.  The D padding is handled by the kernel's scratch.
    """
    w_np = np.asarray(conv_weight, dtype=np.float32)
    _, cin, ks, _, _ = w_np.shape
    p = ks // 2
    hw = height * width
    band = np.zeros((cin, ks, hw, hw), dtype=np.float32)
    for kh in range(ks):
        for kw in range(ks):
            for h_out in range(height):
                h_in = h_out + kh - p
                if not 0 <= h_in < height:
                    continue
                for w_out in range(width):
                    w_in = w_out + kw - p
                    if not 0 <= w_in < width:
                        continue
                    band[:, :, h_in * width + w_in, h_out * width + w_out] = (
                        w_np[0, :, :, kh, kw])
    return jnp.asarray(band.reshape(cin * ks, hw, hw))


def _largest_divisor_at_most(n, cap):
    cap = max(1, min(n, cap))
    for d in range(cap, 0, -1):
        if n % d == 0:
            return d
    return 1


def _spatial_attention_kernel(x_ref, band_ref, out_ref, pad_ref, *,
                              block_batch, channels, depth, ks, chan_group):
    """One grid step: `block_batch` batch elements laid out as (TB, C*D, H*W).

    x_ref    : (TB, C*D, H*W)        features (lane-dense)
    band_ref : (2*ks, H*W, H*W) f32  resident Toeplitz bands
    out_ref  : (TB, C*D, H*W)        x * attention_map
    pad_ref  : (2, D+2p, H*W)   f32  scratch: D-padded (avg, max) map
    """
    hw = x_ref.shape[-1]
    pad = ks // 2
    inv_c = jnp.float32(1.0 / channels)

    # Zero only the D-halo border rows (interior overwritten below).  Done
    # every grid step, so it is correct per-TensorCore under megacore.
    zeros_border = jnp.zeros((pad, hw), dtype=jnp.float32)
    for ch in range(2):
        pad_ref[ch, :pad, :] = zeros_border
        pad_ref[ch, pad + depth:, :] = zeros_border

    for b in range(block_batch):                       # static unroll (small)
        # ---- channel-wise mean / max: short loop over (D, H*W) slabs -------
        v = x_ref[b, 0:depth, :].astype(jnp.float32)
        acc_sum = v
        acc_max = v
        for c in range(1, channels):
            v = x_ref[b, c * depth:(c + 1) * depth, :].astype(jnp.float32)
            acc_sum = acc_sum + v
            acc_max = jnp.maximum(acc_max, v)
        pad_ref[0, pad:pad + depth, :] = acc_sum * inv_c
        pad_ref[1, pad:pad + depth, :] = acc_max

        # ---- 7x7x7 conv == 2*ks small matmuls against resident bands -------
        # Two independent accumulators (one per input channel) break the
        # serial MXU-pop -> add dependency chain.
        acc0 = jnp.zeros((depth, hw), dtype=jnp.float32)
        acc1 = jnp.zeros((depth, hw), dtype=jnp.float32)
        for kd in range(ks):
            acc0 = acc0 + jnp.dot(pad_ref[0, kd:kd + depth, :],
                                  band_ref[kd],
                                  preferred_element_type=jnp.float32)
            acc1 = acc1 + jnp.dot(pad_ref[1, kd:kd + depth, :],
                                  band_ref[ks + kd],
                                  preferred_element_type=jnp.float32)
        attn = jax.nn.sigmoid(acc0 + acc1)             # (D, H*W), f32

        # ---- scale x, re-reading from VMEM in channel chunks ----------------
        rows = chan_group * depth
        attn_rep = attn if chan_group == 1 else jnp.tile(attn, (chan_group, 1))
        for c0 in range(0, channels, chan_group):
            r0 = c0 * depth
            out_ref[b, r0:r0 + rows, :] = (
                x_ref[b, r0:r0 + rows, :].astype(jnp.float32) * attn_rep
            ).astype(out_ref.dtype)


def spatial_attention(x, conv_weight):
    """x: (B, C, D, H, W); conv_weight: (1, 2, ks, ks, ks) (OIDHW), no bias."""
    B, C, D, H, W = x.shape
    ks = conv_weight.shape[-1]
    pad = ks // 2
    hw = H * W
    itemsize = jnp.dtype(x.dtype).itemsize

    # Host-side: fold (kh, kw) taps + H/W padding into (H*W, H*W) bands.
    band = _build_hw_bands(conv_weight, H, W)          # (2*ks, hw, hw) f32

    # Lane-dense presentation of the heavy traffic: lane dim = H*W, sublane
    # dim = C*D (pure metadata reshape of contiguous NCDHW).
    x3 = x.reshape(B, C * D, hw)

    # Batch elements per grid step: decent block size, but keep grid >= 2 so
    # megacore "parallel" splits work across both TensorCores.
    per_batch_bytes = C * D * hw * itemsize
    tb_cap = max(1, (2 * 1024 * 1024) // max(per_batch_bytes, 1))
    if B >= 2:
        tb_cap = min(tb_cap, B // 2)
    block_batch = _largest_divisor_at_most(B, tb_cap)
    grid = (B // block_batch,)

    # Channel-chunk size for the epilogue multiply (bounds register live range
    # while keeping each store a large contiguous lane-dense slab).
    chan_group = _largest_divisor_at_most(
        C, max(1, (64 * 1024) // max(D * hw * 4, 1)))

    kernel = functools.partial(
        _spatial_attention_kernel,
        block_batch=block_batch, channels=C, depth=D, ks=ks,
        chan_group=chan_group)

    # VMEM budget: double-buffered in/out blocks + (possibly double-buffered)
    # resident bands + scratch, with headroom, capped below v7x's 64 MiB.
    block_bytes = block_batch * C * D * hw * itemsize
    est = (4 * block_bytes + 2 * int(band.size) * 4
           + 2 * (D + 2 * pad) * hw * 4)
    vmem_limit = int(min(48 * 1024 * 1024, max(2 * est, 16 * 1024 * 1024)))

    out3 = pl.pallas_call(
        kernel,
        out_shape=jax.ShapeDtypeStruct((B, C * D, hw), x.dtype),
        grid_spec=pltpu.PrefetchScalarGridSpec(
            num_scalar_prefetch=0,
            grid=grid,
            in_specs=[
                # TB batch elements per step (auto double-buffered), lane-dense.
                pl.BlockSpec((block_batch, C * D, hw), lambda i: (i, 0, 0)),
                # Small conv bands: constant index_map -> VMEM-resident.
                pl.BlockSpec((2 * ks, hw, hw), lambda i: (0, 0, 0)),
            ],
            out_specs=pl.BlockSpec((block_batch, C * D, hw),
                                   lambda i: (i, 0, 0)),
            scratch_shapes=[
                # D-padded 2-channel (avg, max) map; H/W padding lives in the
                # band matrices, so no H/W halo is needed here.
                pltpu.VMEM((2, D + 2 * pad, hw), jnp.float32),
            ],
        ),
        compiler_params=pltpu.CompilerParams(
            dimension_semantics=("parallel",),          # split batch over TCs
            vmem_limit_bytes=vmem_limit,
        ),
    )(x3, band)
    return out3.reshape(B, C, D, H, W)


def reference_spatial_attention(x, conv_weight):
    """Pure-JAX reference mirroring the PyTorch SpatialAttention forward."""
    avg = jnp.mean(x, axis=1, keepdims=True)
    mx = jnp.max(x, axis=1, keepdims=True)
    cat = jnp.concatenate([avg, mx], axis=1)            # (B, 2, D, H, W)
    ks = conv_weight.shape[-1]
    p = ks // 2
    conv = jax.lax.conv_general_dilated(
        cat, conv_weight,
        window_strides=(1, 1, 1),
        padding=[(p, p)] * 3,
        dimension_numbers=("NCDHW", "OIDHW", "NCDHW"),
        precision=jax.lax.Precision.HIGHEST,
    )                                                    # (B, 1, D, H, W)
    return x * jax.nn.sigmoid(conv)


if __name__ == "__main__":
    # Small shapes consistent with the module; H*W = 128 -> lane-dense blocks.
    B, C, D, H, W = 4, 4, 4, 8, 16
    ks = 7

    key = jax.random.PRNGKey(0)
    kx, kw = jax.random.split(key)
    x = jax.random.normal(kx, (B, C, D, H, W), dtype=jnp.float32)
    conv_w = (jax.random.normal(kw, (1, 2, ks, ks, ks), dtype=jnp.float32)
              / np.sqrt(2.0 * ks ** 3))                  # Conv3d(2,1,7,no bias)

    out = jax.block_until_ready(spatial_attention(x, conv_w))
    ref = reference_spatial_attention(x, conv_w)

    assert out.shape == x.shape
    max_err = float(jnp.max(jnp.abs(out - ref)))
    assert jnp.allclose(out, ref, atol=2e-3, rtol=2e-3), max_err

    print("KERNEL_OK")
</pallas_src>

<mosaic_0001>
module attributes {stable_mosaic.version = 11 : i64} {
  func.func @_spatial_attention_kernel(%arg0: i32, %arg1: memref<2x16x128xf32, #tpu.memory_space<vmem>>, %arg2: memref<14x128x128xf32, #tpu.memory_space<vmem>>, %arg3: memref<2x16x128xf32, #tpu.memory_space<vmem>>, %arg4: memref<2x10x128xf32, #tpu.memory_space<vmem>>) attributes {dimension_semantics = [#tpu.dimension_semantics<parallel>], iteration_bounds = array<i64: 2>, scalar_prefetch = 0 : i64, scratch_operands = 1 : i64, tpu.core_type = #tpu.core_type<tc>, window_params = [{transform_indices = @transform_0, window_bounds = array<i64: 2, 16, 128>}, {pipeline_mode = #tpu.pipeline_mode<synchronous>, transform_indices = @transform_1, window_bounds = array<i64: 14, 128, 128>}, {transform_indices = @transform_2, window_bounds = array<i64: 2, 16, 128>}]} {
    %cst = arith.constant 0.000000e+00 : f32
    %0 = vector.broadcast %cst : f32 to vector<3x128xf32>
    %c0 = arith.constant 0 : index
    %c0_0 = arith.constant 0 : index
    %c0_1 = arith.constant 0 : index
    %1 = vector.load %arg4[%c0, %c0_0, %c0_1] : memref<2x10x128xf32, #tpu.memory_space<vmem>>, vector<1x3x128xf32>
    %2 = vector.shape_cast %1 : vector<1x3x128xf32> to vector<3x128xf32>
    %3 = vector.shape_cast %0 : vector<3x128xf32> to vector<1x3x128xf32>
    tpu.vector_store %arg4[%c0, %c0_0, %c0_1], %3 {strides = array<i32>} : memref<2x10x128xf32, #tpu.memory_space<vmem>>, vector<1x3x128xf32>,
    %c0_2 = arith.constant 0 : index
    %c7 = arith.constant 7 : index
    %c0_3 = arith.constant 0 : index
    %4 = vector.load %arg4[%c0_2, %c7, %c0_3] : memref<2x10x128xf32, #tpu.memory_space<vmem>>, vector<1x3x128xf32>
    %5 = vector.shape_cast %4 : vector<1x3x128xf32> to vector<3x128xf32>
    %6 = vector.shape_cast %0 : vector<3x128xf32> to vector<1x3x128xf32>
    tpu.vector_store %arg4[%c0_2, %c7, %c0_3], %6 {strides = array<i32>} : memref<2x10x128xf32, #tpu.memory_space<vmem>>, vector<1x3x128xf32>,
    %c1 = arith.constant 1 : index
    %c0_4 = arith.constant 0 : index
    %c0_5 = arith.constant 0 : index
    %7 = vector.load %arg4[%c1, %c0_4, %c0_5] : memref<2x10x128xf32, #tpu.memory_space<vmem>>, vector<1x3x128xf32>
    %8 = vector.shape_cast %7 : vector<1x3x128xf32> to vector<3x128xf32>
    %9 = vector.shape_cast %0 : vector<3x128xf32> to vector<1x3x128xf32>
    tpu.vector_store %arg4[%c1, %c0_4, %c0_5], %9 {strides = array<i32>} : memref<2x10x128xf32, #tpu.memory_space<vmem>>, vector<1x3x128xf32>,
    %c1_6 = arith.constant 1 : index
    %c7_7 = arith.constant 7 : index
    %c0_8 = arith.constant 0 : index
    %10 = vector.load %arg4[%c1_6, %c7_7, %c0_8] : memref<2x10x128xf32, #tpu.memory_space<vmem>>, vector<1x3x128xf32>
    %11 = vector.shape_cast %10 : vector<1x3x128xf32> to vector<3x128xf32>
    %12 = vector.shape_cast %0 : vector<3x128xf32> to vector<1x3x128xf32>
    tpu.vector_store %arg4[%c1_6, %c7_7, %c0_8], %12 {strides = array<i32>} : memref<2x10x128xf32, #tpu.memory_space<vmem>>, vector<1x3x128xf32>,
    %c0_9 = arith.constant 0 : index
    %c0_10 = arith.constant 0 : index
    %c0_11 = arith.constant 0 : index
    %13 = vector.load %arg1[%c0_9, %c0_10, %c0_11] : memref<2x16x128xf32, #tpu.memory_space<vmem>>, vector<1x4x128xf32>
    %14 = vector.shape_cast %13 : vector<1x4x128xf32> to vector<4x128xf32>
    %c0_12 = arith.constant 0 : index
    %c4 = arith.constant 4 : index
    %c0_13 = arith.constant 0 : index
    %15 = vector.load %arg1[%c0_12, %c4, %c0_13] : memref<2x16x128xf32, #tpu.memory_space<vmem>>, vector<1x4x128xf32>
    %16 = vector.shape_cast %15 : vector<1x4x128xf32> to vector<4x128xf32>
    %17 = arith.addf %14, %16 : vector<4x128xf32>
    %18 = arith.maximumf %14, %16 : vector<4x128xf32>
    %c0_14 = arith.constant 0 : index
    %c8 = arith.constant 8 : index
    %c0_15 = arith.constant 0 : index
    %19 = vector.load %arg1[%c0_14, %c8, %c0_15] : memref<2x16x128xf32, #tpu.memory_space<vmem>>, vector<1x4x128xf32>
    %20 = vector.shape_cast %19 : vector<1x4x128xf32> to vector<4x128xf32>
    %21 = arith.addf %17, %20 : vector<4x128xf32>
    %22 = arith.maximumf %18, %20 : vector<4x128xf32>
    %c0_16 = arith.constant 0 : index
    %c12 = arith.constant 12 : index
    %c0_17 = arith.constant 0 : index
    %23 = vector.load %arg1[%c0_16, %c12, %c0_17] : memref<2x16x128xf32, #tpu.memory_space<vmem>>, vector<1x4x128xf32>
    %24 = vector.shape_cast %23 : vector<1x4x128xf32> to vector<4x128xf32>
    %25 = arith.addf %21, %24 : vector<4x128xf32>
    %26 = arith.maximumf %22, %24 : vector<4x128xf32>
    %cst_18 = arith.constant 2.500000e-01 : f32
    %27 = vector.broadcast %cst_18 : f32 to vector<4x128xf32>
    %28 = arith.mulf %25, %27 : vector<4x128xf32>
    %c0_19 = arith.constant 0 : index
    %c3 = arith.constant 3 : index
    %c0_20 = arith.constant 0 : index
    %29 = vector.load %arg4[%c0_19, %c3, %c0_20] : memref<2x10x128xf32, #tpu.memory_space<vmem>>, vector<1x4x128xf32>
    %30 = vector.shape_cast %29 : vector<1x4x128xf32> to vector<4x128xf32>
    %31 = vector.shape_cast %28 : vector<4x128xf32> to vector<1x4x128xf32>
    tpu.vector_store %arg4[%c0_19, %c3, %c0_20], %31 {strides = array<i32>} : memref<2x10x128xf32, #tpu.memory_space<vmem>>, vector<1x4x128xf32>,
    %c1_21 = arith.constant 1 : index
    %c3_22 = arith.constant 3 : index
    %c0_23 = arith.constant 0 : index
    %32 = vector.load %arg4[%c1_21, %c3_22, %c0_23] : memref<2x10x128xf32, #tpu.memory_space<vmem>>, vector<1x4x128xf32>
    %33 = vector.shape_cast %32 : vector<1x4x128xf32> to vector<4x128xf32>
    %34 = vector.shape_cast %26 : vector<4x128xf32> to vector<1x4x128xf32>
    tpu.vector_store %arg4[%c1_21, %c3_22, %c0_23], %34 {strides = array<i32>} : memref<2x10x128xf32, #tpu.memory_space<vmem>>, vector<1x4x128xf32>,
    %cst_24 = arith.constant 0.000000e+00 : f32
    %35 = vector.broadcast %cst_24 : f32 to vector<4x128xf32>
    %cst_25 = arith.constant 0.000000e+00 : f32
    %36 = vector.broadcast %cst_25 : f32 to vector<4x128xf32>
    %c0_26 = arith.constant 0 : index
    %c0_27 = arith.constant 0 : index
    %c0_28 = arith.constant 0 : index
    %37 = vector.load %arg4[%c0_26, %c0_27, %c0_28] : memref<2x10x128xf32, #tpu.memory_space<vmem>>, vector<1x4x128xf32>
    %38 = vector.shape_cast %37 : vector<1x4x128xf32> to vector<4x128xf32>
    %c0_29 = arith.constant 0 : index
    %c0_30 = arith.constant 0 : index
    %c0_31 = arith.constant 0 : index
    %39 = vector.load %arg2[%c0_29, %c0_30, %c0_31] : memref<14x128x128xf32, #tpu.memory_space<vmem>>, vector<1x128x128xf32>
    %40 = vector.shape_cast %39 : vector<1x128x128xf32> to vector<128x128xf32>
    %cst_32 = arith.constant dense<0.000000e+00> : vector<4x128xf32>
    %41 = tpu.matmul %38, %40, %cst_32 {dimension_numbers = #tpu.dot_dimension_numbers<[1], [0], [0], [1], [0, 0, 1, 1], [], []>} : vector<4x128xf32>, vector<128x128xf32>, vector<4x128xf32> -> vector<4x128xf32>
    %42 = arith.addf %35, %41 : vector<4x128xf32>
    %c1_33 = arith.constant 1 : index
    %c0_34 = arith.constant 0 : index
    %c0_35 = arith.constant 0 : index
    %43 = vector.load %arg4[%c1_33, %c0_34, %c0_35] : memref<2x10x128xf32, #tpu.memory_space<vmem>>, vector<1x4x128xf32>
    %44 = vector.shape_cast %43 : vector<1x4x128xf32> to vector<4x128xf32>
    %c7_36 = arith.constant 7 : index
    %c0_37 = arith.constant 0 : index
    %c0_38 = arith.constant 0 : index
    %45 = vector.load %arg2[%c7_36, %c0_37, %c0_38] : memref<14x128x128xf32, #tpu.memory_space<vmem>>, vector<1x128x128xf32>
    %46 = vector.shape_cast %45 : vector<1x128x128xf32> to vector<128x128xf32>
    %cst_39 = arith.constant dense<0.000000e+00> : vector<4x128xf32>
    %47 = tpu.matmul %44, %46, %cst_39 {dimension_numbers = #tpu.dot_dimension_numbers<[1], [0], [0], [1], [0, 0, 1, 1], [], []>} : vector<4x128xf32>, vector<128x128xf32>, vector<4x128xf32> -> vector<4x128xf32>
    %48 = arith.addf %36, %47 : vector<4x128xf32>
    %c0_40 = arith.constant 0 : index
    %c1_41 = arith.constant 1 : index
    %c0_42 = arith.constant 0 : index
    %49 = vector.load %arg4[%c0_40, %c1_41, %c0_42] : memref<2x10x128xf32, #tpu.memory_space<vmem>>, vector<1x4x128xf32>
    %50 = vector.shape_cast %49 : vector<1x4x128xf32> to vector<4x128xf32>
    %c1_43 = arith.constant 1 : index
    %c0_44 = arith.constant 0 : index
    %c0_45 = arith.constant 0 : index
    %51 = vector.load %arg2[%c1_43, %c0_44, %c0_45] : memref<14x128x128xf32, #tpu.memory_space<vmem>>, vector<1x128x128xf32>
    %52 = vector.shape_cast %51 : vector<1x128x128xf32> to vector<128x128xf32>
    %cst_46 = arith.constant dense<0.000000e+00> : vector<4x128xf32>
    %53 = tpu.matmul %50, %52, %cst_46 {dimension_numbers = #tpu.dot_dimension_numbers<[1], [0], [0], [1], [0, 0, 1, 1], [], []>} : vector<4x128xf32>, vector<128x128xf32>, vector<4x128xf32> -> vector<4x128xf32>
    %54 = arith.addf %42, %53 : vector<4x128xf32>
    %c1_47 = arith.constant 1 : index
    %c1_48 = arith.constant 1 : index
    %c0_49 = arith.constant 0 : index
    %55 = vector.load %arg4[%c1_47, %c1_48, %c0_49] : memref<2x10x128xf32, #tpu.memory_space<vmem>>, vector<1x4x128xf32>
    %56 = vector.shape_cast %55 : vector<1x4x128xf32> to vector<4x128xf32>
    %c8_50 = arith.constant 8 : index
    %c0_51 = arith.constant 0 : index
    %c0_52 = arith.constant 0 : index
    %57 = vector.load %arg2[%c8_50, %c0_51, %c0_52] : memref<14x128x128xf32, #tpu.memory_space<vmem>>, vector<1x128x128xf32>
    %58 = vector.shape_cast %57 : vector<1x128x128xf32> to vector<128x128xf32>
    %cst_53 = arith.constant dense<0.000000e+00> : vector<4x128xf32>
    %59 = tpu.matmul %56, %58, %cst_53 {dimension_numbers = #tpu.dot_dimension_numbers<[1], [0], [0], [1], [0, 0, 1, 1], [], []>} : vector<4x128xf32>, vector<128x128xf32>, vector<4x128xf32> -> vector<4x128xf32>
    %60 = arith.addf %48, %59 : vector<4x128xf32>
    %c0_54 = arith.constant 0 : index
    %c2 = arith.constant 2 : index
    %c0_55 = arith.constant 0 : index
    %61 = vector.load %arg4[%c0_54, %c2, %c0_55] : memref<2x10x128xf32, #tpu.memory_space<vmem>>, vector<1x4x128xf32>
    %62 = vector.shape_cast %61 : vector<1x4x128xf32> to vector<4x128xf32>
    %c2_56 = arith.constant 2 : index
    %c0_57 = arith.constant 0 : index
    %c0_58 = arith.constant 0 : index
    %63 = vector.load %arg2[%c2_56, %c0_57, %c0_58] : memref<14x128x128xf32, #tpu.memory_space<vmem>>, vector<1x128x128xf32>
    %64 = vector.shape_cast %63 : vector<1x128x128xf32> to vector<128x128xf32>
    %cst_59 = arith.constant dense<0.000000e+00> : vector<4x128xf32>
    %65 = tpu.matmul %62, %64, %cst_59 {dimension_numbers = #tpu.dot_dimension_numbers<[1], [0], [0], [1], [0, 0, 1, 1], [], []>} : vector<4x128xf32>, vector<128x128xf32>, vector<4x128xf32> -> vector<4x128xf32>
    %66 = arith.addf %54, %65 : vector<4x128xf32>
    %c1_60 = arith.constant 1 : index
    %c2_61 = arith.constant 2 : index
    %c0_62 = arith.constant 0 : index
    %67 = vector.load %arg4[%c1_60, %c2_61, %c0_62] : memref<2x10x128xf32, #tpu.memory_space<vmem>>, vector<1x4x128xf32>
    %68 = vector.shape_cast %67 : vector<1x4x128xf32> to vector<4x128xf32>
    %c9 = arith.constant 9 : index
    %c0_63 = arith.constant 0 : index
    %c0_64 = arith.constant 0 : index
    %69 = vector.load %arg2[%c9, %c0_63, %c0_64] : memref<14x128x128xf32, #tpu.memory_space<vmem>>, vector<1x128x128xf32>
    %70 = vector.shape_cast %69 : vector<1x128x128xf32> to vector<128x128xf32>
    %cst_65 = arith.constant dense<0.000000e+00> : vector<4x128xf32>
    %71 = tpu.matmul %68, %70, %cst_65 {dimension_numbers = #tpu.dot_dimension_numbers<[1], [0], [0], [1], [0, 0, 1, 1], [], []>} : vector<4x128xf32>, vector<128x128xf32>, vector<4x128xf32> -> vector<4x128xf32>
    %72 = arith.addf %60, %71 : vector<4x128xf32>
    %c0_66 = arith.constant 0 : index
    %c3_67 = arith.constant 3 : index
    %c0_68 = arith.constant 0 : index
    %73 = vector.load %arg4[%c0_66, %c3_67, %c0_68] : memref<2x10x128xf32, #tpu.memory_space<vmem>>, vector<1x4x128xf32>
    %74 = vector.shape_cast %73 : vector<1x4x128xf32> to vector<4x128xf32>
    %c3_69 = arith.constant 3 : index
    %c0_70 = arith.constant 0 : index
    %c0_71 = arith.constant 0 : index
    %75 = vector.load %arg2[%c3_69, %c0_70, %c0_71] : memref<14x128x128xf32, #tpu.memory_space<vmem>>, vector<1x128x128xf32>
    %76 = vector.shape_cast %75 : vector<1x128x128xf32> to vector<128x128xf32>
    %cst_72 = arith.constant dense<0.000000e+00> : vector<4x128xf32>
    %77 = tpu.matmul %74, %76, %cst_72 {dimension_numbers = #tpu.dot_dimension_numbers<[1], [0], [0], [1], [0, 0, 1, 1], [], []>} : vector<4x128xf32>, vector<128x128xf32>, vector<4x128xf32> -> vector<4x128xf32>
    %78 = arith.addf %66, %77 : vector<4x128xf32>
    %c1_73 = arith.constant 1 : index
    %c3_74 = arith.constant 3 : index
    %c0_75 = arith.constant 0 : index
    %79 = vector.load %arg4[%c1_73, %c3_74, %c0_75] : memref<2x10x128xf32, #tpu.memory_space<vmem>>, vector<1x4x128xf32>
    %80 = vector.shape_cast %79 : vector<1x4x128xf32> to vector<4x128xf32>
    %c10 = arith.constant 10 : index
    %c0_76 = arith.constant 0 : index
    %c0_77 = arith.constant 0 : index
    %81 = vector.load %arg2[%c10, %c0_76, %c0_77] : memref<14x128x128xf32, #tpu.memory_space<vmem>>, vector<1x128x128xf32>
    %82 = vector.shape_cast %81 : vector<1x128x128xf32> to vector<128x128xf32>
    %cst_78 = arith.constant dense<0.000000e+00> : vector<4x128xf32>
    %83 = tpu.matmul %80, %82, %cst_78 {dimension_numbers = #tpu.dot_dimension_numbers<[1], [0], [0], [1], [0, 0, 1, 1], [], []>} : vector<4x128xf32>, vector<128x128xf32>, vector<4x128xf32> -> vector<4x128xf32>
    %84 = arith.addf %72, %83 : vector<4x128xf32>
    %c0_79 = arith.constant 0 : index
    %c4_80 = arith.constant 4 : index
    %c0_81 = arith.constant 0 : index
    %85 = vector.load %arg4[%c0_79, %c4_80, %c0_81] : memref<2x10x128xf32, #tpu.memory_space<vmem>>, vector<1x4x128xf32>
    %86 = vector.shape_cast %85 : vector<1x4x128xf32> to vector<4x128xf32>
    %c4_82 = arith.constant 4 : index
    %c0_83 = arith.constant 0 : index
    %c0_84 = arith.constant 0 : index
    %87 = vector.load %arg2[%c4_82, %c0_83, %c0_84] : memref<14x128x128xf32, #tpu.memory_space<vmem>>, vector<1x128x128xf32>
    %88 = vector.shape_cast %87 : vector<1x128x128xf32> to vector<128x128xf32>
    %cst_85 = arith.constant dense<0.000000e+00> : vector<4x128xf32>
    %89 = tpu.matmul %86, %88, %cst_85 {dimension_numbers = #tpu.dot_dimension_numbers<[1], [0], [0], [1], [0, 0, 1, 1], [], []>} : vector<4x128xf32>, vector<128x128xf32>, vector<4x128xf32> -> vector<4x128xf32>
    %90 = arith.addf %78, %89 : vector<4x128xf32>
    %c1_86 = arith.constant 1 : index
    %c4_87 = arith.constant 4 : index
    %c0_88 = arith.constant 0 : index
    %91 = vector.load %arg4[%c1_86, %c4_87, %c0_88] : memref<2x10x128xf32, #tpu.memory_space<vmem>>, vector<1x4x128xf32>
    %92 = vector.shape_cast %91 : vector<1x4x128xf32> to vector<4x128xf32>
    %c11 = arith.constant 11 : index
    %c0_89 = arith.constant 0 : index
    %c0_90 = arith.constant 0 : index
    %93 = vector.load %arg2[%c11, %c0_89, %c0_90] : memref<14x128x128xf32, #tpu.memory_space<vmem>>, vector<1x128x128xf32>
    %94 = vector.shape_cast %93 : vector<1x128x128xf32> to vector<128x128xf32>
    %cst_91 = arith.constant dense<0.000000e+00> : vector<4x128xf32>
    %95 = tpu.matmul %92, %94, %cst_91 {dimension_numbers = #tpu.dot_dimension_numbers<[1], [0], [0], [1], [0, 0, 1, 1], [], []>} : vector<4x128xf32>, vector<128x128xf32>, vector<4x128xf32> -> vector<4x128xf32>
    %96 = arith.addf %84, %95 : vector<4x128xf32>
    %c0_92 = arith.constant 0 : index
    %c5 = arith.constant 5 : index
    %c0_93 = arith.constant 0 : index
    %97 = vector.load %arg4[%c0_92, %c5, %c0_93] : memref<2x10x128xf32, #tpu.memory_space<vmem>>, vector<1x4x128xf32>
    %98 = vector.shape_cast %97 : vector<1x4x128xf32> to vector<4x128xf32>
    %c5_94 = arith.constant 5 : index
    %c0_95 = arith.constant 0 : index
    %c0_96 = arith.constant 0 : index
    %99 = vector.load %arg2[%c5_94, %c0_95, %c0_96] : memref<14x128x128xf32, #tpu.memory_space<vmem>>, vector<1x128x128xf32>
    %100 = vector.shape_cast %99 : vector<1x128x128xf32> to vector<128x128xf32>
    %cst_97 = arith.constant dense<0.000000e+00> : vector<4x128xf32>
    %101 = tpu.matmul %98, %100, %cst_97 {dimension_numbers = #tpu.dot_dimension_numbers<[1], [0], [0], [1], [0, 0, 1, 1], [], []>} : vector<4x128xf32>, vector<128x128xf32>, vector<4x128xf32> -> vector<4x128xf32>
    %102 = arith.addf %90, %101 : vector<4x128xf32>
    %c1_98 = arith.constant 1 : index
    %c5_99 = arith.constant 5 : index
    %c0_100 = arith.constant 0 : index
    %103 = vector.load %arg4[%c1_98, %c5_99, %c0_100] : memref<2x10x128xf32, #tpu.memory_space<vmem>>, vector<1x4x128xf32>
    %104 = vector.shape_cast %103 : vector<1x4x128xf32> to vector<4x128xf32>
    %c12_101 = arith.constant 12 : index
    %c0_102 = arith.constant 0 : index
    %c0_103 = arith.constant 0 : index
    %105 = vector.load %arg2[%c12_101, %c0_102, %c0_103] : memref<14x128x128xf32, #tpu.memory_space<vmem>>, vector<1x128x128xf32>
    %106 = vector.shape_cast %105 : vector<1x128x128xf32> to vector<128x128xf32>
    %cst_104 = arith.constant dense<0.000000e+00> : vector<4x128xf32>
    %107 = tpu.matmul %104, %106, %cst_104 {dimension_numbers = #tpu.dot_dimension_numbers<[1], [0], [0], [1], [0, 0, 1, 1], [], []>} : vector<4x128xf32>, vector<128x128xf32>, vector<4x128xf32> -> vector<4x128xf32>
    %108 = arith.addf %96, %107 : vector<4x128xf32>
    %c0_105 = arith.constant 0 : index
    %c6 = arith.constant 6 : index
    %c0_106 = arith.constant 0 : index
    %109 = vector.load %arg4[%c0_105, %c6, %c0_106] : memref<2x10x128xf32, #tpu.memory_space<vmem>>, vector<1x4x128xf32>
    %110 = vector.shape_cast %109 : vector<1x4x128xf32> to vector<4x128xf32>
    %c6_107 = arith.constant 6 : index
    %c0_108 = arith.constant 0 : index
    %c0_109 = arith.constant 0 : index
    %111 = vector.load %arg2[%c6_107, %c0_108, %c0_109] : memref<14x128x128xf32, #tpu.memory_space<vmem>>, vector<1x128x128xf32>
    %112 = vector.shape_cast %111 : vector<1x128x128xf32> to vector<128x128xf32>
    %cst_110 = arith.constant dense<0.000000e+00> : vector<4x128xf32>
    %113 = tpu.matmul %110, %112, %cst_110 {dimension_numbers = #tpu.dot_dimension_numbers<[1], [0], [0], [1], [0, 0, 1, 1], [], []>} : vector<4x128xf32>, vector<128x128xf32>, vector<4x128xf32> -> vector<4x128xf32>
    %114 = arith.addf %102, %113 : vector<4x128xf32>
    %c1_111 = arith.constant 1 : index
    %c6_112 = arith.constant 6 : index
    %c0_113 = arith.constant 0 : index
    %115 = vector.load %arg4[%c1_111, %c6_112, %c0_113] : memref<2x10x128xf32, #tpu.memory_space<vmem>>, vector<1x4x128xf32>
    %116 = vector.shape_cast %115 : vector<1x4x128xf32> to vector<4x128xf32>
    %c13 = arith.constant 13 : index
    %c0_114 = arith.constant 0 : index
    %c0_115 = arith.constant 0 : index
    %117 = vector.load %arg2[%c13, %c0_114, %c0_115] : memref<14x128x128xf32, #tpu.memory_space<vmem>>, vector<1x128x128xf32>
    %118 = vector.shape_cast %117 : vector<1x128x128xf32> to vector<128x128xf32>
    %cst_116 = arith.constant dense<0.000000e+00> : vector<4x128xf32>
    %119 = tpu.matmul %116, %118, %cst_116 {dimension_numbers = #tpu.dot_dimension_numbers<[1], [0], [0], [1], [0, 0, 1, 1], [], []>} : vector<4x128xf32>, vector<128x128xf32>, vector<4x128xf32> -> vector<4x128xf32>
    %120 = arith.addf %108, %119 : vector<4x128xf32>
    %121 = arith.addf %114, %120 : vector<4x128xf32>
    %122 = arith.negf %121 : vector<4x128xf32>
    %123 = math.exp %122 : vector<4x128xf32>
    %cst_117 = arith.constant 1.000000e+00 : f32
    %124 = vector.broadcast %cst_117 : f32 to vector<4x128xf32>
    %125 = arith.addf %124, %123 : vector<4x128xf32>
    %126 = arith.divf %124, %125 : vector<4x128xf32>
    %127 = tpu.concatenate %126, %126, %126, %126 in 0 : vector<4x128xf32>, vector<4x128xf32>, vector<4x128xf32>, vector<4x128xf32> -> vector<16x128xf32>
    %c0_118 = arith.constant 0 : index
    %c0_119 = arith.constant 0 : index
    %c0_120 = arith.constant 0 : index
    %128 = vector.load %arg1[%c0_118, %c0_119, %c0_120] : memref<2x16x128xf32, #tpu.memory_space<vmem>>, vector<1x16x128xf32>
    %129 = vector.shape_cast %128 : vector<1x16x128xf32> to vector<16x128xf32>
    %130 = arith.mulf %129, %127 : vector<16x128xf32>
    %c0_121 = arith.constant 0 : index
    %c0_122 = arith.constant 0 : index
    %c0_123 = arith.constant 0 : index
    %131 = vector.load %arg3[%c0_121, %c0_122, %c0_123] : memref<2x16x128xf32, #tpu.memory_space<vmem>>, vector<1x16x128xf32>
    %132 = vector.shape_cast %131 : vector<1x16x128xf32> to vector<16x128xf32>
    %133 = vector.shape_cast %130 : vector<16x128xf32> to vector<1x16x128xf32>
    tpu.vector_store %arg3[%c0_121, %c0_122, %c0_123], %133 {strides = array<i32>} : memref<2x16x128xf32, #tpu.memory_space<vmem>>, vector<1x16x128xf32>,
    %c1_124 = arith.constant 1 : index
    %c0_125 = arith.constant 0 : index
    %c0_126 = arith.constant 0 : index
    %134 = vector.load %arg1[%c1_124, %c0_125, %c0_126] : memref<2x16x128xf32, #tpu.memory_space<vmem>>, vector<1x4x128xf32>
    %135 = vector.shape_cast %134 : vector<1x4x128xf32> to vector<4x128xf32>
    %c1_127 = arith.constant 1 : index
    %c4_128 = arith.constant 4 : index
    %c0_129 = arith.constant 0 : index
    %136 = vector.load %arg1[%c1_127, %c4_128, %c0_129] : memref<2x16x128xf32, #tpu.memory_space<vmem>>, vector<1x4x128xf32>
    %137 = vector.shape_cast %136 : vector<1x4x128xf32> to vector<4x128xf32>
    %138 = arith.addf %135, %137 : vector<4x128xf32>
    %139 = arith.maximumf %135, %137 : vector<4x128xf32>
    %c1_130 = arith.constant 1 : index
    %c8_131 = arith.constant 8 : index
    %c0_132 = arith.constant 0 : index
    %140 = vector.load %arg1[%c1_130, %c8_131, %c0_132] : memref<2x16x128xf32, #tpu.memory_space<vmem>>, vector<1x4x128xf32>
    %141 = vector.shape_cast %140 : vector<1x4x128xf32> to vector<4x128xf32>
    %142 = arith.addf %138, %141 : vector<4x128xf32>
    %143 = arith.maximumf %139, %141 : vector<4x128xf32>
    %c1_133 = arith.constant 1 : index
    %c12_134 = arith.constant 12 : index
    %c0_135 = arith.constant 0 : index
    %144 = vector.load %arg1[%c1_133, %c12_134, %c0_135] : memref<2x16x128xf32, #tpu.memory_space<vmem>>, vector<1x4x128xf32>
    %145 = vector.shape_cast %144 : vector<1x4x128xf32> to vector<4x128xf32>
    %146 = arith.addf %142, %145 : vector<4x128xf32>
    %147 = arith.maximumf %143, %145 : vector<4x128xf32>
    %cst_136 = arith.constant 2.500000e-01 : f32
    %148 = vector.broadcast %cst_136 : f32 to vector<4x128xf32>
    %149 = arith.mulf %146, %148 : vector<4x128xf32>
    %c0_137 = arith.constant 0 : index
    %c3_138 = arith.constant 3 : index
    %c0_139 = arith.constant 0 : index
    %150 = vector.load %arg4[%c0_137, %c3_138, %c0_139] : memref<2x10x128xf32, #tpu.memory_space<vmem>>, vector<1x4x128xf32>
    %151 = vector.shape_cast %150 : vector<1x4x128xf32> to vector<4x128xf32>
    %152 = vector.shape_cast %149 : vector<4x128xf32> to vector<1x4x128xf32>
    tpu.vector_store %arg4[%c0_137, %c3_138, %c0_139], %152 {strides = array<i32>} : memref<2x10x128xf32, #tpu.memory_space<vmem>>, vector<1x4x128xf32>,
    %c1_140 = arith.constant 1 : index
    %c3_141 = arith.constant 3 : index
    %c0_142 = arith.constant 0 : index
    %153 = vector.load %arg4[%c1_140, %c3_141, %c0_142] : memref<2x10x128xf32, #tpu.memory_space<vmem>>, vector<1x4x128xf32>
    %154 = vector.shape_cast %153 : vector<1x4x128xf32> to vector<4x128xf32>
    %155 = vector.shape_cast %147 : vector<4x128xf32> to vector<1x4x128xf32>
    tpu.vector_store %arg4[%c1_140, %c3_141, %c0_142], %155 {strides = array<i32>} : memref<2x10x128xf32, #tpu.memory_space<vmem>>, vector<1x4x128xf32>,
    %cst_143 = arith.constant 0.000000e+00 : f32
    %156 = vector.broadcast %cst_143 : f32 to vector<4x128xf32>
    %cst_144 = arith.constant 0.000000e+00 : f32
    %157 = vector.broadcast %cst_144 : f32 to vector<4x128xf32>
    %c0_145 = arith.constant 0 : index
    %c0_146 = arith.constant 0 : index
    %c0_147 = arith.constant 0 : index
    %158 = vector.load %arg4[%c0_145, %c0_146, %c0_147] : memref<2x10x128xf32, #tpu.memory_space<vmem>>, vector<1x4x128xf32>
    %159 = vector.shape_cast %158 : vector<1x4x128xf32> to vector<4x128xf32>
    %c0_148 = arith.constant 0 : index
    %c0_149 = arith.constant 0 : index
    %c0_150 = arith.constant 0 : index
    %160 = vector.load %arg2[%c0_148, %c0_149, %c0_150] : memref<14x128x128xf32, #tpu.memory_space<vmem>>, vector<1x128x128xf32>
    %161 = vector.shape_cast %160 : vector<1x128x128xf32> to vector<128x128xf32>
    %cst_151 = arith.constant dense<0.000000e+00> : vector<4x128xf32>
    %162 = tpu.matmul %159, %161, %cst_151 {dimension_numbers = #tpu.dot_dimension_numbers<[1], [0], [0], [1], [0, 0, 1, 1], [], []>} : vector<4x128xf32>, vector<128x128xf32>, vector<4x128xf32> -> vector<4x128xf32>
    %163 = arith.addf %156, %162 : vector<4x128xf32>
    %c1_152 = arith.constant 1 : index
    %c0_153 = arith.constant 0 : index
    %c0_154 = arith.constant 0 : index
    %164 = vector.load %arg4[%c1_152, %c0_153, %c0_154] : memref<2x10x128xf32, #tpu.memory_space<vmem>>, vector<1x4x128xf32>
    %165 = vector.shape_cast %164 : vector<1x4x128xf32> to vector<4x128xf32>
    %c7_155 = arith.constant 7 : index
    %c0_156 = arith.constant 0 : index
    %c0_157 = arith.constant 0 : index
    %166 = vector.load %arg2[%c7_155, %c0_156, %c0_157] : memref<14x128x128xf32, #tpu.memory_space<vmem>>, vector<1x128x128xf32>
    %167 = vector.shape_cast %166 : vector<1x128x128xf32> to vector<128x128xf32>
    %cst_158 = arith.constant dense<0.000000e+00> : vector<4x128xf32>
    %168 = tpu.matmul %165, %167, %cst_158 {dimension_numbers = #tpu.dot_dimension_numbers<[1], [0], [0], [1], [0, 0, 1, 1], [], []>} : vector<4x128xf32>, vector<128x128xf32>, vector<4x128xf32> -> vector<4x128xf32>
    %169 = arith.addf %157, %168 : vector<4x128xf32>
    %c0_159 = arith.constant 0 : index
    %c1_160 = arith.constant 1 : index
    %c0_161 = arith.constant 0 : index
    %170 = vector.load %arg4[%c0_159, %c1_160, %c0_161] : memref<2x10x128xf32, #tpu.memory_space<vmem>>, vector<1x4x128xf32>
    %171 = vector.shape_cast %170 : vector<1x4x128xf32> to vector<4x128xf32>
    %c1_162 = arith.constant 1 : index
    %c0_163 = arith.constant 0 : index
    %c0_164 = arith.constant 0 : index
    %172 = vector.load %arg2[%c1_162, %c0_163, %c0_164] : memref<14x128x128xf32, #tpu.memory_space<vmem>>, vector<1x128x128xf32>
    %173 = vector.shape_cast %172 : vector<1x128x128xf32> to vector<128x128xf32>
    %cst_165 = arith.constant dense<0.000000e+00> : vector<4x128xf32>
    %174 = tpu.matmul %171, %173, %cst_165 {dimension_numbers = #tpu.dot_dimension_numbers<[1], [0], [0], [1], [0, 0, 1, 1], [], []>} : vector<4x128xf32>, vector<128x128xf32>, vector<4x128xf32> -> vector<4x128xf32>
    %175 = arith.addf %163, %174 : vector<4x128xf32>
    %c1_166 = arith.constant 1 : index
    %c1_167 = arith.constant 1 : index
    %c0_168 = arith.constant 0 : index
    %176 = vector.load %arg4[%c1_166, %c1_167, %c0_168] : memref<2x10x128xf32, #tpu.memory_space<vmem>>, vector<1x4x128xf32>
    %177 = vector.shape_cast %176 : vector<1x4x128xf32> to vector<4x128xf32>
    %c8_169 = arith.constant 8 : index
    %c0_170 = arith.constant 0 : index
    %c0_171 = arith.constant 0 : index
    %178 = vector.load %arg2[%c8_169, %c0_170, %c0_171] : memref<14x128x128xf32, #tpu.memory_space<vmem>>, vector<1x128x128xf32>
    %179 = vector.shape_cast %178 : vector<1x128x128xf32> to vector<128x128xf32>
    %cst_172 = arith.constant dense<0.000000e+00> : vector<4x128xf32>
    %180 = tpu.matmul %177, %179, %cst_172 {dimension_numbers = #tpu.dot_dimension_numbers<[1], [0], [0], [1], [0, 0, 1, 1], [], []>} : vector<4x128xf32>, vector<128x128xf32>, vector<4x128xf32> -> vector<4x128xf32>
    %181 = arith.addf %169, %180 : vector<4x128xf32>
    %c0_173 = arith.constant 0 : index
    %c2_174 = arith.constant 2 : index
    %c0_175 = arith.constant 0 : index
    %182 = vector.load %arg4[%c0_173, %c2_174, %c0_175] : memref<2x10x128xf32, #tpu.memory_space<vmem>>, vector<1x4x128xf32>
    %183 = vector.shape_cast %182 : vector<1x4x128xf32> to vector<4x128xf32>
    %c2_176 = arith.constant 2 : index
    %c0_177 = arith.constant 0 : index
    %c0_178 = arith.constant 0 : index
    %184 = vector.load %arg2[%c2_176, %c0_177, %c0_178] : memref<14x128x128xf32, #tpu.memory_space<vmem>>, vector<1x128x128xf32>
    %185 = vector.shape_cast %184 : vector<1x128x128xf32> to vector<128x128xf32>
    %cst_179 = arith.constant dense<0.000000e+00> : vector<4x128xf32>
    %186 = tpu.matmul %183, %185, %cst_179 {dimension_numbers = #tpu.dot_dimension_numbers<[1], [0], [0], [1], [0, 0, 1, 1], [], []>} : vector<4x128xf32>, vector<128x128xf32>, vector<4x128xf32> -> vector<4x128xf32>
    %187 = arith.addf %175, %186 : vector<4x128xf32>
    %c1_180 = arith.constant 1 : index
    %c2_181 = arith.constant 2 : index
    %c0_182 = arith.constant 0 : index
    %188 = vector.load %arg4[%c1_180, %c2_181, %c0_182] : memref<2x10x128xf32, #tpu.memory_space<vmem>>, vector<1x4x128xf32>
    %189 = vector.shape_cast %188 : vector<1x4x128xf32> to vector<4x128xf32>
    %c9_183 = arith.constant 9 : index
    %c0_184 = arith.constant 0 : index
    %c0_185 = arith.constant 0 : index
    %190 = vector.load %arg2[%c9_183, %c0_184, %c0_185] : memref<14x128x128xf32, #tpu.memory_space<vmem>>, vector<1x128x128xf32>
    %191 = vector.shape_cast %190 : vector<1x128x128xf32> to vector<128x128xf32>
    %cst_186 = arith.constant dense<0.000000e+00> : vector<4x128xf32>
    %192 = tpu.matmul %189, %191, %cst_186 {dimension_numbers = #tpu.dot_dimension_numbers<[1], [0], [0], [1], [0, 0, 1, 1], [], []>} : vector<4x128xf32>, vector<128x128xf32>, vector<4x128xf32> -> vector<4x128xf32>
    %193 = arith.addf %181, %192 : vector<4x128xf32>
    %c0_187 = arith.constant 0 : index
    %c3_188 = arith.constant 3 : index
    %c0_189 = arith.constant 0 : index
    %194 = vector.load %arg4[%c0_187, %c3_188, %c0_189] : memref<2x10x128xf32, #tpu.memory_space<vmem>>, vector<1x4x128xf32>
    %195 = vector.shape_cast %194 : vector<1x4x128xf32> to vector<4x128xf32>
    %c3_190 = arith.constant 3 : index
    %c0_191 = arith.constant 0 : index
    %c0_192 = arith.constant 0 : index
    %196 = vector.load %arg2[%c3_190, %c0_191, %c0_192] : memref<14x128x128xf32, #tpu.memory_space<vmem>>, vector<1x128x128xf32>
    %197 = vector.shape_cast %196 : vector<1x128x128xf32> to vector<128x128xf32>
    %cst_193 = arith.constant dense<0.000000e+00> : vector<4x128xf32>
    %198 = tpu.matmul %195, %197, %cst_193 {dimension_numbers = #tpu.dot_dimension_numbers<[1], [0], [0], [1], [0, 0, 1, 1], [], []>} : vector<4x128xf32>, vector<128x128xf32>, vector<4x128xf32> -> vector<4x128xf32>
    %199 = arith.addf %187, %198 : vector<4x128xf32>
    %c1_194 = arith.constant 1 : index
    %c3_195 = arith.constant 3 : index
    %c0_196 = arith.constant 0 : index
    %200 = vector.load %arg4[%c1_194, %c3_195, %c0_196] : memref<2x10x128xf32, #tpu.memory_space<vmem>>, vector<1x4x128xf32>
    %201 = vector.shape_cast %200 : vector<1x4x128xf32> to vector<4x128xf32>
    %c10_197 = arith.constant 10 : index
    %c0_198 = arith.constant 0 : index
    %c0_199 = arith.constant 0 : index
    %202 = vector.load %arg2[%c10_197, %c0_198, %c0_199] : memref<14x128x128xf32, #tpu.memory_space<vmem>>, vector<1x128x128xf32>
    %203 = vector.shape_cast %202 : vector<1x128x128xf32> to vector<128x128xf32>
    %cst_200 = arith.constant dense<0.000000e+00> : vector<4x128xf32>
    %204 = tpu.matmul %201, %203, %cst_200 {dimension_numbers = #tpu.dot_dimension_numbers<[1], [0], [0], [1], [0, 0, 1, 1], [], []>} : vector<4x128xf32>, vector<128x128xf32>, vector<4x128xf32> -> vector<4x128xf32>
    %205 = arith.addf %193, %204 : vector<4x128xf32>
    %c0_201 = arith.constant 0 : index
    %c4_202 = arith.constant 4 : index
    %c0_203 = arith.constant 0 : index
    %206 = vector.load %arg4[%c0_201, %c4_202, %c0_203] : memref<2x10x128xf32, #tpu.memory_space<vmem>>, vector<1x4x128xf32>
    %207 = vector.shape_cast %206 : vector<1x4x128xf32> to vector<4x128xf32>
    %c4_204 = arith.constant 4 : index
    %c0_205 = arith.constant 0 : index
    %c0_206 = arith.constant 0 : index
    %208 = vector.load %arg2[%c4_204, %c0_205, %c0_206] : memref<14x128x128xf32, #tpu.memory_space<vmem>>, vector<1x128x128xf32>
    %209 = vector.shape_cast %208 : vector<1x128x128xf32> to vector<128x128xf32>
    %cst_207 = arith.constant dense<0.000000e+00> : vector<4x128xf32>
    %210 = tpu.matmul %207, %209, %cst_207 {dimension_numbers = #tpu.dot_dimension_numbers<[1], [0], [0], [1], [0, 0, 1, 1], [], []>} : vector<4x128xf32>, vector<128x128xf32>, vector<4x128xf32> -> vector<4x128xf32>
    %211 = arith.addf %199, %210 : vector<4x128xf32>
    %c1_208 = arith.constant 1 : index
    %c4_209 = arith.constant 4 : index
    %c0_210 = arith.constant 0 : index
    %212 = vector.load %arg4[%c1_208, %c4_209, %c0_210] : memref<2x10x128xf32, #tpu.memory_space<vmem>>, vector<1x4x128xf32>
    %213 = vector.shape_cast %212 : vector<1x4x128xf32> to vector<4x128xf32>
    %c11_211 = arith.constant 11 : index
    %c0_212 = arith.constant 0 : index
    %c0_213 = arith.constant 0 : index
    %214 = vector.load %arg2[%c11_211, %c0_212, %c0_213] : memref<14x128x128xf32, #tpu.memory_space<vmem>>, vector<1x128x128xf32>
    %215 = vector.shape_cast %214 : vector<1x128x128xf32> to vector<128x128xf32>
    %cst_214 = arith.constant dense<0.000000e+00> : vector<4x128xf32>
    %216 = tpu.matmul %213, %215, %cst_214 {dimension_numbers = #tpu.dot_dimension_numbers<[1], [0], [0], [1], [0, 0, 1, 1], [], []>} : vector<4x128xf32>, vector<128x128xf32>, vector<4x128xf32> -> vector<4x128xf32>
    %217 = arith.addf %205, %216 : vector<4x128xf32>
    %c0_215 = arith.constant 0 : index
    %c5_216 = arith.constant 5 : index
    %c0_217 = arith.constant 0 : index
    %218 = vector.load %arg4[%c0_215, %c5_216, %c0_217] : memref<2x10x128xf32, #tpu.memory_space<vmem>>, vector<1x4x128xf32>
    %219 = vector.shape_cast %218 : vector<1x4x128xf32> to vector<4x128xf32>
    %c5_218 = arith.constant 5 : index
    %c0_219 = arith.constant 0 : index
    %c0_220 = arith.constant 0 : index
    %220 = vector.load %arg2[%c5_218, %c0_219, %c0_220] : memref<14x128x128xf32, #tpu.memory_space<vmem>>, vector<1x128x128xf32>
    %221 = vector.shape_cast %220 : vector<1x128x128xf32> to vector<128x128xf32>
    %cst_221 = arith.constant dense<0.000000e+00> : vector<4x128xf32>
    %222 = tpu.matmul %219, %221, %cst_221 {dimension_numbers = #tpu.dot_dimension_numbers<[1], [0], [0], [1], [0, 0, 1, 1], [], []>} : vector<4x128xf32>, vector<128x128xf32>, vector<4x128xf32> -> vector<4x128xf32>
    %223 = arith.addf %211, %222 : vector<4x128xf32>
    %c1_222 = arith.constant 1 : index
    %c5_223 = arith.constant 5 : index
    %c0_224 = arith.constant 0 : index
    %224 = vector.load %arg4[%c1_222, %c5_223, %c0_224] : memref<2x10x128xf32, #tpu.memory_space<vmem>>, vector<1x4x128xf32>
    %225 = vector.shape_cast %224 : vector<1x4x128xf32> to vector<4x128xf32>
    %c12_225 = arith.constant 12 : index
    %c0_226 = arith.constant 0 : index
    %c0_227 = arith.constant 0 : index
    %226 = vector.load %arg2[%c12_225, %c0_226, %c0_227] : memref<14x128x128xf32, #tpu.memory_space<vmem>>, vector<1x128x128xf32>
    %227 = vector.shape_cast %226 : vector<1x128x128xf32> to vector<128x128xf32>
    %cst_228 = arith.constant dense<0.000000e+00> : vector<4x128xf32>
    %228 = tpu.matmul %225, %227, %cst_228 {dimension_numbers = #tpu.dot_dimension_numbers<[1], [0], [0], [1], [0, 0, 1, 1], [], []>} : vector<4x128xf32>, vector<128x128xf32>, vector<4x128xf32> -> vector<4x128xf32>
    %229 = arith.addf %217, %228 : vector<4x128xf32>
    %c0_229 = arith.constant 0 : index
    %c6_230 = arith.constant 6 : index
    %c0_231 = arith.constant 0 : index
    %230 = vector.load %arg4[%c0_229, %c6_230, %c0_231] : memref<2x10x128xf32, #tpu.memory_space<vmem>>, vector<1x4x128xf32>
    %231 = vector.shape_cast %230 : vector<1x4x128xf32> to vector<4x128xf32>
    %c6_232 = arith.constant 6 : index
    %c0_233 = arith.constant 0 : index
    %c0_234 = arith.constant 0 : index
    %232 = vector.load %arg2[%c6_232, %c0_233, %c0_234] : memref<14x128x128xf32, #tpu.memory_space<vmem>>, vector<1x128x128xf32>
    %233 = vector.shape_cast %232 : vector<1x128x128xf32> to vector<128x128xf32>
    %cst_235 = arith.constant dense<0.000000e+00> : vector<4x128xf32>
    %234 = tpu.matmul %231, %233, %cst_235 {dimension_numbers = #tpu.dot_dimension_numbers<[1], [0], [0], [1], [0, 0, 1, 1], [], []>} : vector<4x128xf32>, vector<128x128xf32>, vector<4x128xf32> -> vector<4x128xf32>
    %235 = arith.addf %223, %234 : vector<4x128xf32>
    %c1_236 = arith.constant 1 : index
    %c6_237 = arith.constant 6 : index
    %c0_238 = arith.constant 0 : index
    %236 = vector.load %arg4[%c1_236, %c6_237, %c0_238] : memref<2x10x128xf32, #tpu.memory_space<vmem>>, vector<1x4x128xf32>
    %237 = vector.shape_cast %236 : vector<1x4x128xf32> to vector<4x128xf32>
    %c13_239 = arith.constant 13 : index
    %c0_240 = arith.constant 0 : index
    %c0_241 = arith.constant 0 : index
    %238 = vector.load %arg2[%c13_239, %c0_240, %c0_241] : memref<14x128x128xf32, #tpu.memory_space<vmem>>, vector<1x128x128xf32>
    %239 = vector.shape_cast %238 : vector<1x128x128xf32> to vector<128x128xf32>
    %cst_242 = arith.constant dense<0.000000e+00> : vector<4x128xf32>
    %240 = tpu.matmul %237, %239, %cst_242 {dimension_numbers = #tpu.dot_dimension_numbers<[1], [0], [0], [1], [0, 0, 1, 1], [], []>} : vector<4x128xf32>, vector<128x128xf32>, vector<4x128xf32> -> vector<4x128xf32>
    %241 = arith.addf %229, %240 : vector<4x128xf32>
    %242 = arith.addf %235, %241 : vector<4x128xf32>
    %243 = arith.negf %242 : vector<4x128xf32>
    %244 = math.exp %243 : vector<4x128xf32>
    %cst_243 = arith.constant 1.000000e+00 : f32
    %245 = vector.broadcast %cst_243 : f32 to vector<4x128xf32>
    %246 = arith.addf %245, %244 : vector<4x128xf32>
    %247 = arith.divf %245, %246 : vector<4x128xf32>
    %248 = tpu.concatenate %247, %247, %247, %247 in 0 : vector<4x128xf32>, vector<4x128xf32>, vector<4x128xf32>, vector<4x128xf32> -> vector<16x128xf32>
    %c1_244 = arith.constant 1 : index
    %c0_245 = arith.constant 0 : index
    %c0_246 = arith.constant 0 : index
    %249 = vector.load %arg1[%c1_244, %c0_245, %c0_246] : memref<2x16x128xf32, #tpu.memory_space<vmem>>, vector<1x16x128xf32>
    %250 = vector.shape_cast %249 : vector<1x16x128xf32> to vector<16x128xf32>
    %251 = arith.mulf %250, %248 : vector<16x128xf32>
    %c1_247 = arith.constant 1 : index
    %c0_248 = arith.constant 0 : index
    %c0_249 = arith.constant 0 : index
    %252 = vector.load %arg3[%c1_247, %c0_248, %c0_249] : memref<2x16x128xf32, #tpu.memory_space<vmem>>, vector<1x16x128xf32>
    %253 = vector.shape_cast %252 : vector<1x16x128xf32> to vector<16x128xf32>
    %254 = vector.shape_cast %251 : vector<16x128xf32> to vector<1x16x128xf32>
    tpu.vector_store %arg3[%c1_247, %c0_248, %c0_249], %254 {strides = array<i32>} : memref<2x16x128xf32, #tpu.memory_space<vmem>>, vector<1x16x128xf32>,
    return
  }
  func.func @transform_0(%arg0: i32) -> (i32, i32, i32) {
    %c0_i32 = arith.constant 0 : i32
    %c0_i32_0 = arith.constant 0 : i32
    %c0_i32_1 = arith.constant 0 : i32
    return %arg0, %c0_i32, %c0_i32_0 : i32, i32, i32
  }
  func.func @transform_1(%arg0: i32) -> (i32, i32, i32) {
    %c0_i32 = arith.constant 0 : i32
    %c0_i32_0 = arith.constant 0 : i32
    %c0_i32_1 = arith.constant 0 : i32
    %c0_i32_2 = arith.constant 0 : i32
    return %c0_i32, %c0_i32_0, %c0_i32_1 : i32, i32, i32
  }
  func.func @transform_2(%arg0: i32) -> (i32, i32, i32) {
    %c0_i32 = arith.constant 0 : i32
    %c0_i32_0 = arith.constant 0 : i32
    %c0_i32_1 = arith.constant 0 : i32
    return %arg0, %c0_i32, %c0_i32_0 : i32, i32, i32
  }
}

</mosaic_0001>

<llo_original>
// kernel: tpu_custom_call.1
$region0: #{tpu_custom_call.1}
  #allocation0 [shape = 'u32[]', space=smem, size = 0x4, offset = 0x4, fixed_abs, tag = 'smem constant byte address 0x4 - core index']
  #allocation1 [shape = 'u32[144,128]{1,0:T(1,128)}', space=vmem, size = 0x12000, scoped, tag = 'internal scratch']
  #allocation2 [shape = 'f32[2,10,128]{2,1,0:T(8,128)}', space=vmem, size = 0x4000, scoped, tag = 'scratch operand']
  %s0 = inlined_call_operand.hbm [shape: f32[4,16,128], index: 0, kind: input, shape index: {}]
  %s1 = inlined_call_operand.hbm [shape: f32[14,128,128], index: 1, kind: input, shape index: {}]
  %s2 = inlined_call_operand.hbm [shape: f32[4,16,128], index: 2, kind: output, shape index: {}]
  %s3 = sld [smem:[#allocation0]]
  $region49: #{tpu_custom_call.1} parent=0
    _
  %s5 = ssub.s32 1, %s3
  %s6 = scalar_select 0, %s5, %s3
  $region1: #{tpu_custom_call.1} parent=0
    #allocation3 [shape = 'u8[32768]{0}', space=vmem, size = 0x8000, scoped, tag = 'input window, operand 0']
    #allocation4 [shape = 's32[2]{0}', space=sflag, size = 0x8, scoped, tag = 'scoped memory for tpu_custom_call.1']
    #allocation5 [shape = 's32[2]{0}', space=sflag, size = 0x8, scoped, tag = 'scoped memory for tpu_custom_call.1']
    #allocation6 [shape = 'u8[917504]{0}', space=vmem, size = 0xe0000, scoped, tag = 'input window, operand 1, single buffered']
    #allocation7 [shape = 's32[1]{0}', space=sflag, size = 0x4, scoped, tag = 'scoped memory for tpu_custom_call.1']
    #allocation8 [shape = 'u8[32768]{0}', space=vmem, size = 0x8000, scoped, tag = 'output window, operand 0']
    %7 = vsyncpa [#allocation4], 0
    %s8 = scalar_lea.sflag [#allocation4], 1
    %9 = vsyncpa %s8, 0
    %10 = vsyncpa [#allocation7], 0
    %11 = vsyncpa [#allocation5], 0
    %s12 = scalar_lea.sflag [#allocation5], 1
    %13 = vsyncpa %s12, 0
    loop: start=0, step=1, limit=4
    $region2: #{tpu_custom_call.1} parent=1 // loop_pre_header
      _
    $region3: #{tpu_custom_call.1} parent=1 // loop_header
      %s15 = sphi 0, %s19
      %p16 = scmp.ge.s32.totalorder %s15, 4
      %s25 = sphi 0, %s27
      %s28 = sphi 0, %s25
      %s29 = sphi 0, %s28
      %s45 = sphi 0, %s29
      %s49 = sphi 0, %s49
      %s51 = sphi 0, %s49
      %s52 = sphi 0, %s51
      %s66 = sphi 0, %s52
      %s72 = sphi 0, %s74
      %s75 = sphi 0, %s72
      %s76 = sphi 0, %s75
      %s92 = sphi 0, %s76
    $region4: #{tpu_custom_call.1} parent=1 // loop_header_branch
      %18 = sbr.rel (%p16) target = $region8
    $region5: #{tpu_custom_call.1} parent=1 // loop_body
      %s20 = ssub.s32 %s15, 1
      %s21 = ssub.s32 %s15, 2
      %s22 = sadd.s32 %s15, 1
      %s23 = ssub.s32 %s15, %s22
      %p24 = scmp.eq.s32.totalorder %s23, 0
      %s26 = sadd.s32 %s25, 1
      %s27 = scalar_select %p24, %s25, %s26
      %p30 = pneg %p24
      %p31 = scmp.eq.s32.totalorder %s15, 1
      %p32 = por %p30, %p31
      %p33 = scmp.ne.s32.totalorder %s25, %s28
      %p34 = scmp.eq.s32.totalorder %s15, 0
      %p35 = por %p33, %p34
      %p36 = scmp.ne.s32.totalorder %s25, %s28
      %p37 = scmp.eq.s32.totalorder %s20, 1
      %p38 = por %p36, %p37
      %p39 = scmp.ne.s32.totalorder %s28, %s29
      %p40 = scmp.eq.s32.totalorder %s20, 0
      %p41 = por %p39, %p40
      %p42 = scmp.ne.s32.totalorder %s28, %s29
      %p43 = scmp.eq.s32.totalorder %s21, 1
      %p44 = por %p42, %p43
      %p46 = scmp.ne.s32.totalorder %s29, %s45
      %p47 = scmp.eq.s32.totalorder %s21, 0
      %p48 = por %p46, %p47
      %s50 = sadd.s32 %s49, 1
      %p53 = scmp.eq.s32.totalorder %s15, 1
      %p54 = scmp.ne.s32.totalorder %s49, %s51
      %p55 = scmp.eq.s32.totalorder %s15, 0
      %p56 = por %p54, %p55
      %p57 = scmp.ne.s32.totalorder %s49, %s51
      %p58 = scmp.eq.s32.totalorder %s20, 1
      %p59 = por %p57, %p58
      %p60 = scmp.ne.s32.totalorder %s51, %s52
      %p61 = scmp.eq.s32.totalorder %s20, 0
      %p62 = por %p60, %p61
      %p63 = scmp.ne.s32.totalorder %s51, %s52
      %p64 = scmp.eq.s32.totalorder %s21, 1
      %p65 = por %p63, %p64
      %p67 = scmp.ne.s32.totalorder %s52, %s66
      %p68 = scmp.eq.s32.totalorder %s21, 0
      %p69 = por %p67, %p68
      %s70 = ssub.s32 %s15, %s22
      %p71 = scmp.eq.s32.totalorder %s70, 0
      %s73 = sadd.s32 %s72, 1
      %s74 = scalar_select %p71, %s72, %s73
      %p77 = pneg %p71
      %p78 = scmp.eq.s32.totalorder %s15, 1
      %p79 = por %p77, %p78
      %p80 = scmp.ne.s32.totalorder %s72, %s75
      %p81 = scmp.eq.s32.totalorder %s15, 0
      %p82 = por %p80, %p81
      %p83 = scmp.ne.s32.totalorder %s72, %s75
      %p84 = scmp.eq.s32.totalorder %s20, 1
      %p85 = por %p83, %p84
      %p86 = scmp.ne.s32.totalorder %s75, %s76
      %p87 = scmp.eq.s32.totalorder %s20, 0
      %p88 = por %p86, %p87
      %p89 = scmp.ne.s32.totalorder %s75, %s76
      %p90 = scmp.eq.s32.totalorder %s21, 1
      %p91 = por %p89, %p90
      %p93 = scmp.ne.s32.totalorder %s76, %s92
      %p94 = scmp.eq.s32.totalorder %s21, 0
      %p95 = por %p93, %p94
      %p96 = scmp.le.s32.totalorder 1, %s15
      %p97 = scmp.lt.s32.totalorder %s15, 3
      %p98 = pnand %p96, %p97
      %p99 = pneg %p98
      // Predicated region
      $region9: #{tpu_custom_call.1} parent=5 // pred_check
        _
      $region10: #{tpu_custom_call.1} parent=5 // pred_check_branch
        %101 = sbr.rel (%p98) target = $region12
      $region11: #{tpu_custom_call.1} parent=5 // pred_region
        %s102 = ssub.s32 %s15, 1
        // Predicated region
        $region13: #{tpu_custom_call.1} parent=11 // pred_check
          %p103 = pneg %p62
        $region14: #{tpu_custom_call.1} parent=11 // pred_check_branch
          %105 = sbr.rel (%p103) target = $region16
        $region15: #{tpu_custom_call.1} parent=11 // pred_region
          %s107 = ssub.s32 28672, 28672
          %108 = vsyncadd [#allocation7], %s107
          %s109 = sshll.u32 [#allocation6], 4
          %s110 = int_to_ptr.vmem [resolvable:$true] %s109
          %115 = dma.hbm_to_vmem [thread:$0]  %s1, 28672, %s110, [#allocation7], 128, 128, 8
        $region16: #{tpu_custom_call.1} parent=11 // pred_fallthru
          _
      $region12: #{tpu_custom_call.1} parent=5 // pred_fallthru
        _
      %p116 = scmp.lt.s32.totalorder %s15, 2
      // Predicated region
      $region17: #{tpu_custom_call.1} parent=5 // pred_check
        %p117 = pneg %p116
      $region18: #{tpu_custom_call.1} parent=5 // pred_check_branch
        %119 = sbr.rel (%p117) target = $region20
      $region19: #{tpu_custom_call.1} parent=5 // pred_region
        // Predicated region
        $region21: #{tpu_custom_call.1} parent=19 // pred_check
          %p120 = pneg %p35
        $region22: #{tpu_custom_call.1} parent=19 // pred_check_branch
          %122 = sbr.rel (%p120) target = $region24
        $region23: #{tpu_custom_call.1} parent=19 // pred_region
          %s123 = sand.u32 %s25, 1
          %s124 = scalar_lea.sflag [#allocation4], %s123
          %s125 = sand.u32 %s25, 1
          %s126 = smul.addr %s125, 32
          %s127 = scalar_lea.vmem [#allocation3], %s126
          %s128 = smul.u32 2, %s15
          %s130 = ssub.s32 512, 512
          %131 = vsyncadd %s124, %s130
          %s132 = smul.addr %s128, 2
          %s133 = smul.addr %s132, 128
          %s134 = scalar_lea.hbm %s0, %s133
          %s135 = sshll.u32 %s127, 4
          %s136 = int_to_ptr.vmem [resolvable:$true] %s135
          %141 = dma.hbm_to_vmem [thread:$0]  %s134, 512, %s136, %s124, 128, 128, 8
        $region24: #{tpu_custom_call.1} parent=19 // pred_fallthru
          _
      $region20: #{tpu_custom_call.1} parent=5 // pred_fallthru
        _
      %p142 = scmp.le.s32.totalorder 1, %s15
      %p143 = scmp.lt.s32.totalorder %s15, 3
      %p144 = pnand %p142, %p143
      %p145 = pneg %p144
      // Predicated region
      $region25: #{tpu_custom_call.1} parent=5 // pred_check
        _
      $region26: #{tpu_custom_call.1} parent=5 // pred_check_branch
        %147 = sbr.rel (%p144) target = $region28
      $region27: #{tpu_custom_call.1} parent=5 // pred_region
        %s148 = ssub.s32 %s15, 1
        %s149 = sand.u32 %s28, 1
        %s150 = scalar_lea.sflag [#allocation4], %s149
        %s151 = sand.u32 %s28, 1
        %s152 = smul.addr %s151, 32
        %s153 = scalar_lea.vmem [#allocation3], %s152
        // Predicated region
        $region29: #{tpu_custom_call.1} parent=27 // pred_check
          %p154 = pneg %p41
        $region30: #{tpu_custom_call.1} parent=27 // pred_check_branch
          %156 = sbr.rel (%p154) target = $region32
        $region31: #{tpu_custom_call.1} parent=27 // pred_region
          %157 = dma.done %s150, 512
        $region32: #{tpu_custom_call.1} parent=27 // pred_fallthru
          _
        // Predicated region
        $region33: #{tpu_custom_call.1} parent=27 // pred_check
          %p158 = pneg %p62
        $region34: #{tpu_custom_call.1} parent=27 // pred_check_branch
          %160 = sbr.rel (%p158) target = $region36
        $region35: #{tpu_custom_call.1} parent=27 // pred_region
          %161 = dma.done [#allocation7], 28672
        $region36: #{tpu_custom_call.1} parent=27 // pred_fallthru
          _
        %s162 = sand.u32 %s28, 1
        %s163 = scalar_lea.sflag [#allocation4], %s162
        %s164 = sand.u32 %s28, 1
        %s165 = smul.addr %s164, 32
        %s166 = scalar_lea.vmem [#allocation3], %s165
        %p167 = pneg %p41
        %p168 = pneg %p38
        %p169 = pneg %p62
        %p170 = pneg %p59
        %p171 = pneg %p88
        %p172 = pneg %p85
        %s173 = sand.u32 %s75, 1
        %s174 = scalar_lea.sflag [#allocation5], %s173
        %s175 = sand.u32 %s75, 1
        %s176 = smul.addr %s175, 32
        %s177 = scalar_lea.vmem [#allocation8], %s176
        %s178 = smul.u32 2, %s20
        %s179 = smul.u32 2, %s20
        %180 = vst [vmem:[#allocation2] sm:$0x7] 0.0
        %181 = vst [vmem:[#allocation2 + $0x7] sm:$0x7] 0.0
        %s182 = scalar_lea.vmem [#allocation2], 16
        %183 = vst [vmem:[%s182] sm:$0x7] 0.0
        %184 = vst [vmem:[%s182 + $0x7] sm:$0x7] 0.0
        %v185 = vld [vmem:[%s153] sm:$0xf]
        %v186 = vld [vmem:[%s153 + $0x4] sm:$0xf]
        %v187 = vadd.f32 %v185, %v186
        %v188 = vmax.f32 %v185, %v186
        %v189 = vld [vmem:[%s153 + $0x8] sm:$0xf]
        %v190 = vadd.f32 %v187, %v189
        %v191 = vmax.f32 %v188, %v189
        %v192 = vld [vmem:[%s153 + $0xc] sm:$0xf]
        %v193 = vadd.f32 %v190, %v192
        %v194 = vmax.f32 %v191, %v192
        %v195 = vmul.f32 %v193, 0.25
        %196 = vst [vmem:[#allocation2 + $0x3] sm:$0xf] %v195
        %197 = vst [vmem:[%s182 + $0x3] sm:$0xf] %v194
        %v198 = vld [vmem:[#allocation2] sm:$0xf]
        %v199 = vld [vmem:[#allocation6] sm:$0xff]
        %v200 = vld [vmem:[#allocation6 + $0x8] sm:$0xff]
        %v201 = vld [vmem:[#allocation6 + $0x10] sm:$0xff]
        %v202 = vld [vmem:[#allocation6 + $0x18] sm:$0xff]
        %v203 = vld [vmem:[#allocation6 + $0x20] sm:$0xff]
        %v204 = vld [vmem:[#allocation6 + $0x28] sm:$0xff]
        %v205 = vld [vmem:[#allocation6 + $0x30] sm:$0xff]
        %v206 = vld [vmem:[#allocation6 + $0x38] sm:$0xff]
        %v207 = vld [vmem:[#allocation6 + $0x40] sm:$0xff]
        %v208 = vld [vmem:[#allocation6 + $0x48] sm:$0xff]
        %v209 = vld [vmem:[#allocation6 + $0x50] sm:$0xff]
        %v210 = vld [vmem:[#allocation6 + $0x58] sm:$0xff]
        %v211 = vld [vmem:[#allocation6 + $0x60] sm:$0xff]
        %v212 = vld [vmem:[#allocation6 + $0x68] sm:$0xff]
        %v213 = vld [vmem:[#allocation6 + $0x70] sm:$0xff]
        %v214 = vld [vmem:[#allocation6 + $0x78] sm:$0xff]
        %v215 = vld [vmem:[%s182] sm:$0xf]
        %s216 = scalar_lea.vmem [#allocation6], 896
        %v217 = vld [vmem:[%s216] sm:$0xff]
        %v218 = vld [vmem:[%s216 + $0x8] sm:$0xff]
        %v219 = vld [vmem:[%s216 + $0x10] sm:$0xff]
        %v220 = vld [vmem:[%s216 + $0x18] sm:$0xff]
        %v221 = vld [vmem:[%s216 + $0x20] sm:$0xff]
        %v222 = vld [vmem:[%s216 + $0x28] sm:$0xff]
        %v223 = vld [vmem:[%s216 + $0x30] sm:$0xff]
        %v224 = vld [vmem:[%s216 + $0x38] sm:$0xff]
        %v225 = vld [vmem:[%s216 + $0x40] sm:$0xff]
        %v226 = vld [vmem:[%s216 + $0x48] sm:$0xff]
        %v227 = vld [vmem:[%s216 + $0x50] sm:$0xff]
        %v228 = vld [vmem:[%s216 + $0x58] sm:$0xff]
        %v229 = vld [vmem:[%s216 + $0x60] sm:$0xff]
        %v230 = vld [vmem:[%s216 + $0x68] sm:$0xff]
        %v231 = vld [vmem:[%s216 + $0x70] sm:$0xff]
        %v232 = vld [vmem:[%s216 + $0x78] sm:$0xff]
        %v233 = vld [vmem:[#allocation2 + $0x1] sm:$0xf]
        %s234 = scalar_lea.vmem [#allocation6], 128
        %v235 = vld [vmem:[%s234] sm:$0xff]
        %v236 = vld [vmem:[%s234 + $0x8] sm:$0xff]
        %v237 = vld [vmem:[%s234 + $0x10] sm:$0xff]
        %v238 = vld [vmem:[%s234 + $0x18] sm:$0xff]
        %v239 = vld [vmem:[%s234 + $0x20] sm:$0xff]
        %v240 = vld [vmem:[%s234 + $0x28] sm:$0xff]
        %v241 = vld [vmem:[%s234 + $0x30] sm:$0xff]
        %v242 = vld [vmem:[%s234 + $0x38] sm:$0xff]
        %v243 = vld [vmem:[%s234 + $0x40] sm:$0xff]
        %v244 = vld [vmem:[%s234 + $0x48] sm:$0xff]
        %v245 = vld [vmem:[%s234 + $0x50] sm:$0xff]
        %v246 = vld [vmem:[%s234 + $0x58] sm:$0xff]
        %v247 = vld [vmem:[%s234 + $0x60] sm:$0xff]
        %v248 = vld [vmem:[%s234 + $0x68] sm:$0xff]
        %v249 = vld [vmem:[%s234 + $0x70] sm:$0xff]
        %v250 = vld [vmem:[%s234 + $0x78] sm:$0xff]
        %251 = vmatprep.subr.mxu0 0.0
        %252 = vmatpush1.msra.mxu0 %v235
        %253 = vmatprep.subr.mxu0 0.0
        %254 = vmatpush1.msra.mxu0 %v236
        %255 = vmatprep.subr.mxu0 0.0
        %256 = vmatpush1.msra.mxu0 %v237
        %257 = vmatprep.subr.mxu0 0.0
        %258 = vmatpush1.msra.mxu0 %v238
        %259 = vmatprep.subr.mxu0 0.0
        %260 = vmatpush1.msra.mxu0 %v239
        %261 = vmatprep.subr.mxu0 0.0
        %262 = vmatpush1.msra.mxu0 %v240
        %263 = vmatprep.subr.mxu0 0.0
        %264 = vmatpush1.msra.mxu0 %v241
        %265 = vmatprep.subr.mxu0 0.0
        %266 = vmatpush1.msra.mxu0 %v242
        %267 = vmatprep.subr.mxu0 0.0
        %268 = vmatpush1.msra.mxu0 %v243
        %269 = vmatprep.subr.mxu0 0.0
        %270 = vmatpush1.msra.mxu0 %v244
        %271 = vmatprep.subr.mxu0 0.0
        %272 = vmatpush1.msra.mxu0 %v245
        %273 = vmatprep.subr.mxu0 0.0
        %274 = vmatpush1.msra.mxu0 %v246
        %275 = vmatprep.subr.mxu0 0.0
        %276 = vmatpush1.msra.mxu0 %v247
        %277 = vmatprep.subr.mxu0 0.0
        %278 = vmatpush1.msra.mxu0 %v248
        %279 = vmatprep.subr.mxu0 0.0
        %280 = vmatpush1.msra.mxu0 %v249
        %281 = vmatprep.subr.mxu0 0.0
        %282 = vmatpush1.msra.mxu0 %v250
        %283 = vmatprep.subr.mxu0 0.0
        %284 = vmatpush1.msra.mxu0 0.0
        %285 = vmatprep.subr.mxu0 0.0
        %286 = vmatpush1.msra.mxu0 0.0
        %287 = vmatprep.subr.mxu0 0.0
        %288 = vmatpush1.msra.mxu0 0.0
        %289 = vmatprep.subr.mxu0 0.0
        %290 = vmatpush1.msra.mxu0 0.0
        %291 = vmatprep.subr.mxu0 0.0
        %292 = vmatpush1.msra.mxu0 0.0
        %293 = vmatprep.subr.mxu0 0.0
        %294 = vmatpush1.msra.mxu0 0.0
        %295 = vmatprep.subr.mxu0 0.0
        %296 = vmatpush1.msra.mxu0 0.0
        %297 = vmatprep.subr.mxu0 0.0
        %298 = vmatpush1.msra.mxu0 0.0
        %299 = vmatprep.subr.mxu0 0.0
        %300 = vmatpush1.msra.mxu0 0.0
        %301 = vmatprep.subr.mxu0 0.0
        %302 = vmatpush1.msra.mxu0 0.0
        %303 = vmatprep.subr.mxu0 0.0
        %304 = vmatpush1.msra.mxu0 0.0
        %305 = vmatprep.subr.mxu0 0.0
        %306 = vmatpush1.msra.mxu0 0.0
        %307 = vmatprep.subr.mxu0 0.0
        %308 = vmatpush1.msra.mxu0 0.0
        %309 = vmatprep.subr.mxu0 0.0
        %310 = vmatpush1.msra.mxu0 0.0
        %311 = vmatprep.subr.mxu0 0.0
        %312 = vmatpush1.msra.mxu0 0.0
        %313 = vmatprep.subr.mxu0 0.0
        %314 = vmatpush1.msra.mxu0 0.0
        %315 = vmatprep.mubr.f32.mxu0 0.0
        %316 = vmatmul.mubr.f32.gmra.mrb[0].mxu0 %v233
        %v317 = vpop.f32.mrb[0].mxu0
        %v318 = vadd.f32 0.0, %v317
        %v319 = vpop.f32.mrb[0].mxu0
        %320 = vdwg.mxu0
        %321 = vmatprep.subr.mxu0 0.0
        %322 = vmatpush1.msra.mxu0 %v199
        %323 = vmatprep.subr.mxu0 0.0
        %324 = vmatpush1.msra.mxu0 %v200
        %325 = vmatprep.subr.mxu0 0.0
        %326 = vmatpush1.msra.mxu0 %v201
        %327 = vmatprep.subr.mxu0 0.0
        %328 = vmatpush1.msra.mxu0 %v202
        %329 = vmatprep.subr.mxu0 0.0
        %330 = vmatpush1.msra.mxu0 %v203
        %331 = vmatprep.subr.mxu0 0.0
        %332 = vmatpush1.msra.mxu0 %v204
        %333 = vmatprep.subr.mxu0 0.0
        %334 = vmatpush1.msra.mxu0 %v205
        %335 = vmatprep.subr.mxu0 0.0
        %336 = vmatpush1.msra.mxu0 %v206
        %337 = vmatprep.subr.mxu0 0.0
        %338 = vmatpush1.msra.mxu0 %v207
        %339 = vmatprep.subr.mxu0 0.0
        %340 = vmatpush1.msra.mxu0 %v208
        %341 = vmatprep.subr.mxu0 0.0
        %342 = vmatpush1.msra.mxu0 %v209
        %343 = vmatprep.subr.mxu0 0.0
        %344 = vmatpush1.msra.mxu0 %v210
        %345 = vmatprep.subr.mxu0 0.0
        %346 = vmatpush1.msra.mxu0 %v211
        %347 = vmatprep.subr.mxu0 0.0
        %348 = vmatpush1.msra.mxu0 %v212
        %349 = vmatprep.subr.mxu0 0.0
        %350 = vmatpush1.msra.mxu0 %v213
        %351 = vmatprep.subr.mxu0 0.0
        %352 = vmatpush1.msra.mxu0 %v214
        %353 = vmatprep.subr.mxu0 0.0
        %354 = vmatpush1.msra.mxu0 0.0
        %355 = vmatprep.subr.mxu0 0.0
        %356 = vmatpush1.msra.mxu0 0.0
        %357 = vmatprep.subr.mxu0 0.0
        %358 = vmatpush1.msra.mxu0 0.0
        %359 = vmatprep.subr.mxu0 0.0
        %360 = vmatpush1.msra.mxu0 0.0
        %361 = vmatprep.subr.mxu0 0.0
        %362 = vmatpush1.msra.mxu0 0.0
        %363 = vmatprep.subr.mxu0 0.0
        %364 = vmatpush1.msra.mxu0 0.0
        %365 = vmatprep.subr.mxu0 0.0
        %366 = vmatpush1.msra.mxu0 0.0
        %367 = vmatprep.subr.mxu0 0.0
        %368 = vmatpush1.msra.mxu0 0.0
        %369 = vmatprep.subr.mxu0 0.0
        %370 = vmatpush1.msra.mxu0 0.0
        %371 = vmatprep.subr.mxu0 0.0
        %372 = vmatpush1.msra.mxu0 0.0
        %373 = vmatprep.subr.mxu0 0.0
        %374 = vmatpush1.msra.mxu0 0.0
        %375 = vmatprep.subr.mxu0 0.0
        %376 = vmatpush1.msra.mxu0 0.0
        %377 = vmatprep.subr.mxu0 0.0
        %378 = vmatpush1.msra.mxu0 0.0
        %379 = vmatprep.subr.mxu0 0.0
        %380 = vmatpush1.msra.mxu0 0.0
        %381 = vmatprep.subr.mxu0 0.0
        %382 = vmatpush1.msra.mxu0 0.0
        %383 = vmatprep.subr.mxu0 0.0
        %384 = vmatpush1.msra.mxu0 0.0
        %385 = vmatprep.mubr.f32.mxu0 0.0
        %386 = vmatmul.mubr.f32.gmra.mrb[0].mxu0 %v198
        %v387 = vpop.f32.mrb[0].mxu0
        %v388 = vadd.f32 %v318, %v387
        %v389 = vpop.f32.mrb[0].mxu0
        %390 = vdwg.mxu0
        %v391 = vld [vmem:[%s182 + $0x1] sm:$0xf]
        %s392 = scalar_lea.vmem [#allocation6], 1024
        %v393 = vld [vmem:[%s392] sm:$0xff]
        %v394 = vld [vmem:[%s392 + $0x8] sm:$0xff]
        %v395 = vld [vmem:[%s392 + $0x10] sm:$0xff]
        %v396 = vld [vmem:[%s392 + $0x18] sm:$0xff]
        %v397 = vld [vmem:[%s392 + $0x20] sm:$0xff]
        %v398 = vld [vmem:[%s392 + $0x28] sm:$0xff]
        %v399 = vld [vmem:[%s392 + $0x30] sm:$0xff]
        %v400 = vld [vmem:[%s392 + $0x38] sm:$0xff]
        %v401 = vld [vmem:[%s392 + $0x40] sm:$0xff]
        %v402 = vld [vmem:[%s392 + $0x48] sm:$0xff]
        %v403 = vld [vmem:[%s392 + $0x50] sm:$0xff]
        %v404 = vld [vmem:[%s392 + $0x58] sm:$0xff]
        %v405 = vld [vmem:[%s392 + $0x60] sm:$0xff]
        %v406 = vld [vmem:[%s392 + $0x68] sm:$0xff]
        %v407 = vld [vmem:[%s392 + $0x70] sm:$0xff]
        %v408 = vld [vmem:[%s392 + $0x78] sm:$0xff]
        %409 = vmatprep.subr.mxu0 0.0
        %410 = vmatpush1.msra.mxu0 %v393
        %411 = vmatprep.subr.mxu0 0.0
        %412 = vmatpush1.msra.mxu0 %v394
        %413 = vmatprep.subr.mxu0 0.0
        %414 = vmatpush1.msra.mxu0 %v395
        %415 = vmatprep.subr.mxu0 0.0
        %416 = vmatpush1.msra.mxu0 %v396
        %417 = vmatprep.subr.mxu0 0.0
        %418 = vmatpush1.msra.mxu0 %v397
        %419 = vmatprep.subr.mxu0 0.0
        %420 = vmatpush1.msra.mxu0 %v398
        %421 = vmatprep.subr.mxu0 0.0
        %422 = vmatpush1.msra.mxu0 %v399
        %423 = vmatprep.subr.mxu0 0.0
        %424 = vmatpush1.msra.mxu0 %v400
        %425 = vmatprep.subr.mxu0 0.0
        %426 = vmatpush1.msra.mxu0 %v401
        %427 = vmatprep.subr.mxu0 0.0
        %428 = vmatpush1.msra.mxu0 %v402
        %429 = vmatprep.subr.mxu0 0.0
        %430 = vmatpush1.msra.mxu0 %v403
        %431 = vmatprep.subr.mxu0 0.0
        %432 = vmatpush1.msra.mxu0 %v404
        %433 = vmatprep.subr.mxu0 0.0
        %434 = vmatpush1.msra.mxu0 %v405
        %435 = vmatprep.subr.mxu0 0.0
        %436 = vmatpush1.msra.mxu0 %v406
        %437 = vmatprep.subr.mxu0 0.0
        %438 = vmatpush1.msra.mxu0 %v407
        %439 = vmatprep.subr.mxu0 0.0
        %440 = vmatpush1.msra.mxu0 %v408
        %441 = vmatprep.subr.mxu0 0.0
        %442 = vmatpush1.msra.mxu0 0.0
        %443 = vmatprep.subr.mxu0 0.0
        %444 = vmatpush1.msra.mxu0 0.0
        %445 = vmatprep.subr.mxu0 0.0
        %446 = vmatpush1.msra.mxu0 0.0
        %447 = vmatprep.subr.mxu0 0.0
        %448 = vmatpush1.msra.mxu0 0.0
        %449 = vmatprep.subr.mxu0 0.0
        %450 = vmatpush1.msra.mxu0 0.0
        %451 = vmatprep.subr.mxu0 0.0
        %452 = vmatpush1.msra.mxu0 0.0
        %453 = vmatprep.subr.mxu0 0.0
        %454 = vmatpush1.msra.mxu0 0.0
        %455 = vmatprep.subr.mxu0 0.0
        %456 = vmatpush1.msra.mxu0 0.0
        %457 = vmatprep.subr.mxu0 0.0
        %458 = vmatpush1.msra.mxu0 0.0
        %459 = vmatprep.subr.mxu0 0.0
        %460 = vmatpush1.msra.mxu0 0.0
        %461 = vmatprep.subr.mxu0 0.0
        %462 = vmatpush1.msra.mxu0 0.0
        %463 = vmatprep.subr.mxu0 0.0
        %464 = vmatpush1.msra.mxu0 0.0
        %465 = vmatprep.subr.mxu0 0.0
        %466 = vmatpush1.msra.mxu0 0.0
        %467 = vmatprep.subr.mxu0 0.0
        %468 = vmatpush1.msra.mxu0 0.0
        %469 = vmatprep.subr.mxu0 0.0
        %470 = vmatpush1.msra.mxu0 0.0
        %471 = vmatprep.subr.mxu0 0.0
        %472 = vmatpush1.msra.mxu0 0.0
        %473 = vmatprep.mubr.f32.mxu0 0.0
        %474 = vmatmul.mubr.f32.gmra.mrb[0].mxu0 %v391
        %v475 = vpop.f32.mrb[0].mxu0
        %v476 = vadd.f32 0.0, %v475
        %v477 = vpop.f32.mrb[0].mxu0
        %478 = vdwg.mxu0
        %479 = vmatprep.subr.mxu0 0.0
        %480 = vmatpush1.msra.mxu0 %v217
        %481 = vmatprep.subr.mxu0 0.0
        %482 = vmatpush1.msra.mxu0 %v218
        %483 = vmatprep.subr.mxu0 0.0
        %484 = vmatpush1.msra.mxu0 %v219
        %485 = vmatprep.subr.mxu0 0.0
        %486 = vmatpush1.msra.mxu0 %v220
        %487 = vmatprep.subr.mxu0 0.0
        %488 = vmatpush1.msra.mxu0 %v221
        %489 = vmatprep.subr.mxu0 0.0
        %490 = vmatpush1.msra.mxu0 %v222
        %491 = vmatprep.subr.mxu0 0.0
        %492 = vmatpush1.msra.mxu0 %v223
        %493 = vmatprep.subr.mxu0 0.0
        %494 = vmatpush1.msra.mxu0 %v224
        %495 = vmatprep.subr.mxu0 0.0
        %496 = vmatpush1.msra.mxu0 %v225
        %497 = vmatprep.subr.mxu0 0.0
        %498 = vmatpush1.msra.mxu0 %v226
        %499 = vmatprep.subr.mxu0 0.0
        %500 = vmatpush1.msra.mxu0 %v227
        %501 = vmatprep.subr.mxu0 0.0
        %502 = vmatpush1.msra.mxu0 %v228
        %503 = vmatprep.subr.mxu0 0.0
        %504 = vmatpush1.msra.mxu0 %v229
        %505 = vmatprep.subr.mxu0 0.0
        %506 = vmatpush1.msra.mxu0 %v230
        %507 = vmatprep.subr.mxu0 0.0
        %508 = vmatpush1.msra.mxu0 %v231
        %509 = vmatprep.subr.mxu0 0.0
        %510 = vmatpush1.msra.mxu0 %v232
        %511 = vmatprep.subr.mxu0 0.0
        %512 = vmatpush1.msra.mxu0 0.0
        %513 = vmatprep.subr.mxu0 0.0
        %514 = vmatpush1.msra.mxu0 0.0
        %515 = vmatprep.subr.mxu0 0.0
        %516 = vmatpush1.msra.mxu0 0.0
        %517 = vmatprep.subr.mxu0 0.0
        %518 = vmatpush1.msra.mxu0 0.0
        %519 = vmatprep.subr.mxu0 0.0
        %520 = vmatpush1.msra.mxu0 0.0
        %521 = vmatprep.subr.mxu0 0.0
        %522 = vmatpush1.msra.mxu0 0.0
        %523 = vmatprep.subr.mxu0 0.0
        %524 = vmatpush1.msra.mxu0 0.0
        %525 = vmatprep.subr.mxu0 0.0
        %526 = vmatpush1.msra.mxu0 0.0
        %527 = vmatprep.subr.mxu0 0.0
        %528 = vmatpush1.msra.mxu0 0.0
        %529 = vmatprep.subr.mxu0 0.0
        %530 = vmatpush1.msra.mxu0 0.0
        %531 = vmatprep.subr.mxu0 0.0
        %532 = vmatpush1.msra.mxu0 0.0
        %533 = vmatprep.subr.mxu0 0.0
        %534 = vmatpush1.msra.mxu0 0.0
        %535 = vmatprep.subr.mxu0 0.0
        %536 = vmatpush1.msra.mxu0 0.0
        %537 = vmatprep.subr.mxu0 0.0
        %538 = vmatpush1.msra.mxu0 0.0
        %539 = vmatprep.subr.mxu0 0.0
        %540 = vmatpush1.msra.mxu0 0.0
        %541 = vmatprep.subr.mxu0 0.0
        %542 = vmatpush1.msra.mxu0 0.0
        %543 = vmatprep.mubr.f32.mxu0 0.0
        %544 = vmatmul.mubr.f32.gmra.mrb[0].mxu0 %v215
        %v545 = vpop.f32.mrb[0].mxu0
        %v546 = vadd.f32 %v476, %v545
        %v547 = vpop.f32.mrb[0].mxu0
        %548 = vdwg.mxu0
        %v549 = vld [vmem:[#allocation2 + $0x2] sm:$0xf]
        %s550 = scalar_lea.vmem [#allocation6], 256
        %v551 = vld [vmem:[%s550] sm:$0xff]
        %v552 = vld [vmem:[%s550 + $0x8] sm:$0xff]
        %v553 = vld [vmem:[%s550 + $0x10] sm:$0xff]
        %v554 = vld [vmem:[%s550 + $0x18] sm:$0xff]
        %v555 = vld [vmem:[%s550 + $0x20] sm:$0xff]
        %v556 = vld [vmem:[%s550 + $0x28] sm:$0xff]
        %v557 = vld [vmem:[%s550 + $0x30] sm:$0xff]
        %v558 = vld [vmem:[%s550 + $0x38] sm:$0xff]
        %v559 = vld [vmem:[%s550 + $0x40] sm:$0xff]
        %v560 = vld [vmem:[%s550 + $0x48] sm:$0xff]
        %v561 = vld [vmem:[%s550 + $0x50] sm:$0xff]
        %v562 = vld [vmem:[%s550 + $0x58] sm:$0xff]
        %v563 = vld [vmem:[%s550 + $0x60] sm:$0xff]
        %v564 = vld [vmem:[%s550 + $0x68] sm:$0xff]
        %v565 = vld [vmem:[%s550 + $0x70] sm:$0xff]
        %v566 = vld [vmem:[%s550 + $0x78] sm:$0xff]
        %567 = vmatprep.subr.mxu0 0.0
        %568 = vmatpush1.msra.mxu0 %v551
        %569 = vmatprep.subr.mxu0 0.0
        %570 = vmatpush1.msra.mxu0 %v552
        %571 = vmatprep.subr.mxu0 0.0
        %572 = vmatpush1.msra.mxu0 %v553
        %573 = vmatprep.subr.mxu0 0.0
        %574 = vmatpush1.msra.mxu0 %v554
        %575 = vmatprep.subr.mxu0 0.0
        %576 = vmatpush1.msra.mxu0 %v555
        %577 = vmatprep.subr.mxu0 0.0
        %578 = vmatpush1.msra.mxu0 %v556
        %579 = vmatprep.subr.mxu0 0.0
        %580 = vmatpush1.msra.mxu0 %v557
        %581 = vmatprep.subr.mxu0 0.0
        %582 = vmatpush1.msra.mxu0 %v558
        %583 = vmatprep.subr.mxu0 0.0
        %584 = vmatpush1.msra.mxu0 %v559
        %585 = vmatprep.subr.mxu0 0.0
        %586 = vmatpush1.msra.mxu0 %v560
        %587 = vmatprep.subr.mxu0 0.0
        %588 = vmatpush1.msra.mxu0 %v561
        %589 = vmatprep.subr.mxu0 0.0
        %590 = vmatpush1.msra.mxu0 %v562
        %591 = vmatprep.subr.mxu0 0.0
        %592 = vmatpush1.msra.mxu0 %v563
        %593 = vmatprep.subr.mxu0 0.0
        %594 = vmatpush1.msra.mxu0 %v564
        %595 = vmatprep.subr.mxu0 0.0
        %596 = vmatpush1.msra.mxu0 %v565
        %597 = vmatprep.subr.mxu0 0.0
        %598 = vmatpush1.msra.mxu0 %v566
        %599 = vmatprep.subr.mxu0 0.0
        %600 = vmatpush1.msra.mxu0 0.0
        %601 = vmatprep.subr.mxu0 0.0
        %602 = vmatpush1.msra.mxu0 0.0
        %603 = vmatprep.subr.mxu0 0.0
        %604 = vmatpush1.msra.mxu0 0.0
        %605 = vmatprep.subr.mxu0 0.0
        %606 = vmatpush1.msra.mxu0 0.0
        %607 = vmatprep.subr.mxu0 0.0
        %608 = vmatpush1.msra.mxu0 0.0
        %609 = vmatprep.subr.mxu0 0.0
        %610 = vmatpush1.msra.mxu0 0.0
        %611 = vmatprep.subr.mxu0 0.0
        %612 = vmatpush1.msra.mxu0 0.0
        %613 = vmatprep.subr.mxu0 0.0
        %614 = vmatpush1.msra.mxu0 0.0
        %615 = vmatprep.subr.mxu0 0.0
        %616 = vmatpush1.msra.mxu0 0.0
        %617 = vmatprep.subr.mxu0 0.0
        %618 = vmatpush1.msra.mxu0 0.0
        %619 = vmatprep.subr.mxu0 0.0
        %620 = vmatpush1.msra.mxu0 0.0
        %621 = vmatprep.subr.mxu0 0.0
        %622 = vmatpush1.msra.mxu0 0.0
        %623 = vmatprep.subr.mxu0 0.0
        %624 = vmatpush1.msra.mxu0 0.0
        %625 = vmatprep.subr.mxu0 0.0
        %626 = vmatpush1.msra.mxu0 0.0
        %627 = vmatprep.subr.mxu0 0.0
        %628 = vmatpush1.msra.mxu0 0.0
        %629 = vmatprep.subr.mxu0 0.0
        %630 = vmatpush1.msra.mxu0 0.0
        %631 = vmatprep.mubr.f32.mxu0 0.0
        %632 = vmatmul.mubr.f32.gmra.mrb[0].mxu0 %v549
        %v633 = vpop.f32.mrb[0].mxu0
        %v634 = vadd.f32 0.0, %v633
        %v635 = vpop.f32.mrb[0].mxu0
        %636 = vdwg.mxu0
        %v637 = vadd.f32 %v388, %v634
        %v638 = vld [vmem:[%s182 + $0x2] sm:$0xf]
        %s639 = scalar_lea.vmem [#allocation6], 1152
        %v640 = vld [vmem:[%s639] sm:$0xff]
        %v641 = vld [vmem:[%s639 + $0x8] sm:$0xff]
        %v642 = vld [vmem:[%s639 + $0x10] sm:$0xff]
        %v643 = vld [vmem:[%s639 + $0x18] sm:$0xff]
        %v644 = vld [vmem:[%s639 + $0x20] sm:$0xff]
        %v645 = vld [vmem:[%s639 + $0x28] sm:$0xff]
        %v646 = vld [vmem:[%s639 + $0x30] sm:$0xff]
        %v647 = vld [vmem:[%s639 + $0x38] sm:$0xff]
        %v648 = vld [vmem:[%s639 + $0x40] sm:$0xff]
        %v649 = vld [vmem:[%s639 + $0x48] sm:$0xff]
        %v650 = vld [vmem:[%s639 + $0x50] sm:$0xff]
        %v651 = vld [vmem:[%s639 + $0x58] sm:$0xff]
        %v652 = vld [vmem:[%s639 + $0x60] sm:$0xff]
        %v653 = vld [vmem:[%s639 + $0x68] sm:$0xff]
        %v654 = vld [vmem:[%s639 + $0x70] sm:$0xff]
        %v655 = vld [vmem:[%s639 + $0x78] sm:$0xff]
        %656 = vmatprep.subr.mxu0 0.0
        %657 = vmatpush1.msra.mxu0 %v640
        %658 = vmatprep.subr.mxu0 0.0
        %659 = vmatpush1.msra.mxu0 %v641
        %660 = vmatprep.subr.mxu0 0.0
        %661 = vmatpush1.msra.mxu0 %v642
        %662 = vmatprep.subr.mxu0 0.0
        %663 = vmatpush1.msra.mxu0 %v643
        %664 = vmatprep.subr.mxu0 0.0
        %665 = vmatpush1.msra.mxu0 %v644
        %666 = vmatprep.subr.mxu0 0.0
        %667 = vmatpush1.msra.mxu0 %v645
        %668 = vmatprep.subr.mxu0 0.0
        %669 = vmatpush1.msra.mxu0 %v646
        %670 = vmatprep.subr.mxu0 0.0
        %671 = vmatpush1.msra.mxu0 %v647
        %672 = vmatprep.subr.mxu0 0.0
        %673 = vmatpush1.msra.mxu0 %v648
        %674 = vmatprep.subr.mxu0 0.0
        %675 = vmatpush1.msra.mxu0 %v649
        %676 = vmatprep.subr.mxu0 0.0
        %677 = vmatpush1.msra.mxu0 %v650
        %678 = vmatprep.subr.mxu0 0.0
        %679 = vmatpush1.msra.mxu0 %v651
        %680 = vmatprep.subr.mxu0 0.0
        %681 = vmatpush1.msra.mxu0 %v652
        %682 = vmatprep.subr.mxu0 0.0
        %683 = vmatpush1.msra.mxu0 %v653
        %684 = vmatprep.subr.mxu0 0.0
        %685 = vmatpush1.msra.mxu0 %v654
        %686 = vmatprep.subr.mxu0 0.0
        %687 = vmatpush1.msra.mxu0 %v655
        %688 = vmatprep.subr.mxu0 0.0
        %689 = vmatpush1.msra.mxu0 0.0
        %690 = vmatprep.subr.mxu0 0.0
        %691 = vmatpush1.msra.mxu0 0.0
        %692 = vmatprep.subr.mxu0 0.0
        %693 = vmatpush1.msra.mxu0 0.0
        %694 = vmatprep.subr.mxu0 0.0
        %695 = vmatpush1.msra.mxu0 0.0
        %696 = vmatprep.subr.mxu0 0.0
        %697 = vmatpush1.msra.mxu0 0.0
        %698 = vmatprep.subr.mxu0 0.0
        %699 = vmatpush1.msra.mxu0 0.0
        %700 = vmatprep.subr.mxu0 0.0
        %701 = vmatpush1.msra.mxu0 0.0
        %702 = vmatprep.subr.mxu0 0.0
        %703 = vmatpush1.msra.mxu0 0.0
        %704 = vmatprep.subr.mxu0 0.0
        %705 = vmatpush1.msra.mxu0 0.0
        %706 = vmatprep.subr.mxu0 0.0
        %707 = vmatpush1.msra.mxu0 0.0
        %708 = vmatprep.subr.mxu0 0.0
        %709 = vmatpush1.msra.mxu0 0.0
        %710 = vmatprep.subr.mxu0 0.0
        %711 = vmatpush1.msra.mxu0 0.0
        %712 = vmatprep.subr.mxu0 0.0
        %713 = vmatpush1.msra.mxu0 0.0
        %714 = vmatprep.subr.mxu0 0.0
        %715 = vmatpush1.msra.mxu0 0.0
        %716 = vmatprep.subr.mxu0 0.0
        %717 = vmatpush1.msra.mxu0 0.0
        %718 = vmatprep.subr.mxu0 0.0
        %719 = vmatpush1.msra.mxu0 0.0
        %720 = vmatprep.mubr.f32.mxu0 0.0
        %721 = vmatmul.mubr.f32.gmra.mrb[0].mxu0 %v638
        %v722 = vpop.f32.mrb[0].mxu0
        %v723 = vadd.f32 0.0, %v722
        %v724 = vpop.f32.mrb[0].mxu0
        %725 = vdwg.mxu0
        %v726 = vadd.f32 %v546, %v723
        %v727 = vld [vmem:[#allocation2 + $0x3] sm:$0xf]
        %s728 = scalar_lea.vmem [#allocation6], 384
        %v729 = vld [vmem:[%s728] sm:$0xff]
        %v730 = vld [vmem:[%s728 + $0x8] sm:$0xff]
        %v731 = vld [vmem:[%s728 + $0x10] sm:$0xff]
        %v732 = vld [vmem:[%s728 + $0x18] sm:$0xff]
        %v733 = vld [vmem:[%s728 + $0x20] sm:$0xff]
        %v734 = vld [vmem:[%s728 + $0x28] sm:$0xff]
        %v735 = vld [vmem:[%s728 + $0x30] sm:$0xff]
        %v736 = vld [vmem:[%s728 + $0x38] sm:$0xff]
        %v737 = vld [vmem:[%s728 + $0x40] sm:$0xff]
        %v738 = vld [vmem:[%s728 + $0x48] sm:$0xff]
        %v739 = vld [vmem:[%s728 + $0x50] sm:$0xff]
        %v740 = vld [vmem:[%s728 + $0x58] sm:$0xff]
        %v741 = vld [vmem:[%s728 + $0x60] sm:$0xff]
        %v742 = vld [vmem:[%s728 + $0x68] sm:$0xff]
        %v743 = vld [vmem:[%s728 + $0x70] sm:$0xff]
        %v744 = vld [vmem:[%s728 + $0x78] sm:$0xff]
        %745 = vmatprep.subr.mxu0 0.0
        %746 = vmatpush1.msra.mxu0 %v729
        %747 = vmatprep.subr.mxu0 0.0
        %748 = vmatpush1.msra.mxu0 %v730
        %749 = vmatprep.subr.mxu0 0.0
        %750 = vmatpush1.msra.mxu0 %v731
        %751 = vmatprep.subr.mxu0 0.0
        %752 = vmatpush1.msra.mxu0 %v732
        %753 = vmatprep.subr.mxu0 0.0
        %754 = vmatpush1.msra.mxu0 %v733
        %755 = vmatprep.subr.mxu0 0.0
        %756 = vmatpush1.msra.mxu0 %v734
        %757 = vmatprep.subr.mxu0 0.0
        %758 = vmatpush1.msra.mxu0 %v735
        %759 = vmatprep.subr.mxu0 0.0
        %760 = vmatpush1.msra.mxu0 %v736
        %761 = vmatprep.subr.mxu0 0.0
        %762 = vmatpush1.msra.mxu0 %v737
        %763 = vmatprep.subr.mxu0 0.0
        %764 = vmatpush1.msra.mxu0 %v738
        %765 = vmatprep.subr.mxu0 0.0
        %766 = vmatpush1.msra.mxu0 %v739
        %767 = vmatprep.subr.mxu0 0.0
        %768 = vmatpush1.msra.mxu0 %v740
        %769 = vmatprep.subr.mxu0 0.0
        %770 = vmatpush1.msra.mxu0 %v741
        %771 = vmatprep.subr.mxu0 0.0
        %772 = vmatpush1.msra.mxu0 %v742
        %773 = vmatprep.subr.mxu0 0.0
        %774 = vmatpush1.msra.mxu0 %v743
        %775 = vmatprep.subr.mxu0 0.0
        %776 = vmatpush1.msra.mxu0 %v744
        %777 = vmatprep.subr.mxu0 0.0
        %778 = vmatpush1.msra.mxu0 0.0
        %779 = vmatprep.subr.mxu0 0.0
        %780 = vmatpush1.msra.mxu0 0.0
        %781 = vmatprep.subr.mxu0 0.0
        %782 = vmatpush1.msra.mxu0 0.0
        %783 = vmatprep.subr.mxu0 0.0
        %784 = vmatpush1.msra.mxu0 0.0
        %785 = vmatprep.subr.mxu0 0.0
        %786 = vmatpush1.msra.mxu0 0.0
        %787 = vmatprep.subr.mxu0 0.0
        %788 = vmatpush1.msra.mxu0 0.0
        %789 = vmatprep.subr.mxu0 0.0
        %790 = vmatpush1.msra.mxu0 0.0
        %791 = vmatprep.subr.mxu0 0.0
        %792 = vmatpush1.msra.mxu0 0.0
        %793 = vmatprep.subr.mxu0 0.0
        %794 = vmatpush1.msra.mxu0 0.0
        %795 = vmatprep.subr.mxu0 0.0
        %796 = vmatpush1.msra.mxu0 0.0
        %797 = vmatprep.subr.mxu0 0.0
        %798 = vmatpush1.msra.mxu0 0.0
        %799 = vmatprep.subr.mxu0 0.0
        %800 = vmatpush1.msra.mxu0 0.0
        %801 = vmatprep.subr.mxu0 0.0
        %802 = vmatpush1.msra.mxu0 0.0
        %803 = vmatprep.subr.mxu0 0.0
        %804 = vmatpush1.msra.mxu0 0.0
        %805 = vmatprep.subr.mxu0 0.0
        %806 = vmatpush1.msra.mxu0 0.0
        %807 = vmatprep.subr.mxu0 0.0
        %808 = vmatpush1.msra.mxu0 0.0
        %809 = vmatprep.mubr.f32.mxu0 0.0
        %810 = vmatmul.mubr.f32.gmra.mrb[0].mxu0 %v727
        %v811 = vpop.f32.mrb[0].mxu0
        %v812 = vadd.f32 0.0, %v811
        %v813 = vpop.f32.mrb[0].mxu0
        %814 = vdwg.mxu0
        %v815 = vadd.f32 %v637, %v812
        %v816 = vld [vmem:[%s182 + $0x3] sm:$0xf]
        %s817 = scalar_lea.vmem [#allocation6], 1280
        %v818 = vld [vmem:[%s817] sm:$0xff]
        %v819 = vld [vmem:[%s817 + $0x8] sm:$0xff]
        %v820 = vld [vmem:[%s817 + $0x10] sm:$0xff]
        %v821 = vld [vmem:[%s817 + $0x18] sm:$0xff]
        %v822 = vld [vmem:[%s817 + $0x20] sm:$0xff]
        %v823 = vld [vmem:[%s817 + $0x28] sm:$0xff]
        %v824 = vld [vmem:[%s817 + $0x30] sm:$0xff]
        %v825 = vld [vmem:[%s817 + $0x38] sm:$0xff]
        %v826 = vld [vmem:[%s817 + $0x40] sm:$0xff]
        %v827 = vld [vmem:[%s817 + $0x48] sm:$0xff]
        %v828 = vld [vmem:[%s817 + $0x50] sm:$0xff]
        %v829 = vld [vmem:[%s817 + $0x58] sm:$0xff]
        %v830 = vld [vmem:[%s817 + $0x60] sm:$0xff]
        %v831 = vld [vmem:[%s817 + $0x68] sm:$0xff]
        %v832 = vld [vmem:[%s817 + $0x70] sm:$0xff]
        %v833 = vld [vmem:[%s817 + $0x78] sm:$0xff]
        %834 = vmatprep.subr.mxu0 0.0
        %835 = vmatpush1.msra.mxu0 %v818
        %836 = vmatprep.subr.mxu0 0.0
        %837 = vmatpush1.msra.mxu0 %v819
        %838 = vmatprep.subr.mxu0 0.0
        %839 = vmatpush1.msra.mxu0 %v820
        %840 = vmatprep.subr.mxu0 0.0
        %841 = vmatpush1.msra.mxu0 %v821
        %842 = vmatprep.subr.mxu0 0.0
        %843 = vmatpush1.msra.mxu0 %v822
        %844 = vmatprep.subr.mxu0 0.0
        %845 = vmatpush1.msra.mxu0 %v823
        %846 = vmatprep.subr.mxu0 0.0
        %847 = vmatpush1.msra.mxu0 %v824
        %848 = vmatprep.subr.mxu0 0.0
        %849 = vmatpush1.msra.mxu0 %v825
        %850 = vmatprep.subr.mxu0 0.0
        %851 = vmatpush1.msra.mxu0 %v826
        %852 = vmatprep.subr.mxu0 0.0
        %853 = vmatpush1.msra.mxu0 %v827
        %854 = vmatprep.subr.mxu0 0.0
        %855 = vmatpush1.msra.mxu0 %v828
        %856 = vmatprep.subr.mxu0 0.0
        %857 = vmatpush1.msra.mxu0 %v829
        %858 = vmatprep.subr.mxu0 0.0
        %859 = vmatpush1.msra.mxu0 %v830
        %860 = vmatprep.subr.mxu0 0.0
        %861 = vmatpush1.msra.mxu0 %v831
        %862 = vmatprep.subr.mxu0 0.0
        %863 = vmatpush1.msra.mxu0 %v832
        %864 = vmatprep.subr.mxu0 0.0
        %865 = vmatpush1.msra.mxu0 %v833
        %866 = vmatprep.subr.mxu0 0.0
        %867 = vmatpush1.msra.mxu0 0.0
        %868 = vmatprep.subr.mxu0 0.0
        %869 = vmatpush1.msra.mxu0 0.0
        %870 = vmatprep.subr.mxu0 0.0
        %871 = vmatpush1.msra.mxu0 0.0
        %872 = vmatprep.subr.mxu0 0.0
        %873 = vmatpush1.msra.mxu0 0.0
        %874 = vmatprep.subr.mxu0 0.0
        %875 = vmatpush1.msra.mxu0 0.0
        %876 = vmatprep.subr.mxu0 0.0
        %877 = vmatpush1.msra.mxu0 0.0
        %878 = vmatprep.subr.mxu0 0.0
        %879 = vmatpush1.msra.mxu0 0.0
        %880 = vmatprep.subr.mxu0 0.0
        %881 = vmatpush1.msra.mxu0 0.0
        %882 = vmatprep.subr.mxu0 0.0
        %883 = vmatpush1.msra.mxu0 0.0
        %884 = vmatprep.subr.mxu0 0.0
        %885 = vmatpush1.msra.mxu0 0.0
        %886 = vmatprep.subr.mxu0 0.0
        %887 = vmatpush1.msra.mxu0 0.0
        %888 = vmatprep.subr.mxu0 0.0
        %889 = vmatpush1.msra.mxu0 0.0
        %890 = vmatprep.subr.mxu0 0.0
        %891 = vmatpush1.msra.mxu0 0.0
        %892 = vmatprep.subr.mxu0 0.0
        %893 = vmatpush1.msra.mxu0 0.0
        %894 = vmatprep.subr.mxu0 0.0
        %895 = vmatpush1.msra.mxu0 0.0
        %896 = vmatprep.subr.mxu0 0.0
        %897 = vmatpush1.msra.mxu0 0.0
        %898 = vmatprep.mubr.f32.mxu0 0.0
        %899 = vmatmul.mubr.f32.gmra.mrb[0].mxu0 %v816
        %v900 = vpop.f32.mrb[0].mxu0
        %v901 = vadd.f32 0.0, %v900
        %v902 = vpop.f32.mrb[0].mxu0
        %903 = vdwg.mxu0
        %v904 = vadd.f32 %v726, %v901
        %v905 = vld [vmem:[#allocation2 + $0x4] sm:$0xf]
        %s906 = scalar_lea.vmem [#allocation6], 512
        %v907 = vld [vmem:[%s906] sm:$0xff]
        %v908 = vld [vmem:[%s906 + $0x8] sm:$0xff]
        %v909 = vld [vmem:[%s906 + $0x10] sm:$0xff]
        %v910 = vld [vmem:[%s906 + $0x18] sm:$0xff]
        %v911 = vld [vmem:[%s906 + $0x20] sm:$0xff]
        %v912 = vld [vmem:[%s906 + $0x28] sm:$0xff]
        %v913 = vld [vmem:[%s906 + $0x30] sm:$0xff]
        %v914 = vld [vmem:[%s906 + $0x38] sm:$0xff]
        %v915 = vld [vmem:[%s906 + $0x40] sm:$0xff]
        %v916 = vld [vmem:[%s906 + $0x48] sm:$0xff]
        %v917 = vld [vmem:[%s906 + $0x50] sm:$0xff]
        %v918 = vld [vmem:[%s906 + $0x58] sm:$0xff]
        %v919 = vld [vmem:[%s906 + $0x60] sm:$0xff]
        %v920 = vld [vmem:[%s906 + $0x68] sm:$0xff]
        %v921 = vld [vmem:[%s906 + $0x70] sm:$0xff]
        %v922 = vld [vmem:[%s906 + $0x78] sm:$0xff]
        %923 = vmatprep.subr.mxu0 0.0
        %924 = vmatpush1.msra.mxu0 %v907
        %925 = vmatprep.subr.mxu0 0.0
        %926 = vmatpush1.msra.mxu0 %v908
        %927 = vmatprep.subr.mxu0 0.0
        %928 = vmatpush1.msra.mxu0 %v909
        %929 = vmatprep.subr.mxu0 0.0
        %930 = vmatpush1.msra.mxu0 %v910
        %931 = vmatprep.subr.mxu0 0.0
        %932 = vmatpush1.msra.mxu0 %v911
        %933 = vmatprep.subr.mxu0 0.0
        %934 = vmatpush1.msra.mxu0 %v912
        %935 = vmatprep.subr.mxu0 0.0
        %936 = vmatpush1.msra.mxu0 %v913
        %937 = vmatprep.subr.mxu0 0.0
        %938 = vmatpush1.msra.mxu0 %v914
        %939 = vmatprep.subr.mxu0 0.0
        %940 = vmatpush1.msra.mxu0 %v915
        %941 = vmatprep.subr.mxu0 0.0
        %942 = vmatpush1.msra.mxu0 %v916
        %943 = vmatprep.subr.mxu0 0.0
        %944 = vmatpush1.msra.mxu0 %v917
        %945 = vmatprep.subr.mxu0 0.0
        %946 = vmatpush1.msra.mxu0 %v918
        %947 = vmatprep.subr.mxu0 0.0
        %948 = vmatpush1.msra.mxu0 %v919
        %949 = vmatprep.subr.mxu0 0.0
        %950 = vmatpush1.msra.mxu0 %v920
        %951 = vmatprep.subr.mxu0 0.0
        %952 = vmatpush1.msra.mxu0 %v921
        %953 = vmatprep.subr.mxu0 0.0
        %954 = vmatpush1.msra.mxu0 %v922
        %955 = vmatprep.subr.mxu0 0.0
        %956 = vmatpush1.msra.mxu0 0.0
        %957 = vmatprep.subr.mxu0 0.0
        %958 = vmatpush1.msra.mxu0 0.0
        %959 = vmatprep.subr.mxu0 0.0
        %960 = vmatpush1.msra.mxu0 0.0
        %961 = vmatprep.subr.mxu0 0.0
        %962 = vmatpush1.msra.mxu0 0.0
        %963 = vmatprep.subr.mxu0 0.0
        %964 = vmatpush1.msra.mxu0 0.0
        %965 = vmatprep.subr.mxu0 0.0
        %966 = vmatpush1.msra.mxu0 0.0
        %967 = vmatprep.subr.mxu0 0.0
        %968 = vmatpush1.msra.mxu0 0.0
        %969 = vmatprep.subr.mxu0 0.0
        %970 = vmatpush1.msra.mxu0 0.0
        %971 = vmatprep.subr.mxu0 0.0
        %972 = vmatpush1.msra.mxu0 0.0
        %973 = vmatprep.subr.mxu0 0.0
        %974 = vmatpush1.msra.mxu0 0.0
        %975 = vmatprep.subr.mxu0 0.0
        %976 = vmatpush1.msra.mxu0 0.0
        %977 = vmatprep.subr.mxu0 0.0
        %978 = vmatpush1.msra.mxu0 0.0
        %979 = vmatprep.subr.mxu0 0.0
        %980 = vmatpush1.msra.mxu0 0.0
        %981 = vmatprep.subr.mxu0 0.0
        %982 = vmatpush1.msra.mxu0 0.0
        %983 = vmatprep.subr.mxu0 0.0
        %984 = vmatpush1.msra.mxu0 0.0
        %985 = vmatprep.subr.mxu0 0.0
        %986 = vmatpush1.msra.mxu0 0.0
        %987 = vmatprep.mubr.f32.mxu0 0.0
        %988 = vmatmul.mubr.f32.gmra.mrb[0].mxu0 %v905
        %v989 = vpop.f32.mrb[0].mxu0
        %v990 = vadd.f32 0.0, %v989
        %v991 = vpop.f32.mrb[0].mxu0
        %992 = vdwg.mxu0
        %v993 = vadd.f32 %v815, %v990
        %v994 = vld [vmem:[%s182 + $0x4] sm:$0xf]
        %s995 = scalar_lea.vmem [#allocation6], 1408
        %v996 = vld [vmem:[%s995] sm:$0xff]
        %v997 = vld [vmem:[%s995 + $0x8] sm:$0xff]
        %v998 = vld [vmem:[%s995 + $0x10] sm:$0xff]
        %v999 = vld [vmem:[%s995 + $0x18] sm:$0xff]
        %v1000 = vld [vmem:[%s995 + $0x20] sm:$0xff]
        %v1001 = vld [vmem:[%s995 + $0x28] sm:$0xff]
        %v1002 = vld [vmem:[%s995 + $0x30] sm:$0xff]
        %v1003 = vld [vmem:[%s995 + $0x38] sm:$0xff]
        %v1004 = vld [vmem:[%s995 + $0x40] sm:$0xff]
        %v1005 = vld [vmem:[%s995 + $0x48] sm:$0xff]
        %v1006 = vld [vmem:[%s995 + $0x50] sm:$0xff]
        %v1007 = vld [vmem:[%s995 + $0x58] sm:$0xff]
        %v1008 = vld [vmem:[%s995 + $0x60] sm:$0xff]
        %v1009 = vld [vmem:[%s995 + $0x68] sm:$0xff]
        %v1010 = vld [vmem:[%s995 + $0x70] sm:$0xff]
        %v1011 = vld [vmem:[%s995 + $0x78] sm:$0xff]
        %1012 = vmatprep.subr.mxu0 0.0
        %1013 = vmatpush1.msra.mxu0 %v996
        %1014 = vmatprep.subr.mxu0 0.0
        %1015 = vmatpush1.msra.mxu0 %v997
        %1016 = vmatprep.subr.mxu0 0.0
        %1017 = vmatpush1.msra.mxu0 %v998
        %1018 = vmatprep.subr.mxu0 0.0
        %1019 = vmatpush1.msra.mxu0 %v999
        %1020 = vmatprep.subr.mxu0 0.0
        %1021 = vmatpush1.msra.mxu0 %v1000
        %1022 = vmatprep.subr.mxu0 0.0
        %1023 = vmatpush1.msra.mxu0 %v1001
        %1024 = vmatprep.subr.mxu0 0.0
        %1025 = vmatpush1.msra.mxu0 %v1002
        %1026 = vmatprep.subr.mxu0 0.0
        %1027 = vmatpush1.msra.mxu0 %v1003
        %1028 = vmatprep.subr.mxu0 0.0
        %1029 = vmatpush1.msra.mxu0 %v1004
        %1030 = vmatprep.subr.mxu0 0.0
        %1031 = vmatpush1.msra.mxu0 %v1005
        %1032 = vmatprep.subr.mxu0 0.0
        %1033 = vmatpush1.msra.mxu0 %v1006
        %1034 = vmatprep.subr.mxu0 0.0
        %1035 = vmatpush1.msra.mxu0 %v1007
        %1036 = vmatprep.subr.mxu0 0.0
        %1037 = vmatpush1.msra.mxu0 %v1008
        %1038 = vmatprep.subr.mxu0 0.0
        %1039 = vmatpush1.msra.mxu0 %v1009
        %1040 = vmatprep.subr.mxu0 0.0
        %1041 = vmatpush1.msra.mxu0 %v1010
        %1042 = vmatprep.subr.mxu0 0.0
        %1043 = vmatpush1.msra.mxu0 %v1011
        %1044 = vmatprep.subr.mxu0 0.0
        %1045 = vmatpush1.msra.mxu0 0.0
        %1046 = vmatprep.subr.mxu0 0.0
        %1047 = vmatpush1.msra.mxu0 0.0
        %1048 = vmatprep.subr.mxu0 0.0
        %1049 = vmatpush1.msra.mxu0 0.0
        %1050 = vmatprep.subr.mxu0 0.0
        %1051 = vmatpush1.msra.mxu0 0.0
        %1052 = vmatprep.subr.mxu0 0.0
        %1053 = vmatpush1.msra.mxu0 0.0
        %1054 = vmatprep.subr.mxu0 0.0
        %1055 = vmatpush1.msra.mxu0 0.0
        %1056 = vmatprep.subr.mxu0 0.0
        %1057 = vmatpush1.msra.mxu0 0.0
        %1058 = vmatprep.subr.mxu0 0.0
        %1059 = vmatpush1.msra.mxu0 0.0
        %1060 = vmatprep.subr.mxu0 0.0
        %1061 = vmatpush1.msra.mxu0 0.0
        %1062 = vmatprep.subr.mxu0 0.0
        %1063 = vmatpush1.msra.mxu0 0.0
        %1064 = vmatprep.subr.mxu0 0.0
        %1065 = vmatpush1.msra.mxu0 0.0
        %1066 = vmatprep.subr.mxu0 0.0
        %1067 = vmatpush1.msra.mxu0 0.0
        %1068 = vmatprep.subr.mxu0 0.0
        %1069 = vmatpush1.msra.mxu0 0.0
        %1070 = vmatprep.subr.mxu0 0.0
        %1071 = vmatpush1.msra.mxu0 0.0
        %1072 = vmatprep.subr.mxu0 0.0
        %1073 = vmatpush1.msra.mxu0 0.0
        %1074 = vmatprep.subr.mxu0 0.0
        %1075 = vmatpush1.msra.mxu0 0.0
        %1076 = vmatprep.mubr.f32.mxu0 0.0
        %1077 = vmatmul.mubr.f32.gmra.mrb[0].mxu0 %v994
        %v1078 = vpop.f32.mrb[0].mxu0
        %v1079 = vadd.f32 0.0, %v1078
        %v1080 = vpop.f32.mrb[0].mxu0
        %1081 = vdwg.mxu0
        %v1082 = vadd.f32 %v904, %v1079
        %v1083 = vld [vmem:[#allocation2 + $0x5] sm:$0xf]
        %s1084 = scalar_lea.vmem [#allocation6], 640
        %v1085 = vld [vmem:[%s1084] sm:$0xff]
        %v1086 = vld [vmem:[%s1084 + $0x8] sm:$0xff]
        %v1087 = vld [vmem:[%s1084 + $0x10] sm:$0xff]
        %v1088 = vld [vmem:[%s1084 + $0x18] sm:$0xff]
        %v1089 = vld [vmem:[%s1084 + $0x20] sm:$0xff]
        %v1090 = vld [vmem:[%s1084 + $0x28] sm:$0xff]
        %v1091 = vld [vmem:[%s1084 + $0x30] sm:$0xff]
        %v1092 = vld [vmem:[%s1084 + $0x38] sm:$0xff]
        %v1093 = vld [vmem:[%s1084 + $0x40] sm:$0xff]
        %v1094 = vld [vmem:[%s1084 + $0x48] sm:$0xff]
        %v1095 = vld [vmem:[%s1084 + $0x50] sm:$0xff]
        %v1096 = vld [vmem:[%s1084 + $0x58] sm:$0xff]
        %v1097 = vld [vmem:[%s1084 + $0x60] sm:$0xff]
        %v1098 = vld [vmem:[%s1084 + $0x68] sm:$0xff]
        %v1099 = vld [vmem:[%s1084 + $0x70] sm:$0xff]
        %v1100 = vld [vmem:[%s1084 + $0x78] sm:$0xff]
        %1101 = vmatprep.subr.mxu0 0.0
        %1102 = vmatpush1.msra.mxu0 %v1085
        %1103 = vmatprep.subr.mxu0 0.0
        %1104 = vmatpush1.msra.mxu0 %v1086
        %1105 = vmatprep.subr.mxu0 0.0
        %1106 = vmatpush1.msra.mxu0 %v1087
        %1107 = vmatprep.subr.mxu0 0.0
        %1108 = vmatpush1.msra.mxu0 %v1088
        %1109 = vmatprep.subr.mxu0 0.0
        %1110 = vmatpush1.msra.mxu0 %v1089
        %1111 = vmatprep.subr.mxu0 0.0
        %1112 = vmatpush1.msra.mxu0 %v1090
        %1113 = vmatprep.subr.mxu0 0.0
        %1114 = vmatpush1.msra.mxu0 %v1091
        %1115 = vmatprep.subr.mxu0 0.0
        %1116 = vmatpush1.msra.mxu0 %v1092
        %1117 = vmatprep.subr.mxu0 0.0
        %1118 = vmatpush1.msra.mxu0 %v1093
        %1119 = vmatprep.subr.mxu0 0.0
        %1120 = vmatpush1.msra.mxu0 %v1094
        %1121 = vmatprep.subr.mxu0 0.0
        %1122 = vmatpush1.msra.mxu0 %v1095
        %1123 = vmatprep.subr.mxu0 0.0
        %1124 = vmatpush1.msra.mxu0 %v1096
        %1125 = vmatprep.subr.mxu0 0.0
        %1126 = vmatpush1.msra.mxu0 %v1097
        %1127 = vmatprep.subr.mxu0 0.0
        %1128 = vmatpush1.msra.mxu0 %v1098
        %1129 = vmatprep.subr.mxu0 0.0
        %1130 = vmatpush1.msra.mxu0 %v1099
        %1131 = vmatprep.subr.mxu0 0.0
        %1132 = vmatpush1.msra.mxu0 %v1100
        %1133 = vmatprep.subr.mxu0 0.0
        %1134 = vmatpush1.msra.mxu0 0.0
        %1135 = vmatprep.subr.mxu0 0.0
        %1136 = vmatpush1.msra.mxu0 0.0
        %1137 = vmatprep.subr.mxu0 0.0
        %1138 = vmatpush1.msra.mxu0 0.0
        %1139 = vmatprep.subr.mxu0 0.0
        %1140 = vmatpush1.msra.mxu0 0.0
        %1141 = vmatprep.subr.mxu0 0.0
        %1142 = vmatpush1.msra.mxu0 0.0
        %1143 = vmatprep.subr.mxu0 0.0
        %1144 = vmatpush1.msra.mxu0 0.0
        %1145 = vmatprep.subr.mxu0 0.0
        %1146 = vmatpush1.msra.mxu0 0.0
        %1147 = vmatprep.subr.mxu0 0.0
        %1148 = vmatpush1.msra.mxu0 0.0
        %1149 = vmatprep.subr.mxu0 0.0
        %1150 = vmatpush1.msra.mxu0 0.0
        %1151 = vmatprep.subr.mxu0 0.0
        %1152 = vmatpush1.msra.mxu0 0.0
        %1153 = vmatprep.subr.mxu0 0.0
        %1154 = vmatpush1.msra.mxu0 0.0
        %1155 = vmatprep.subr.mxu0 0.0
        %1156 = vmatpush1.msra.mxu0 0.0
        %1157 = vmatprep.subr.mxu0 0.0
        %1158 = vmatpush1.msra.mxu0 0.0
        %1159 = vmatprep.subr.mxu0 0.0
        %1160 = vmatpush1.msra.mxu0 0.0
        %1161 = vmatprep.subr.mxu0 0.0
        %1162 = vmatpush1.msra.mxu0 0.0
        %1163 = vmatprep.subr.mxu0 0.0
        %1164 = vmatpush1.msra.mxu0 0.0
        %1165 = vmatprep.mubr.f32.mxu0 0.0
        %1166 = vmatmul.mubr.f32.gmra.mrb[0].mxu0 %v1083
        %v1167 = vpop.f32.mrb[0].mxu0
        %v1168 = vadd.f32 0.0, %v1167
        %v1169 = vpop.f32.mrb[0].mxu0
        %1170 = vdwg.mxu0
        %v1171 = vadd.f32 %v993, %v1168
        %v1172 = vld [vmem:[%s182 + $0x5] sm:$0xf]
        %s1173 = scalar_lea.vmem [#allocation6], 1536
        %v1174 = vld [vmem:[%s1173] sm:$0xff]
        %v1175 = vld [vmem:[%s1173 + $0x8] sm:$0xff]
        %v1176 = vld [vmem:[%s1173 + $0x10] sm:$0xff]
        %v1177 = vld [vmem:[%s1173 + $0x18] sm:$0xff]
        %v1178 = vld [vmem:[%s1173 + $0x20] sm:$0xff]
        %v1179 = vld [vmem:[%s1173 + $0x28] sm:$0xff]
        %v1180 = vld [vmem:[%s1173 + $0x30] sm:$0xff]
        %v1181 = vld [vmem:[%s1173 + $0x38] sm:$0xff]
        %v1182 = vld [vmem:[%s1173 + $0x40] sm:$0xff]
        %v1183 = vld [vmem:[%s1173 + $0x48] sm:$0xff]
        %v1184 = vld [vmem:[%s1173 + $0x50] sm:$0xff]
        %v1185 = vld [vmem:[%s1173 + $0x58] sm:$0xff]
        %v1186 = vld [vmem:[%s1173 + $0x60] sm:$0xff]
        %v1187 = vld [vmem:[%s1173 + $0x68] sm:$0xff]
        %v1188 = vld [vmem:[%s1173 + $0x70] sm:$0xff]
        %v1189 = vld [vmem:[%s1173 + $0x78] sm:$0xff]
        %1190 = vmatprep.subr.mxu0 0.0
        %1191 = vmatpush1.msra.mxu0 %v1174
        %1192 = vmatprep.subr.mxu0 0.0
        %1193 = vmatpush1.msra.mxu0 %v1175
        %1194 = vmatprep.subr.mxu0 0.0
        %1195 = vmatpush1.msra.mxu0 %v1176
        %1196 = vmatprep.subr.mxu0 0.0
        %1197 = vmatpush1.msra.mxu0 %v1177
        %1198 = vmatprep.subr.mxu0 0.0
        %1199 = vmatpush1.msra.mxu0 %v1178
        %1200 = vmatprep.subr.mxu0 0.0
        %1201 = vmatpush1.msra.mxu0 %v1179
        %1202 = vmatprep.subr.mxu0 0.0
        %1203 = vmatpush1.msra.mxu0 %v1180
        %1204 = vmatprep.subr.mxu0 0.0
        %1205 = vmatpush1.msra.mxu0 %v1181
        %1206 = vmatprep.subr.mxu0 0.0
        %1207 = vmatpush1.msra.mxu0 %v1182
        %1208 = vmatprep.subr.mxu0 0.0
        %1209 = vmatpush1.msra.mxu0 %v1183
        %1210 = vmatprep.subr.mxu0 0.0
        %1211 = vmatpush1.msra.mxu0 %v1184
        %1212 = vmatprep.subr.mxu0 0.0
        %1213 = vmatpush1.msra.mxu0 %v1185
        %1214 = vmatprep.subr.mxu0 0.0
        %1215 = vmatpush1.msra.mxu0 %v1186
        %1216 = vmatprep.subr.mxu0 0.0
        %1217 = vmatpush1.msra.mxu0 %v1187
        %1218 = vmatprep.subr.mxu0 0.0
        %1219 = vmatpush1.msra.mxu0 %v1188
        %1220 = vmatprep.subr.mxu0 0.0
        %1221 = vmatpush1.msra.mxu0 %v1189
        %1222 = vmatprep.subr.mxu0 0.0
        %1223 = vmatpush1.msra.mxu0 0.0
        %1224 = vmatprep.subr.mxu0 0.0
        %1225 = vmatpush1.msra.mxu0 0.0
        %1226 = vmatprep.subr.mxu0 0.0
        %1227 = vmatpush1.msra.mxu0 0.0
        %1228 = vmatprep.subr.mxu0 0.0
        %1229 = vmatpush1.msra.mxu0 0.0
        %1230 = vmatprep.subr.mxu0 0.0
        %1231 = vmatpush1.msra.mxu0 0.0
        %1232 = vmatprep.subr.mxu0 0.0
        %1233 = vmatpush1.msra.mxu0 0.0
        %1234 = vmatprep.subr.mxu0 0.0
        %1235 = vmatpush1.msra.mxu0 0.0
        %1236 = vmatprep.subr.mxu0 0.0
        %1237 = vmatpush1.msra.mxu0 0.0
        %1238 = vmatprep.subr.mxu0 0.0
        %1239 = vmatpush1.msra.mxu0 0.0
        %1240 = vmatprep.subr.mxu0 0.0
        %1241 = vmatpush1.msra.mxu0 0.0
        %1242 = vmatprep.subr.mxu0 0.0
        %1243 = vmatpush1.msra.mxu0 0.0
        %1244 = vmatprep.subr.mxu0 0.0
        %1245 = vmatpush1.msra.mxu0 0.0
        %1246 = vmatprep.subr.mxu0 0.0
        %1247 = vmatpush1.msra.mxu0 0.0
        %1248 = vmatprep.subr.mxu0 0.0
        %1249 = vmatpush1.msra.mxu0 0.0
        %1250 = vmatprep.subr.mxu0 0.0
        %1251 = vmatpush1.msra.mxu0 0.0
        %1252 = vmatprep.subr.mxu0 0.0
        %1253 = vmatpush1.msra.mxu0 0.0
        %1254 = vmatprep.mubr.f32.mxu0 0.0
        %1255 = vmatmul.mubr.f32.gmra.mrb[0].mxu0 %v1172
        %v1256 = vpop.f32.mrb[0].mxu0
        %v1257 = vadd.f32 0.0, %v1256
        %v1258 = vpop.f32.mrb[0].mxu0
        %1259 = vdwg.mxu0
        %v1260 = vadd.f32 %v1082, %v1257
        %v1261 = vld [vmem:[#allocation2 + $0x6] sm:$0xf]
        %s1262 = scalar_lea.vmem [#allocation6], 768
        %v1263 = vld [vmem:[%s1262] sm:$0xff]
        %v1264 = vld [vmem:[%s1262 + $0x8] sm:$0xff]
        %v1265 = vld [vmem:[%s1262 + $0x10] sm:$0xff]
        %v1266 = vld [vmem:[%s1262 + $0x18] sm:$0xff]
        %v1267 = vld [vmem:[%s1262 + $0x20] sm:$0xff]
        %v1268 = vld [vmem:[%s1262 + $0x28] sm:$0xff]
        %v1269 = vld [vmem:[%s1262 + $0x30] sm:$0xff]
        %v1270 = vld [vmem:[%s1262 + $0x38] sm:$0xff]
        %v1271 = vld [vmem:[%s1262 + $0x40] sm:$0xff]
        %v1272 = vld [vmem:[%s1262 + $0x48] sm:$0xff]
        %v1273 = vld [vmem:[%s1262 + $0x50] sm:$0xff]
        %v1274 = vld [vmem:[%s1262 + $0x58] sm:$0xff]
        %v1275 = vld [vmem:[%s1262 + $0x60] sm:$0xff]
        %v1276 = vld [vmem:[%s1262 + $0x68] sm:$0xff]
        %v1277 = vld [vmem:[%s1262 + $0x70] sm:$0xff]
        %v1278 = vld [vmem:[%s1262 + $0x78] sm:$0xff]
        %1279 = vmatprep.subr.mxu0 0.0
        %1280 = vmatpush1.msra.mxu0 %v1263
        %1281 = vmatprep.subr.mxu0 0.0
        %1282 = vmatpush1.msra.mxu0 %v1264
        %1283 = vmatprep.subr.mxu0 0.0
        %1284 = vmatpush1.msra.mxu0 %v1265
        %1285 = vmatprep.subr.mxu0 0.0
        %1286 = vmatpush1.msra.mxu0 %v1266
        %1287 = vmatprep.subr.mxu0 0.0
        %1288 = vmatpush1.msra.mxu0 %v1267
        %1289 = vmatprep.subr.mxu0 0.0
        %1290 = vmatpush1.msra.mxu0 %v1268
        %1291 = vmatprep.subr.mxu0 0.0
        %1292 = vmatpush1.msra.mxu0 %v1269
        %1293 = vmatprep.subr.mxu0 0.0
        %1294 = vmatpush1.msra.mxu0 %v1270
        %1295 = vmatprep.subr.mxu0 0.0
        %1296 = vmatpush1.msra.mxu0 %v1271
        %1297 = vmatprep.subr.mxu0 0.0
        %1298 = vmatpush1.msra.mxu0 %v1272
        %1299 = vmatprep.subr.mxu0 0.0
        %1300 = vmatpush1.msra.mxu0 %v1273
        %1301 = vmatprep.subr.mxu0 0.0
        %1302 = vmatpush1.msra.mxu0 %v1274
        %1303 = vmatprep.subr.mxu0 0.0
        %1304 = vmatpush1.msra.mxu0 %v1275
        %1305 = vmatprep.subr.mxu0 0.0
        %1306 = vmatpush1.msra.mxu0 %v1276
        %1307 = vmatprep.subr.mxu0 0.0
        %1308 = vmatpush1.msra.mxu0 %v1277
        %1309 = vmatprep.subr.mxu0 0.0
        %1310 = vmatpush1.msra.mxu0 %v1278
        %1311 = vmatprep.subr.mxu0 0.0
        %1312 = vmatpush1.msra.mxu0 0.0
        %1313 = vmatprep.subr.mxu0 0.0
        %1314 = vmatpush1.msra.mxu0 0.0
        %1315 = vmatprep.subr.mxu0 0.0
        %1316 = vmatpush1.msra.mxu0 0.0
        %1317 = vmatprep.subr.mxu0 0.0
        %1318 = vmatpush1.msra.mxu0 0.0
        %1319 = vmatprep.subr.mxu0 0.0
        %1320 = vmatpush1.msra.mxu0 0.0
        %1321 = vmatprep.subr.mxu0 0.0
        %1322 = vmatpush1.msra.mxu0 0.0
        %1323 = vmatprep.subr.mxu0 0.0
        %1324 = vmatpush1.msra.mxu0 0.0
        %1325 = vmatprep.subr.mxu0 0.0
        %1326 = vmatpush1.msra.mxu0 0.0
        %1327 = vmatprep.subr.mxu0 0.0
        %1328 = vmatpush1.msra.mxu0 0.0
        %1329 = vmatprep.subr.mxu0 0.0
        %1330 = vmatpush1.msra.mxu0 0.0
        %1331 = vmatprep.subr.mxu0 0.0
        %1332 = vmatpush1.msra.mxu0 0.0
        %1333 = vmatprep.subr.mxu0 0.0
        %1334 = vmatpush1.msra.mxu0 0.0
        %1335 = vmatprep.subr.mxu0 0.0
        %1336 = vmatpush1.msra.mxu0 0.0
        %1337 = vmatprep.subr.mxu0 0.0
        %1338 = vmatpush1.msra.mxu0 0.0
        %1339 = vmatprep.subr.mxu0 0.0
        %1340 = vmatpush1.msra.mxu0 0.0
        %1341 = vmatprep.subr.mxu0 0.0
        %1342 = vmatpush1.msra.mxu0 0.0
        %1343 = vmatprep.mubr.f32.mxu0 0.0
        %1344 = vmatmul.mubr.f32.gmra.mrb[0].mxu0 %v1261
        %v1345 = vpop.f32.mrb[0].mxu0
        %v1346 = vadd.f32 0.0, %v1345
        %v1347 = vpop.f32.mrb[0].mxu0
        %1348 = vdwg.mxu0
        %v1349 = vadd.f32 %v1171, %v1346
        %v1350 = vld [vmem:[%s182 + $0x6] sm:$0xf]
        %s1351 = scalar_lea.vmem [#allocation6], 1664
        %v1352 = vld [vmem:[%s1351] sm:$0xff]
        %v1353 = vld [vmem:[%s1351 + $0x8] sm:$0xff]
        %v1354 = vld [vmem:[%s1351 + $0x10] sm:$0xff]
        %v1355 = vld [vmem:[%s1351 + $0x18] sm:$0xff]
        %v1356 = vld [vmem:[%s1351 + $0x20] sm:$0xff]
        %v1357 = vld [vmem:[%s1351 + $0x28] sm:$0xff]
        %v1358 = vld [vmem:[%s1351 + $0x30] sm:$0xff]
        %v1359 = vld [vmem:[%s1351 + $0x38] sm:$0xff]
        %v1360 = vld [vmem:[%s1351 + $0x40] sm:$0xff]
        %v1361 = vld [vmem:[%s1351 + $0x48] sm:$0xff]
        %v1362 = vld [vmem:[%s1351 + $0x50] sm:$0xff]
        %v1363 = vld [vmem:[%s1351 + $0x58] sm:$0xff]
        %v1364 = vld [vmem:[%s1351 + $0x60] sm:$0xff]
        %v1365 = vld [vmem:[%s1351 + $0x68] sm:$0xff]
        %v1366 = vld [vmem:[%s1351 + $0x70] sm:$0xff]
        %v1367 = vld [vmem:[%s1351 + $0x78] sm:$0xff]
        %1368 = vmatprep.subr.mxu0 0.0
        %1369 = vmatpush1.msra.mxu0 %v1352
        %1370 = vmatprep.subr.mxu0 0.0
        %1371 = vmatpush1.msra.mxu0 %v1353
        %1372 = vmatprep.subr.mxu0 0.0
        %1373 = vmatpush1.msra.mxu0 %v1354
        %1374 = vmatprep.subr.mxu0 0.0
        %1375 = vmatpush1.msra.mxu0 %v1355
        %1376 = vmatprep.subr.mxu0 0.0
        %1377 = vmatpush1.msra.mxu0 %v1356
        %1378 = vmatprep.subr.mxu0 0.0
        %1379 = vmatpush1.msra.mxu0 %v1357
        %1380 = vmatprep.subr.mxu0 0.0
        %1381 = vmatpush1.msra.mxu0 %v1358
        %1382 = vmatprep.subr.mxu0 0.0
        %1383 = vmatpush1.msra.mxu0 %v1359
        %1384 = vmatprep.subr.mxu0 0.0
        %1385 = vmatpush1.msra.mxu0 %v1360
        %1386 = vmatprep.subr.mxu0 0.0
        %1387 = vmatpush1.msra.mxu0 %v1361
        %1388 = vmatprep.subr.mxu0 0.0
        %1389 = vmatpush1.msra.mxu0 %v1362
        %1390 = vmatprep.subr.mxu0 0.0
        %1391 = vmatpush1.msra.mxu0 %v1363
        %1392 = vmatprep.subr.mxu0 0.0
        %1393 = vmatpush1.msra.mxu0 %v1364
        %1394 = vmatprep.subr.mxu0 0.0
        %1395 = vmatpush1.msra.mxu0 %v1365
        %1396 = vmatprep.subr.mxu0 0.0
        %1397 = vmatpush1.msra.mxu0 %v1366
        %1398 = vmatprep.subr.mxu0 0.0
        %1399 = vmatpush1.msra.mxu0 %v1367
        %1400 = vmatprep.subr.mxu0 0.0
        %1401 = vmatpush1.msra.mxu0 0.0
        %1402 = vmatprep.subr.mxu0 0.0
        %1403 = vmatpush1.msra.mxu0 0.0
        %1404 = vmatprep.subr.mxu0 0.0
        %1405 = vmatpush1.msra.mxu0 0.0
        %1406 = vmatprep.subr.mxu0 0.0
        %1407 = vmatpush1.msra.mxu0 0.0
        %1408 = vmatprep.subr.mxu0 0.0
        %1409 = vmatpush1.msra.mxu0 0.0
        %1410 = vmatprep.subr.mxu0 0.0
        %1411 = vmatpush1.msra.mxu0 0.0
        %1412 = vmatprep.subr.mxu0 0.0
        %1413 = vmatpush1.msra.mxu0 0.0
        %1414 = vmatprep.subr.mxu0 0.0
        %1415 = vmatpush1.msra.mxu0 0.0
        %1416 = vmatprep.subr.mxu0 0.0
        %1417 = vmatpush1.msra.mxu0 0.0
        %1418 = vmatprep.subr.mxu0 0.0
        %1419 = vmatpush1.msra.mxu0 0.0
        %1420 = vmatprep.subr.mxu0 0.0
        %1421 = vmatpush1.msra.mxu0 0.0
        %1422 = vmatprep.subr.mxu0 0.0
        %1423 = vmatpush1.msra.mxu0 0.0
        %1424 = vmatprep.subr.mxu0 0.0
        %1425 = vmatpush1.msra.mxu0 0.0
        %1426 = vmatprep.subr.mxu0 0.0
        %1427 = vmatpush1.msra.mxu0 0.0
        %1428 = vmatprep.subr.mxu0 0.0
        %1429 = vmatpush1.msra.mxu0 0.0
        %1430 = vmatprep.subr.mxu0 0.0
        %1431 = vmatpush1.msra.mxu0 0.0
        %1432 = vmatprep.mubr.f32.mxu0 0.0
        %1433 = vmatmul.mubr.f32.gmra.mrb[0].mxu0 %v1350
        %v1434 = vpop.f32.mrb[0].mxu0
        %v1435 = vadd.f32 0.0, %v1434
        %v1436 = vpop.f32.mrb[0].mxu0
        %1437 = vdwg.mxu0
        %v1438 = vadd.f32 %v1260, %v1435
        %v1439 = vadd.f32 %v1349, %v1438
        %v1440 = vxor.u32 %v1439, 2147483648
        %v1441 = vmul.f32 %v1440, 1.442695
        %v1442 = vpow.pop %v1441
        %v1443 = vadd.f32 %v1442, 1.0
        %v1444 = vrcp.pop %v1443
        %v1445 = vmul.f32 1.0, %v1444
        %v1447 = vrot.slane %v1445, 4
        %vm1449 = vcmask 1043456
        %v1450 = vsel %vm1449, %v1445, %v1447
        %v1451 = vld [vmem:[%s153] sm:$0xff]
        %v1452 = vld [vmem:[%s153 + $0x8] sm:$0xff]
        %v1453 = vmul.f32 %v1451, %v1450
        %v1454 = vmul.f32 %v1452, %v1450
        %1455 = vst [vmem:[%s177] sm:$0xff] %v1453
        %1456 = vst [vmem:[%s177 + $0x8] sm:$0xff] %v1454
        %s1457 = scalar_lea.vmem %s153, 16 [#allocation3]
        %v1458 = vld [vmem:[%s1457] sm:$0xf]
        %v1459 = vld [vmem:[%s1457 + $0x4] sm:$0xf]
        %v1460 = vadd.f32 %v1458, %v1459
        %v1461 = vmax.f32 %v1458, %v1459
        %v1462 = vld [vmem:[%s1457 + $0x8] sm:$0xf]
        %v1463 = vadd.f32 %v1460, %v1462
        %v1464 = vmax.f32 %v1461, %v1462
        %v1465 = vld [vmem:[%s1457 + $0xc] sm:$0xf]
        %v1466 = vadd.f32 %v1463, %v1465
        %v1467 = vmax.f32 %v1464, %v1465
        %v1468 = vmul.f32 %v1466, 0.25
        %1469 = vst [vmem:[#allocation2 + $0x3] sm:$0xf] %v1468
        %1470 = vst [vmem:[%s182 + $0x3] sm:$0xf] %v1467
        %v1471 = vld [vmem:[#allocation2] sm:$0xf]
        %v1472 = vld [vmem:[#allocation6] sm:$0xff]
        %v1473 = vld [vmem:[#allocation6 + $0x8] sm:$0xff]
        %v1474 = vld [vmem:[#allocation6 + $0x10] sm:$0xff]
        %v1475 = vld [vmem:[#allocation6 + $0x18] sm:$0xff]
        %v1476 = vld [vmem:[#allocation6 + $0x20] sm:$0xff]
        %v1477 = vld [vmem:[#allocation6 + $0x28] sm:$0xff]
        %v1478 = vld [vmem:[#allocation6 + $0x30] sm:$0xff]
        %v1479 = vld [vmem:[#allocation6 + $0x38] sm:$0xff]
        %v1480 = vld [vmem:[#allocation6 + $0x40] sm:$0xff]
        %v1481 = vld [vmem:[#allocation6 + $0x48] sm:$0xff]
        %v1482 = vld [vmem:[#allocation6 + $0x50] sm:$0xff]
        %v1483 = vld [vmem:[#allocation6 + $0x58] sm:$0xff]
        %v1484 = vld [vmem:[#allocation6 + $0x60] sm:$0xff]
        %v1485 = vld [vmem:[#allocation6 + $0x68] sm:$0xff]
        %v1486 = vld [vmem:[#allocation6 + $0x70] sm:$0xff]
        %v1487 = vld [vmem:[#allocation6 + $0x78] sm:$0xff]
        %v1488 = vld [vmem:[%s182] sm:$0xf]
        %v1489 = vld [vmem:[%s216] sm:$0xff]
        %v1490 = vld [vmem:[%s216 + $0x8] sm:$0xff]
        %v1491 = vld [vmem:[%s216 + $0x10] sm:$0xff]
        %v1492 = vld [vmem:[%s216 + $0x18] sm:$0xff]
        %v1493 = vld [vmem:[%s216 + $0x20] sm:$0xff]
        %v1494 = vld [vmem:[%s216 + $0x28] sm:$0xff]
        %v1495 = vld [vmem:[%s216 + $0x30] sm:$0xff]
        %v1496 = vld [vmem:[%s216 + $0x38] sm:$0xff]
        %v1497 = vld [vmem:[%s216 + $0x40] sm:$0xff]
        %v1498 = vld [vmem:[%s216 + $0x48] sm:$0xff]
        %v1499 = vld [vmem:[%s216 + $0x50] sm:$0xff]
        %v1500 = vld [vmem:[%s216 + $0x58] sm:$0xff]
        %v1501 = vld [vmem:[%s216 + $0x60] sm:$0xff]
        %v1502 = vld [vmem:[%s216 + $0x68] sm:$0xff]
        %v1503 = vld [vmem:[%s216 + $0x70] sm:$0xff]
        %v1504 = vld [vmem:[%s216 + $0x78] sm:$0xff]
        %v1505 = vld [vmem:[#allocation2 + $0x1] sm:$0xf]
        %v1506 = vld [vmem:[%s234] sm:$0xff]
        %v1507 = vld [vmem:[%s234 + $0x8] sm:$0xff]
        %v1508 = vld [vmem:[%s234 + $0x10] sm:$0xff]
        %v1509 = vld [vmem:[%s234 + $0x18] sm:$0xff]
        %v1510 = vld [vmem:[%s234 + $0x20] sm:$0xff]
        %v1511 = vld [vmem:[%s234 + $0x28] sm:$0xff]
        %v1512 = vld [vmem:[%s234 + $0x30] sm:$0xff]
        %v1513 = vld [vmem:[%s234 + $0x38] sm:$0xff]
        %v1514 = vld [vmem:[%s234 + $0x40] sm:$0xff]
        %v1515 = vld [vmem:[%s234 + $0x48] sm:$0xff]
        %v1516 = vld [vmem:[%s234 + $0x50] sm:$0xff]
        %v1517 = vld [vmem:[%s234 + $0x58] sm:$0xff]
        %v1518 = vld [vmem:[%s234 + $0x60] sm:$0xff]
        %v1519 = vld [vmem:[%s234 + $0x68] sm:$0xff]
        %v1520 = vld [vmem:[%s234 + $0x70] sm:$0xff]
        %v1521 = vld [vmem:[%s234 + $0x78] sm:$0xff]
        %1522 = vmatprep.subr.mxu0 0.0
        %1523 = vmatpush1.msra.mxu0 %v1506
        %1524 = vmatprep.subr.mxu0 0.0
        %1525 = vmatpush1.msra.mxu0 %v1507
        %1526 = vmatprep.subr.mxu0 0.0
        %1527 = vmatpush1.msra.mxu0 %v1508
        %1528 = vmatprep.subr.mxu0 0.0
        %1529 = vmatpush1.msra.mxu0 %v1509
        %1530 = vmatprep.subr.mxu0 0.0
        %1531 = vmatpush1.msra.mxu0 %v1510
        %1532 = vmatprep.subr.mxu0 0.0
        %1533 = vmatpush1.msra.mxu0 %v1511
        %1534 = vmatprep.subr.mxu0 0.0
        %1535 = vmatpush1.msra.mxu0 %v1512
        %1536 = vmatprep.subr.mxu0 0.0
        %1537 = vmatpush1.msra.mxu0 %v1513
        %1538 = vmatprep.subr.mxu0 0.0
        %1539 = vmatpush1.msra.mxu0 %v1514
        %1540 = vmatprep.subr.mxu0 0.0
        %1541 = vmatpush1.msra.mxu0 %v1515
        %1542 = vmatprep.subr.mxu0 0.0
        %1543 = vmatpush1.msra.mxu0 %v1516
        %1544 = vmatprep.subr.mxu0 0.0
        %1545 = vmatpush1.msra.mxu0 %v1517
        %1546 = vmatprep.subr.mxu0 0.0
        %1547 = vmatpush1.msra.mxu0 %v1518
        %1548 = vmatprep.subr.mxu0 0.0
        %1549 = vmatpush1.msra.mxu0 %v1519
        %1550 = vmatprep.subr.mxu0 0.0
        %1551 = vmatpush1.msra.mxu0 %v1520
        %1552 = vmatprep.subr.mxu0 0.0
        %1553 = vmatpush1.msra.mxu0 %v1521
        %1554 = vmatprep.subr.mxu0 0.0
        %1555 = vmatpush1.msra.mxu0 0.0
        %1556 = vmatprep.subr.mxu0 0.0
        %1557 = vmatpush1.msra.mxu0 0.0
        %1558 = vmatprep.subr.mxu0 0.0
        %1559 = vmatpush1.msra.mxu0 0.0
        %1560 = vmatprep.subr.mxu0 0.0
        %1561 = vmatpush1.msra.mxu0 0.0
        %1562 = vmatprep.subr.mxu0 0.0
        %1563 = vmatpush1.msra.mxu0 0.0
        %1564 = vmatprep.subr.mxu0 0.0
        %1565 = vmatpush1.msra.mxu0 0.0
        %1566 = vmatprep.subr.mxu0 0.0
        %1567 = vmatpush1.msra.mxu0 0.0
        %1568 = vmatprep.subr.mxu0 0.0
        %1569 = vmatpush1.msra.mxu0 0.0
        %1570 = vmatprep.subr.mxu0 0.0
        %1571 = vmatpush1.msra.mxu0 0.0
        %1572 = vmatprep.subr.mxu0 0.0
        %1573 = vmatpush1.msra.mxu0 0.0
        %1574 = vmatprep.subr.mxu0 0.0
        %1575 = vmatpush1.msra.mxu0 0.0
        %1576 = vmatprep.subr.mxu0 0.0
        %1577 = vmatpush1.msra.mxu0 0.0
        %1578 = vmatprep.subr.mxu0 0.0
        %1579 = vmatpush1.msra.mxu0 0.0
        %1580 = vmatprep.subr.mxu0 0.0
        %1581 = vmatpush1.msra.mxu0 0.0
        %1582 = vmatprep.subr.mxu0 0.0
        %1583 = vmatpush1.msra.mxu0 0.0
        %1584 = vmatprep.subr.mxu0 0.0
        %1585 = vmatpush1.msra.mxu0 0.0
        %1586 = vmatprep.mubr.f32.mxu0 0.0
        %1587 = vmatmul.mubr.f32.gmra.mrb[0].mxu0 %v1505
        %v1588 = vpop.f32.mrb[0].mxu0
        %v1589 = vadd.f32 0.0, %v1588
        %v1590 = vpop.f32.mrb[0].mxu0
        %1591 = vdwg.mxu0
        %1592 = vmatprep.subr.mxu0 0.0
        %1593 = vmatpush1.msra.mxu0 %v1472
        %1594 = vmatprep.subr.mxu0 0.0
        %1595 = vmatpush1.msra.mxu0 %v1473
        %1596 = vmatprep.subr.mxu0 0.0
        %1597 = vmatpush1.msra.mxu0 %v1474
        %1598 = vmatprep.subr.mxu0 0.0
        %1599 = vmatpush1.msra.mxu0 %v1475
        %1600 = vmatprep.subr.mxu0 0.0
        %1601 = vmatpush1.msra.mxu0 %v1476
        %1602 = vmatprep.subr.mxu0 0.0
        %1603 = vmatpush1.msra.mxu0 %v1477
        %1604 = vmatprep.subr.mxu0 0.0
        %1605 = vmatpush1.msra.mxu0 %v1478
        %1606 = vmatprep.subr.mxu0 0.0
        %1607 = vmatpush1.msra.mxu0 %v1479
        %1608 = vmatprep.subr.mxu0 0.0
        %1609 = vmatpush1.msra.mxu0 %v1480
        %1610 = vmatprep.subr.mxu0 0.0
        %1611 = vmatpush1.msra.mxu0 %v1481
        %1612 = vmatprep.subr.mxu0 0.0
        %1613 = vmatpush1.msra.mxu0 %v1482
        %1614 = vmatprep.subr.mxu0 0.0
        %1615 = vmatpush1.msra.mxu0 %v1483
        %1616 = vmatprep.subr.mxu0 0.0
        %1617 = vmatpush1.msra.mxu0 %v1484
        %1618 = vmatprep.subr.mxu0 0.0
        %1619 = vmatpush1.msra.mxu0 %v1485
        %1620 = vmatprep.subr.mxu0 0.0
        %1621 = vmatpush1.msra.mxu0 %v1486
        %1622 = vmatprep.subr.mxu0 0.0
        %1623 = vmatpush1.msra.mxu0 %v1487
        %1624 = vmatprep.subr.mxu0 0.0
        %1625 = vmatpush1.msra.mxu0 0.0
        %1626 = vmatprep.subr.mxu0 0.0
        %1627 = vmatpush1.msra.mxu0 0.0
        %1628 = vmatprep.subr.mxu0 0.0
        %1629 = vmatpush1.msra.mxu0 0.0
        %1630 = vmatprep.subr.mxu0 0.0
        %1631 = vmatpush1.msra.mxu0 0.0
        %1632 = vmatprep.subr.mxu0 0.0
        %1633 = vmatpush1.msra.mxu0 0.0
        %1634 = vmatprep.subr.mxu0 0.0
        %1635 = vmatpush1.msra.mxu0 0.0
        %1636 = vmatprep.subr.mxu0 0.0
        %1637 = vmatpush1.msra.mxu0 0.0
        %1638 = vmatprep.subr.mxu0 0.0
        %1639 = vmatpush1.msra.mxu0 0.0
        %1640 = vmatprep.subr.mxu0 0.0
        %1641 = vmatpush1.msra.mxu0 0.0
        %1642 = vmatprep.subr.mxu0 0.0
        %1643 = vmatpush1.msra.mxu0 0.0
        %1644 = vmatprep.subr.mxu0 0.0
        %1645 = vmatpush1.msra.mxu0 0.0
        %1646 = vmatprep.subr.mxu0 0.0
        %1647 = vmatpush1.msra.mxu0 0.0
        %1648 = vmatprep.subr.mxu0 0.0
        %1649 = vmatpush1.msra.mxu0 0.0
        %1650 = vmatprep.subr.mxu0 0.0
        %1651 = vmatpush1.msra.mxu0 0.0
        %1652 = vmatprep.subr.mxu0 0.0
        %1653 = vmatpush1.msra.mxu0 0.0
        %1654 = vmatprep.subr.mxu0 0.0
        %1655 = vmatpush1.msra.mxu0 0.0
        %1656 = vmatprep.mubr.f32.mxu0 0.0
        %1657 = vmatmul.mubr.f32.gmra.mrb[0].mxu0 %v1471
        %v1658 = vpop.f32.mrb[0].mxu0
        %v1659 = vadd.f32 %v1589, %v1658
        %v1660 = vpop.f32.mrb[0].mxu0
        %1661 = vdwg.mxu0
        %v1662 = vld [vmem:[%s182 + $0x1] sm:$0xf]
        %v1663 = vld [vmem:[%s392] sm:$0xff]
        %v1664 = vld [vmem:[%s392 + $0x8] sm:$0xff]
        %v1665 = vld [vmem:[%s392 + $0x10] sm:$0xff]
        %v1666 = vld [vmem:[%s392 + $0x18] sm:$0xff]
        %v1667 = vld [vmem:[%s392 + $0x20] sm:$0xff]
        %v1668 = vld [vmem:[%s392 + $0x28] sm:$0xff]
        %v1669 = vld [vmem:[%s392 + $0x30] sm:$0xff]
        %v1670 = vld [vmem:[%s392 + $0x38] sm:$0xff]
        %v1671 = vld [vmem:[%s392 + $0x40] sm:$0xff]
        %v1672 = vld [vmem:[%s392 + $0x48] sm:$0xff]
        %v1673 = vld [vmem:[%s392 + $0x50] sm:$0xff]
        %v1674 = vld [vmem:[%s392 + $0x58] sm:$0xff]
        %v1675 = vld [vmem:[%s392 + $0x60] sm:$0xff]
        %v1676 = vld [vmem:[%s392 + $0x68] sm:$0xff]
        %v1677 = vld [vmem:[%s392 + $0x70] sm:$0xff]
        %v1678 = vld [vmem:[%s392 + $0x78] sm:$0xff]
        %1679 = vmatprep.subr.mxu0 0.0
        %1680 = vmatpush1.msra.mxu0 %v1663
        %1681 = vmatprep.subr.mxu0 0.0
        %1682 = vmatpush1.msra.mxu0 %v1664
        %1683 = vmatprep.subr.mxu0 0.0
        %1684 = vmatpush1.msra.mxu0 %v1665
        %1685 = vmatprep.subr.mxu0 0.0
        %1686 = vmatpush1.msra.mxu0 %v1666
        %1687 = vmatprep.subr.mxu0 0.0
        %1688 = vmatpush1.msra.mxu0 %v1667
        %1689 = vmatprep.subr.mxu0 0.0
        %1690 = vmatpush1.msra.mxu0 %v1668
        %1691 = vmatprep.subr.mxu0 0.0
        %1692 = vmatpush1.msra.mxu0 %v1669
        %1693 = vmatprep.subr.mxu0 0.0
        %1694 = vmatpush1.msra.mxu0 %v1670
        %1695 = vmatprep.subr.mxu0 0.0
        %1696 = vmatpush1.msra.mxu0 %v1671
        %1697 = vmatprep.subr.mxu0 0.0
        %1698 = vmatpush1.msra.mxu0 %v1672
        %1699 = vmatprep.subr.mxu0 0.0
        %1700 = vmatpush1.msra.mxu0 %v1673
        %1701 = vmatprep.subr.mxu0 0.0
        %1702 = vmatpush1.msra.mxu0 %v1674
        %1703 = vmatprep.subr.mxu0 0.0
        %1704 = vmatpush1.msra.mxu0 %v1675
        %1705 = vmatprep.subr.mxu0 0.0
        %1706 = vmatpush1.msra.mxu0 %v1676
        %1707 = vmatprep.subr.mxu0 0.0
        %1708 = vmatpush1.msra.mxu0 %v1677
        %1709 = vmatprep.subr.mxu0 0.0
        %1710 = vmatpush1.msra.mxu0 %v1678
        %1711 = vmatprep.subr.mxu0 0.0
        %1712 = vmatpush1.msra.mxu0 0.0
        %1713 = vmatprep.subr.mxu0 0.0
        %1714 = vmatpush1.msra.mxu0 0.0
        %1715 = vmatprep.subr.mxu0 0.0
        %1716 = vmatpush1.msra.mxu0 0.0
        %1717 = vmatprep.subr.mxu0 0.0
        %1718 = vmatpush1.msra.mxu0 0.0
        %1719 = vmatprep.subr.mxu0 0.0
        %1720 = vmatpush1.msra.mxu0 0.0
        %1721 = vmatprep.subr.mxu0 0.0
        %1722 = vmatpush1.msra.mxu0 0.0
        %1723 = vmatprep.subr.mxu0 0.0
        %1724 = vmatpush1.msra.mxu0 0.0
        %1725 = vmatprep.subr.mxu0 0.0
        %1726 = vmatpush1.msra.mxu0 0.0
        %1727 = vmatprep.subr.mxu0 0.0
        %1728 = vmatpush1.msra.mxu0 0.0
        %1729 = vmatprep.subr.mxu0 0.0
        %1730 = vmatpush1.msra.mxu0 0.0
        %1731 = vmatprep.subr.mxu0 0.0
        %1732 = vmatpush1.msra.mxu0 0.0
        %1733 = vmatprep.subr.mxu0 0.0
        %1734 = vmatpush1.msra.mxu0 0.0
        %1735 = vmatprep.subr.mxu0 0.0
        %1736 = vmatpush1.msra.mxu0 0.0
        %1737 = vmatprep.subr.mxu0 0.0
        %1738 = vmatpush1.msra.mxu0 0.0
        %1739 = vmatprep.subr.mxu0 0.0
        %1740 = vmatpush1.msra.mxu0 0.0
        %1741 = vmatprep.subr.mxu0 0.0
        %1742 = vmatpush1.msra.mxu0 0.0
        %1743 = vmatprep.mubr.f32.mxu0 0.0
        %1744 = vmatmul.mubr.f32.gmra.mrb[0].mxu0 %v1662
        %v1745 = vpop.f32.mrb[0].mxu0
        %v1746 = vadd.f32 0.0, %v1745
        %v1747 = vpop.f32.mrb[0].mxu0
        %1748 = vdwg.mxu0
        %1749 = vmatprep.subr.mxu0 0.0
        %1750 = vmatpush1.msra.mxu0 %v1489
        %1751 = vmatprep.subr.mxu0 0.0
        %1752 = vmatpush1.msra.mxu0 %v1490
        %1753 = vmatprep.subr.mxu0 0.0
        %1754 = vmatpush1.msra.mxu0 %v1491
        %1755 = vmatprep.subr.mxu0 0.0
        %1756 = vmatpush1.msra.mxu0 %v1492
        %1757 = vmatprep.subr.mxu0 0.0
        %1758 = vmatpush1.msra.mxu0 %v1493
        %1759 = vmatprep.subr.mxu0 0.0
        %1760 = vmatpush1.msra.mxu0 %v1494
        %1761 = vmatprep.subr.mxu0 0.0
        %1762 = vmatpush1.msra.mxu0 %v1495
        %1763 = vmatprep.subr.mxu0 0.0
        %1764 = vmatpush1.msra.mxu0 %v1496
        %1765 = vmatprep.subr.mxu0 0.0
        %1766 = vmatpush1.msra.mxu0 %v1497
        %1767 = vmatprep.subr.mxu0 0.0
        %1768 = vmatpush1.msra.mxu0 %v1498
        %1769 = vmatprep.subr.mxu0 0.0
        %1770 = vmatpush1.msra.mxu0 %v1499
        %1771 = vmatprep.subr.mxu0 0.0
        %1772 = vmatpush1.msra.mxu0 %v1500
        %1773 = vmatprep.subr.mxu0 0.0
        %1774 = vmatpush1.msra.mxu0 %v1501
        %1775 = vmatprep.subr.mxu0 0.0
        %1776 = vmatpush1.msra.mxu0 %v1502
        %1777 = vmatprep.subr.mxu0 0.0
        %1778 = vmatpush1.msra.mxu0 %v1503
        %1779 = vmatprep.subr.mxu0 0.0
        %1780 = vmatpush1.msra.mxu0 %v1504
        %1781 = vmatprep.subr.mxu0 0.0
        %1782 = vmatpush1.msra.mxu0 0.0
        %1783 = vmatprep.subr.mxu0 0.0
        %1784 = vmatpush1.msra.mxu0 0.0
        %1785 = vmatprep.subr.mxu0 0.0
        %1786 = vmatpush1.msra.mxu0 0.0
        %1787 = vmatprep.subr.mxu0 0.0
        %1788 = vmatpush1.msra.mxu0 0.0
        %1789 = vmatprep.subr.mxu0 0.0
        %1790 = vmatpush1.msra.mxu0 0.0
        %1791 = vmatprep.subr.mxu0 0.0
        %1792 = vmatpush1.msra.mxu0 0.0
        %1793 = vmatprep.subr.mxu0 0.0
        %1794 = vmatpush1.msra.mxu0 0.0
        %1795 = vmatprep.subr.mxu0 0.0
        %1796 = vmatpush1.msra.mxu0 0.0
        %1797 = vmatprep.subr.mxu0 0.0
        %1798 = vmatpush1.msra.mxu0 0.0
        %1799 = vmatprep.subr.mxu0 0.0
        %1800 = vmatpush1.msra.mxu0 0.0
        %1801 = vmatprep.subr.mxu0 0.0
        %1802 = vmatpush1.msra.mxu0 0.0
        %1803 = vmatprep.subr.mxu0 0.0
        %1804 = vmatpush1.msra.mxu0 0.0
        %1805 = vmatprep.subr.mxu0 0.0
        %1806 = vmatpush1.msra.mxu0 0.0
        %1807 = vmatprep.subr.mxu0 0.0
        %1808 = vmatpush1.msra.mxu0 0.0
        %1809 = vmatprep.subr.mxu0 0.0
        %1810 = vmatpush1.msra.mxu0 0.0
        %1811 = vmatprep.subr.mxu0 0.0
        %1812 = vmatpush1.msra.mxu0 0.0
        %1813 = vmatprep.mubr.f32.mxu0 0.0
        %1814 = vmatmul.mubr.f32.gmra.mrb[0].mxu0 %v1488
        %v1815 = vpop.f32.mrb[0].mxu0
        %v1816 = vadd.f32 %v1746, %v1815
        %v1817 = vpop.f32.mrb[0].mxu0
        %1818 = vdwg.mxu0
        %v1819 = vld [vmem:[#allocation2 + $0x2] sm:$0xf]
        %v1820 = vld [vmem:[%s550] sm:$0xff]
        %v1821 = vld [vmem:[%s550 + $0x8] sm:$0xff]
        %v1822 = vld [vmem:[%s550 + $0x10] sm:$0xff]
        %v1823 = vld [vmem:[%s550 + $0x18] sm:$0xff]
        %v1824 = vld [vmem:[%s550 + $0x20] sm:$0xff]
        %v1825 = vld [vmem:[%s550 + $0x28] sm:$0xff]
        %v1826 = vld [vmem:[%s550 + $0x30] sm:$0xff]
        %v1827 = vld [vmem:[%s550 + $0x38] sm:$0xff]
        %v1828 = vld [vmem:[%s550 + $0x40] sm:$0xff]
        %v1829 = vld [vmem:[%s550 + $0x48] sm:$0xff]
        %v1830 = vld [vmem:[%s550 + $0x50] sm:$0xff]
        %v1831 = vld [vmem:[%s550 + $0x58] sm:$0xff]
        %v1832 = vld [vmem:[%s550 + $0x60] sm:$0xff]
        %v1833 = vld [vmem:[%s550 + $0x68] sm:$0xff]
        %v1834 = vld [vmem:[%s550 + $0x70] sm:$0xff]
        %v1835 = vld [vmem:[%s550 + $0x78] sm:$0xff]
        %1836 = vmatprep.subr.mxu0 0.0
        %1837 = vmatpush1.msra.mxu0 %v1820
        %1838 = vmatprep.subr.mxu0 0.0
        %1839 = vmatpush1.msra.mxu0 %v1821
        %1840 = vmatprep.subr.mxu0 0.0
        %1841 = vmatpush1.msra.mxu0 %v1822
        %1842 = vmatprep.subr.mxu0 0.0
        %1843 = vmatpush1.msra.mxu0 %v1823
        %1844 = vmatprep.subr.mxu0 0.0
        %1845 = vmatpush1.msra.mxu0 %v1824
        %1846 = vmatprep.subr.mxu0 0.0
        %1847 = vmatpush1.msra.mxu0 %v1825
        %1848 = vmatprep.subr.mxu0 0.0
        %1849 = vmatpush1.msra.mxu0 %v1826
        %1850 = vmatprep.subr.mxu0 0.0
        %1851 = vmatpush1.msra.mxu0 %v1827
        %1852 = vmatprep.subr.mxu0 0.0
        %1853 = vmatpush1.msra.mxu0 %v1828
        %1854 = vmatprep.subr.mxu0 0.0
        %1855 = vmatpush1.msra.mxu0 %v1829
        %1856 = vmatprep.subr.mxu0 0.0
        %1857 = vmatpush1.msra.mxu0 %v1830
        %1858 = vmatprep.subr.mxu0 0.0
        %1859 = vmatpush1.msra.mxu0 %v1831
        %1860 = vmatprep.subr.mxu0 0.0
        %1861 = vmatpush1.msra.mxu0 %v1832
        %1862 = vmatprep.subr.mxu0 0.0
        %1863 = vmatpush1.msra.mxu0 %v1833
        %1864 = vmatprep.subr.mxu0 0.0
        %1865 = vmatpush1.msra.mxu0 %v1834
        %1866 = vmatprep.subr.mxu0 0.0
        %1867 = vmatpush1.msra.mxu0 %v1835
        %1868 = vmatprep.subr.mxu0 0.0
        %1869 = vmatpush1.msra.mxu0 0.0
        %1870 = vmatprep.subr.mxu0 0.0
        %1871 = vmatpush1.msra.mxu0 0.0
        %1872 = vmatprep.subr.mxu0 0.0
        %1873 = vmatpush1.msra.mxu0 0.0
        %1874 = vmatprep.subr.mxu0 0.0
        %1875 = vmatpush1.msra.mxu0 0.0
        %1876 = vmatprep.subr.mxu0 0.0
        %1877 = vmatpush1.msra.mxu0 0.0
        %1878 = vmatprep.subr.mxu0 0.0
        %1879 = vmatpush1.msra.mxu0 0.0
        %1880 = vmatprep.subr.mxu0 0.0
        %1881 = vmatpush1.msra.mxu0 0.0
        %1882 = vmatprep.subr.mxu0 0.0
        %1883 = vmatpush1.msra.mxu0 0.0
        %1884 = vmatprep.subr.mxu0 0.0
        %1885 = vmatpush1.msra.mxu0 0.0
        %1886 = vmatprep.subr.mxu0 0.0
        %1887 = vmatpush1.msra.mxu0 0.0
        %1888 = vmatprep.subr.mxu0 0.0
        %1889 = vmatpush1.msra.mxu0 0.0
        %1890 = vmatprep.subr.mxu0 0.0
        %1891 = vmatpush1.msra.mxu0 0.0
        %1892 = vmatprep.subr.mxu0 0.0
        %1893 = vmatpush1.msra.mxu0 0.0
        %1894 = vmatprep.subr.mxu0 0.0
        %1895 = vmatpush1.msra.mxu0 0.0
        %1896 = vmatprep.subr.mxu0 0.0
        %1897 = vmatpush1.msra.mxu0 0.0
        %1898 = vmatprep.subr.mxu0 0.0
        %1899 = vmatpush1.msra.mxu0 0.0
        %1900 = vmatprep.mubr.f32.mxu0 0.0
        %1901 = vmatmul.mubr.f32.gmra.mrb[0].mxu0 %v1819
        %v1902 = vpop.f32.mrb[0].mxu0
        %v1903 = vadd.f32 0.0, %v1902
        %v1904 = vpop.f32.mrb[0].mxu0
        %1905 = vdwg.mxu0
        %v1906 = vadd.f32 %v1659, %v1903
        %v1907 = vld [vmem:[%s182 + $0x2] sm:$0xf]
        %v1908 = vld [vmem:[%s639] sm:$0xff]
        %v1909 = vld [vmem:[%s639 + $0x8] sm:$0xff]
        %v1910 = vld [vmem:[%s639 + $0x10] sm:$0xff]
        %v1911 = vld [vmem:[%s639 + $0x18] sm:$0xff]
        %v1912 = vld [vmem:[%s639 + $0x20] sm:$0xff]
        %v1913 = vld [vmem:[%s639 + $0x28] sm:$0xff]
        %v1914 = vld [vmem:[%s639 + $0x30] sm:$0xff]
        %v1915 = vld [vmem:[%s639 + $0x38] sm:$0xff]
        %v1916 = vld [vmem:[%s639 + $0x40] sm:$0xff]
        %v1917 = vld [vmem:[%s639 + $0x48] sm:$0xff]
        %v1918 = vld [vmem:[%s639 + $0x50] sm:$0xff]
        %v1919 = vld [vmem:[%s639 + $0x58] sm:$0xff]
        %v1920 = vld [vmem:[%s639 + $0x60] sm:$0xff]
        %v1921 = vld [vmem:[%s639 + $0x68] sm:$0xff]
        %v1922 = vld [vmem:[%s639 + $0x70] sm:$0xff]
        %v1923 = vld [vmem:[%s639 + $0x78] sm:$0xff]
        %1924 = vmatprep.subr.mxu0 0.0
        %1925 = vmatpush1.msra.mxu0 %v1908
        %1926 = vmatprep.subr.mxu0 0.0
        %1927 = vmatpush1.msra.mxu0 %v1909
        %1928 = vmatprep.subr.mxu0 0.0
        %1929 = vmatpush1.msra.mxu0 %v1910
        %1930 = vmatprep.subr.mxu0 0.0
        %1931 = vmatpush1.msra.mxu0 %v1911
        %1932 = vmatprep.subr.mxu0 0.0
        %1933 = vmatpush1.msra.mxu0 %v1912
        %1934 = vmatprep.subr.mxu0 0.0
        %1935 = vmatpush1.msra.mxu0 %v1913
        %1936 = vmatprep.subr.mxu0 0.0
        %1937 = vmatpush1.msra.mxu0 %v1914
        %1938 = vmatprep.subr.mxu0 0.0
        %1939 = vmatpush1.msra.mxu0 %v1915
        %1940 = vmatprep.subr.mxu0 0.0
        %1941 = vmatpush1.msra.mxu0 %v1916
        %1942 = vmatprep.subr.mxu0 0.0
        %1943 = vmatpush1.msra.mxu0 %v1917
        %1944 = vmatprep.subr.mxu0 0.0
        %1945 = vmatpush1.msra.mxu0 %v1918
        %1946 = vmatprep.subr.mxu0 0.0
        %1947 = vmatpush1.msra.mxu0 %v1919
        %1948 = vmatprep.subr.mxu0 0.0
        %1949 = vmatpush1.msra.mxu0 %v1920
        %1950 = vmatprep.subr.mxu0 0.0
        %1951 = vmatpush1.msra.mxu0 %v1921
        %1952 = vmatprep.subr.mxu0 0.0
        %1953 = vmatpush1.msra.mxu0 %v1922
        %1954 = vmatprep.subr.mxu0 0.0
        %1955 = vmatpush1.msra.mxu0 %v1923
        %1956 = vmatprep.subr.mxu0 0.0
        %1957 = vmatpush1.msra.mxu0 0.0
        %1958 = vmatprep.subr.mxu0 0.0
        %1959 = vmatpush1.msra.mxu0 0.0
        %1960 = vmatprep.subr.mxu0 0.0
        %1961 = vmatpush1.msra.mxu0 0.0
        %1962 = vmatprep.subr.mxu0 0.0
        %1963 = vmatpush1.msra.mxu0 0.0
        %1964 = vmatprep.subr.mxu0 0.0
        %1965 = vmatpush1.msra.mxu0 0.0
        %1966 = vmatprep.subr.mxu0 0.0
        %1967 = vmatpush1.msra.mxu0 0.0
        %1968 = vmatprep.subr.mxu0 0.0
        %1969 = vmatpush1.msra.mxu0 0.0
        %1970 = vmatprep.subr.mxu0 0.0
        %1971 = vmatpush1.msra.mxu0 0.0
        %1972 = vmatprep.subr.mxu0 0.0
        %1973 = vmatpush1.msra.mxu0 0.0
        %1974 = vmatprep.subr.mxu0 0.0
        %1975 = vmatpush1.msra.mxu0 0.0
        %1976 = vmatprep.subr.mxu0 0.0
        %1977 = vmatpush1.msra.mxu0 0.0
        %1978 = vmatprep.subr.mxu0 0.0
        %1979 = vmatpush1.msra.mxu0 0.0
        %1980 = vmatprep.subr.mxu0 0.0
        %1981 = vmatpush1.msra.mxu0 0.0
        %1982 = vmatprep.subr.mxu0 0.0
        %1983 = vmatpush1.msra.mxu0 0.0
        %1984 = vmatprep.subr.mxu0 0.0
        %1985 = vmatpush1.msra.mxu0 0.0
        %1986 = vmatprep.subr.mxu0 0.0
        %1987 = vmatpush1.msra.mxu0 0.0
        %1988 = vmatprep.mubr.f32.mxu0 0.0
        %1989 = vmatmul.mubr.f32.gmra.mrb[0].mxu0 %v1907
        %v1990 = vpop.f32.mrb[0].mxu0
        %v1991 = vadd.f32 0.0, %v1990
        %v1992 = vpop.f32.mrb[0].mxu0
        %1993 = vdwg.mxu0
        %v1994 = vadd.f32 %v1816, %v1991
        %v1995 = vld [vmem:[#allocation2 + $0x3] sm:$0xf]
        %v1996 = vld [vmem:[%s728] sm:$0xff]
        %v1997 = vld [vmem:[%s728 + $0x8] sm:$0xff]
        %v1998 = vld [vmem:[%s728 + $0x10] sm:$0xff]
        %v1999 = vld [vmem:[%s728 + $0x18] sm:$0xff]
        %v2000 = vld [vmem:[%s728 + $0x20] sm:$0xff]
        %v2001 = vld [vmem:[%s728 + $0x28] sm:$0xff]
        %v2002 = vld [vmem:[%s728 + $0x30] sm:$0xff]
        %v2003 = vld [vmem:[%s728 + $0x38] sm:$0xff]
        %v2004 = vld [vmem:[%s728 + $0x40] sm:$0xff]
        %v2005 = vld [vmem:[%s728 + $0x48] sm:$0xff]
        %v2006 = vld [vmem:[%s728 + $0x50] sm:$0xff]
        %v2007 = vld [vmem:[%s728 + $0x58] sm:$0xff]
        %v2008 = vld [vmem:[%s728 + $0x60] sm:$0xff]
        %v2009 = vld [vmem:[%s728 + $0x68] sm:$0xff]
        %v2010 = vld [vmem:[%s728 + $0x70] sm:$0xff]
        %v2011 = vld [vmem:[%s728 + $0x78] sm:$0xff]
        %2012 = vmatprep.subr.mxu0 0.0
        %2013 = vmatpush1.msra.mxu0 %v1996
        %2014 = vmatprep.subr.mxu0 0.0
        %2015 = vmatpush1.msra.mxu0 %v1997
        %2016 = vmatprep.subr.mxu0 0.0
        %2017 = vmatpush1.msra.mxu0 %v1998
        %2018 = vmatprep.subr.mxu0 0.0
        %2019 = vmatpush1.msra.mxu0 %v1999
        %2020 = vmatprep.subr.mxu0 0.0
        %2021 = vmatpush1.msra.mxu0 %v2000
        %2022 = vmatprep.subr.mxu0 0.0
        %2023 = vmatpush1.msra.mxu0 %v2001
        %2024 = vmatprep.subr.mxu0 0.0
        %2025 = vmatpush1.msra.mxu0 %v2002
        %2026 = vmatprep.subr.mxu0 0.0
        %2027 = vmatpush1.msra.mxu0 %v2003
        %2028 = vmatprep.subr.mxu0 0.0
        %2029 = vmatpush1.msra.mxu0 %v2004
        %2030 = vmatprep.subr.mxu0 0.0
        %2031 = vmatpush1.msra.mxu0 %v2005
        %2032 = vmatprep.subr.mxu0 0.0
        %2033 = vmatpush1.msra.mxu0 %v2006
        %2034 = vmatprep.subr.mxu0 0.0
        %2035 = vmatpush1.msra.mxu0 %v2007
        %2036 = vmatprep.subr.mxu0 0.0
        %2037 = vmatpush1.msra.mxu0 %v2008
        %2038 = vmatprep.subr.mxu0 0.0
        %2039 = vmatpush1.msra.mxu0 %v2009
        %2040 = vmatprep.subr.mxu0 0.0
        %2041 = vmatpush1.msra.mxu0 %v2010
        %2042 = vmatprep.subr.mxu0 0.0
        %2043 = vmatpush1.msra.mxu0 %v2011
        %2044 = vmatprep.subr.mxu0 0.0
        %2045 = vmatpush1.msra.mxu0 0.0
        %2046 = vmatprep.subr.mxu0 0.0
        %2047 = vmatpush1.msra.mxu0 0.0
        %2048 = vmatprep.subr.mxu0 0.0
        %2049 = vmatpush1.msra.mxu0 0.0
        %2050 = vmatprep.subr.mxu0 0.0
        %2051 = vmatpush1.msra.mxu0 0.0
        %2052 = vmatprep.subr.mxu0 0.0
        %2053 = vmatpush1.msra.mxu0 0.0
        %2054 = vmatprep.subr.mxu0 0.0
        %2055 = vmatpush1.msra.mxu0 0.0
        %2056 = vmatprep.subr.mxu0 0.0
        %2057 = vmatpush1.msra.mxu0 0.0
        %2058 = vmatprep.subr.mxu0 0.0
        %2059 = vmatpush1.msra.mxu0 0.0
        %2060 = vmatprep.subr.mxu0 0.0
        %2061 = vmatpush1.msra.mxu0 0.0
        %2062 = vmatprep.subr.mxu0 0.0
        %2063 = vmatpush1.msra.mxu0 0.0
        %2064 = vmatprep.subr.mxu0 0.0
        %2065 = vmatpush1.msra.mxu0 0.0
        %2066 = vmatprep.subr.mxu0 0.0
        %2067 = vmatpush1.msra.mxu0 0.0
        %2068 = vmatprep.subr.mxu0 0.0
        %2069 = vmatpush1.msra.mxu0 0.0
        %2070 = vmatprep.subr.mxu0 0.0
        %2071 = vmatpush1.msra.mxu0 0.0
        %2072 = vmatprep.subr.mxu0 0.0
        %2073 = vmatpush1.msra.mxu0 0.0
        %2074 = vmatprep.subr.mxu0 0.0
        %2075 = vmatpush1.msra.mxu0 0.0
        %2076 = vmatprep.mubr.f32.mxu0 0.0
        %2077 = vmatmul.mubr.f32.gmra.mrb[0].mxu0 %v1995
        %v2078 = vpop.f32.mrb[0].mxu0
        %v2079 = vadd.f32 0.0, %v2078
        %v2080 = vpop.f32.mrb[0].mxu0
        %2081 = vdwg.mxu0
        %v2082 = vadd.f32 %v1906, %v2079
        %v2083 = vld [vmem:[%s182 + $0x3] sm:$0xf]
        %v2084 = vld [vmem:[%s817] sm:$0xff]
        %v2085 = vld [vmem:[%s817 + $0x8] sm:$0xff]
        %v2086 = vld [vmem:[%s817 + $0x10] sm:$0xff]
        %v2087 = vld [vmem:[%s817 + $0x18] sm:$0xff]
        %v2088 = vld [vmem:[%s817 + $0x20] sm:$0xff]
        %v2089 = vld [vmem:[%s817 + $0x28] sm:$0xff]
        %v2090 = vld [vmem:[%s817 + $0x30] sm:$0xff]
        %v2091 = vld [vmem:[%s817 + $0x38] sm:$0xff]
        %v2092 = vld [vmem:[%s817 + $0x40] sm:$0xff]
        %v2093 = vld [vmem:[%s817 + $0x48] sm:$0xff]
        %v2094 = vld [vmem:[%s817 + $0x50] sm:$0xff]
        %v2095 = vld [vmem:[%s817 + $0x58] sm:$0xff]
        %v2096 = vld [vmem:[%s817 + $0x60] sm:$0xff]
        %v2097 = vld [vmem:[%s817 + $0x68] sm:$0xff]
        %v2098 = vld [vmem:[%s817 + $0x70] sm:$0xff]
        %v2099 = vld [vmem:[%s817 + $0x78] sm:$0xff]
        %2100 = vmatprep.subr.mxu0 0.0
        %2101 = vmatpush1.msra.mxu0 %v2084
        %2102 = vmatprep.subr.mxu0 0.0
        %2103 = vmatpush1.msra.mxu0 %v2085
        %2104 = vmatprep.subr.mxu0 0.0
        %2105 = vmatpush1.msra.mxu0 %v2086
        %2106 = vmatprep.subr.mxu0 0.0
        %2107 = vmatpush1.msra.mxu0 %v2087
        %2108 = vmatprep.subr.mxu0 0.0
        %2109 = vmatpush1.msra.mxu0 %v2088
        %2110 = vmatprep.subr.mxu0 0.0
        %2111 = vmatpush1.msra.mxu0 %v2089
        %2112 = vmatprep.subr.mxu0 0.0
        %2113 = vmatpush1.msra.mxu0 %v2090
        %2114 = vmatprep.subr.mxu0 0.0
        %2115 = vmatpush1.msra.mxu0 %v2091
        %2116 = vmatprep.subr.mxu0 0.0
        %2117 = vmatpush1.msra.mxu0 %v2092
        %2118 = vmatprep.subr.mxu0 0.0
        %2119 = vmatpush1.msra.mxu0 %v2093
        %2120 = vmatprep.subr.mxu0 0.0
        %2121 = vmatpush1.msra.mxu0 %v2094
        %2122 = vmatprep.subr.mxu0 0.0
        %2123 = vmatpush1.msra.mxu0 %v2095
        %2124 = vmatprep.subr.mxu0 0.0
        %2125 = vmatpush1.msra.mxu0 %v2096
        %2126 = vmatprep.subr.mxu0 0.0
        %2127 = vmatpush1.msra.mxu0 %v2097
        %2128 = vmatprep.subr.mxu0 0.0
        %2129 = vmatpush1.msra.mxu0 %v2098
        %2130 = vmatprep.subr.mxu0 0.0
        %2131 = vmatpush1.msra.mxu0 %v2099
        %2132 = vmatprep.subr.mxu0 0.0
        %2133 = vmatpush1.msra.mxu0 0.0
        %2134 = vmatprep.subr.mxu0 0.0
        %2135 = vmatpush1.msra.mxu0 0.0
        %2136 = vmatprep.subr.mxu0 0.0
        %2137 = vmatpush1.msra.mxu0 0.0
        %2138 = vmatprep.subr.mxu0 0.0
        %2139 = vmatpush1.msra.mxu0 0.0
        %2140 = vmatprep.subr.mxu0 0.0
        %2141 = vmatpush1.msra.mxu0 0.0
        %2142 = vmatprep.subr.mxu0 0.0
        %2143 = vmatpush1.msra.mxu0 0.0
        %2144 = vmatprep.subr.mxu0 0.0
        %2145 = vmatpush1.msra.mxu0 0.0
        %2146 = vmatprep.subr.mxu0 0.0
        %2147 = vmatpush1.msra.mxu0 0.0
        %2148 = vmatprep.subr.mxu0 0.0
        %2149 = vmatpush1.msra.mxu0 0.0
        %2150 = vmatprep.subr.mxu0 0.0
        %2151 = vmatpush1.msra.mxu0 0.0
        %2152 = vmatprep.subr.mxu0 0.0
        %2153 = vmatpush1.msra.mxu0 0.0
        %2154 = vmatprep.subr.mxu0 0.0
        %2155 = vmatpush1.msra.mxu0 0.0
        %2156 = vmatprep.subr.mxu0 0.0
        %2157 = vmatpush1.msra.mxu0 0.0
        %2158 = vmatprep.subr.mxu0 0.0
        %2159 = vmatpush1.msra.mxu0 0.0
        %2160 = vmatprep.subr.mxu0 0.0
        %2161 = vmatpush1.msra.mxu0 0.0
        %2162 = vmatprep.subr.mxu0 0.0
        %2163 = vmatpush1.msra.mxu0 0.0
        %2164 = vmatprep.mubr.f32.mxu0 0.0
        %2165 = vmatmul.mubr.f32.gmra.mrb[0].mxu0 %v2083
        %v2166 = vpop.f32.mrb[0].mxu0
        %v2167 = vadd.f32 0.0, %v2166
        %v2168 = vpop.f32.mrb[0].mxu0
        %2169 = vdwg.mxu0
        %v2170 = vadd.f32 %v1994, %v2167
        %v2171 = vld [vmem:[#allocation2 + $0x4] sm:$0xf]
        %v2172 = vld [vmem:[%s906] sm:$0xff]
        %v2173 = vld [vmem:[%s906 + $0x8] sm:$0xff]
        %v2174 = vld [vmem:[%s906 + $0x10] sm:$0xff]
        %v2175 = vld [vmem:[%s906 + $0x18] sm:$0xff]
        %v2176 = vld [vmem:[%s906 + $0x20] sm:$0xff]
        %v2177 = vld [vmem:[%s906 + $0x28] sm:$0xff]
        %v2178 = vld [vmem:[%s906 + $0x30] sm:$0xff]
        %v2179 = vld [vmem:[%s906 + $0x38] sm:$0xff]
        %v2180 = vld [vmem:[%s906 + $0x40] sm:$0xff]
        %v2181 = vld [vmem:[%s906 + $0x48] sm:$0xff]
        %v2182 = vld [vmem:[%s906 + $0x50] sm:$0xff]
        %v2183 = vld [vmem:[%s906 + $0x58] sm:$0xff]
        %v2184 = vld [vmem:[%s906 + $0x60] sm:$0xff]
        %v2185 = vld [vmem:[%s906 + $0x68] sm:$0xff]
        %v2186 = vld [vmem:[%s906 + $0x70] sm:$0xff]
        %v2187 = vld [vmem:[%s906 + $0x78] sm:$0xff]
        %2188 = vmatprep.subr.mxu0 0.0
        %2189 = vmatpush1.msra.mxu0 %v2172
        %2190 = vmatprep.subr.mxu0 0.0
        %2191 = vmatpush1.msra.mxu0 %v2173
        %2192 = vmatprep.subr.mxu0 0.0
        %2193 = vmatpush1.msra.mxu0 %v2174
        %2194 = vmatprep.subr.mxu0 0.0
        %2195 = vmatpush1.msra.mxu0 %v2175
        %2196 = vmatprep.subr.mxu0 0.0
        %2197 = vmatpush1.msra.mxu0 %v2176
        %2198 = vmatprep.subr.mxu0 0.0
        %2199 = vmatpush1.msra.mxu0 %v2177
        %2200 = vmatprep.subr.mxu0 0.0
        %2201 = vmatpush1.msra.mxu0 %v2178
        %2202 = vmatprep.subr.mxu0 0.0
        %2203 = vmatpush1.msra.mxu0 %v2179
        %2204 = vmatprep.subr.mxu0 0.0
        %2205 = vmatpush1.msra.mxu0 %v2180
        %2206 = vmatprep.subr.mxu0 0.0
        %2207 = vmatpush1.msra.mxu0 %v2181
        %2208 = vmatprep.subr.mxu0 0.0
        %2209 = vmatpush1.msra.mxu0 %v2182
        %2210 = vmatprep.subr.mxu0 0.0
        %2211 = vmatpush1.msra.mxu0 %v2183
        %2212 = vmatprep.subr.mxu0 0.0
        %2213 = vmatpush1.msra.mxu0 %v2184
        %2214 = vmatprep.subr.mxu0 0.0
        %2215 = vmatpush1.msra.mxu0 %v2185
        %2216 = vmatprep.subr.mxu0 0.0
        %2217 = vmatpush1.msra.mxu0 %v2186
        %2218 = vmatprep.subr.mxu0 0.0
        %2219 = vmatpush1.msra.mxu0 %v2187
        %2220 = vmatprep.subr.mxu0 0.0
        %2221 = vmatpush1.msra.mxu0 0.0
        %2222 = vmatprep.subr.mxu0 0.0
        %2223 = vmatpush1.msra.mxu0 0.0
        %2224 = vmatprep.subr.mxu0 0.0
        %2225 = vmatpush1.msra.mxu0 0.0
        %2226 = vmatprep.subr.mxu0 0.0
        %2227 = vmatpush1.msra.mxu0 0.0
        %2228 = vmatprep.subr.mxu0 0.0
        %2229 = vmatpush1.msra.mxu0 0.0
        %2230 = vmatprep.subr.mxu0 0.0
        %2231 = vmatpush1.msra.mxu0 0.0
        %2232 = vmatprep.subr.mxu0 0.0
        %2233 = vmatpush1.msra.mxu0 0.0
        %2234 = vmatprep.subr.mxu0 0.0
        %2235 = vmatpush1.msra.mxu0 0.0
        %2236 = vmatprep.subr.mxu0 0.0
        %2237 = vmatpush1.msra.mxu0 0.0
        %2238 = vmatprep.subr.mxu0 0.0
        %2239 = vmatpush1.msra.mxu0 0.0
        %2240 = vmatprep.subr.mxu0 0.0
        %2241 = vmatpush1.msra.mxu0 0.0
        %2242 = vmatprep.subr.mxu0 0.0
        %2243 = vmatpush1.msra.mxu0 0.0
        %2244 = vmatprep.subr.mxu0 0.0
        %2245 = vmatpush1.msra.mxu0 0.0
        %2246 = vmatprep.subr.mxu0 0.0
        %2247 = vmatpush1.msra.mxu0 0.0
        %2248 = vmatprep.subr.mxu0 0.0
        %2249 = vmatpush1.msra.mxu0 0.0
        %2250 = vmatprep.subr.mxu0 0.0
        %2251 = vmatpush1.msra.mxu0 0.0
        %2252 = vmatprep.mubr.f32.mxu0 0.0
        %2253 = vmatmul.mubr.f32.gmra.mrb[0].mxu0 %v2171
        %v2254 = vpop.f32.mrb[0].mxu0
        %v2255 = vadd.f32 0.0, %v2254
        %v2256 = vpop.f32.mrb[0].mxu0
        %2257 = vdwg.mxu0
        %v2258 = vadd.f32 %v2082, %v2255
        %v2259 = vld [vmem:[%s182 + $0x4] sm:$0xf]
        %v2260 = vld [vmem:[%s995] sm:$0xff]
        %v2261 = vld [vmem:[%s995 + $0x8] sm:$0xff]
        %v2262 = vld [vmem:[%s995 + $0x10] sm:$0xff]
        %v2263 = vld [vmem:[%s995 + $0x18] sm:$0xff]
        %v2264 = vld [vmem:[%s995 + $0x20] sm:$0xff]
        %v2265 = vld [vmem:[%s995 + $0x28] sm:$0xff]
        %v2266 = vld [vmem:[%s995 + $0x30] sm:$0xff]
        %v2267 = vld [vmem:[%s995 + $0x38] sm:$0xff]
        %v2268 = vld [vmem:[%s995 + $0x40] sm:$0xff]
        %v2269 = vld [vmem:[%s995 + $0x48] sm:$0xff]
        %v2270 = vld [vmem:[%s995 + $0x50] sm:$0xff]
        %v2271 = vld [vmem:[%s995 + $0x58] sm:$0xff]
        %v2272 = vld [vmem:[%s995 + $0x60] sm:$0xff]
        %v2273 = vld [vmem:[%s995 + $0x68] sm:$0xff]
        %v2274 = vld [vmem:[%s995 + $0x70] sm:$0xff]
        %v2275 = vld [vmem:[%s995 + $0x78] sm:$0xff]
        %2276 = vmatprep.subr.mxu0 0.0
        %2277 = vmatpush1.msra.mxu0 %v2260
        %2278 = vmatprep.subr.mxu0 0.0
        %2279 = vmatpush1.msra.mxu0 %v2261
        %2280 = vmatprep.subr.mxu0 0.0
        %2281 = vmatpush1.msra.mxu0 %v2262
        %2282 = vmatprep.subr.mxu0 0.0
        %2283 = vmatpush1.msra.mxu0 %v2263
        %2284 = vmatprep.subr.mxu0 0.0
        %2285 = vmatpush1.msra.mxu0 %v2264
        %2286 = vmatprep.subr.mxu0 0.0
        %2287 = vmatpush1.msra.mxu0 %v2265
        %2288 = vmatprep.subr.mxu0 0.0
        %2289 = vmatpush1.msra.mxu0 %v2266
        %2290 = vmatprep.subr.mxu0 0.0
        %2291 = vmatpush1.msra.mxu0 %v2267
        %2292 = vmatprep.subr.mxu0 0.0
        %2293 = vmatpush1.msra.mxu0 %v2268
        %2294 = vmatprep.subr.mxu0 0.0
        %2295 = vmatpush1.msra.mxu0 %v2269
        %2296 = vmatprep.subr.mxu0 0.0
        %2297 = vmatpush1.msra.mxu0 %v2270
        %2298 = vmatprep.subr.mxu0 0.0
        %2299 = vmatpush1.msra.mxu0 %v2271
        %2300 = vmatprep.subr.mxu0 0.0
        %2301 = vmatpush1.msra.mxu0 %v2272
        %2302 = vmatprep.subr.mxu0 0.0
        %2303 = vmatpush1.msra.mxu0 %v2273
        %2304 = vmatprep.subr.mxu0 0.0
        %2305 = vmatpush1.msra.mxu0 %v2274
        %2306 = vmatprep.subr.mxu0 0.0
        %2307 = vmatpush1.msra.mxu0 %v2275
        %2308 = vmatprep.subr.mxu0 0.0
        %2309 = vmatpush1.msra.mxu0 0.0
        %2310 = vmatprep.subr.mxu0 0.0
        %2311 = vmatpush1.msra.mxu0 0.0
        %2312 = vmatprep.subr.mxu0 0.0
        %2313 = vmatpush1.msra.mxu0 0.0
        %2314 = vmatprep.subr.mxu0 0.0
        %2315 = vmatpush1.msra.mxu0 0.0
        %2316 = vmatprep.subr.mxu0 0.0
        %2317 = vmatpush1.msra.mxu0 0.0
        %2318 = vmatprep.subr.mxu0 0.0
        %2319 = vmatpush1.msra.mxu0 0.0
        %2320 = vmatprep.subr.mxu0 0.0
        %2321 = vmatpush1.msra.mxu0 0.0
        %2322 = vmatprep.subr.mxu0 0.0
        %2323 = vmatpush1.msra.mxu0 0.0
        %2324 = vmatprep.subr.mxu0 0.0
        %2325 = vmatpush1.msra.mxu0 0.0
        %2326 = vmatprep.subr.mxu0 0.0
        %2327 = vmatpush1.msra.mxu0 0.0
        %2328 = vmatprep.subr.mxu0 0.0
        %2329 = vmatpush1.msra.mxu0 0.0
        %2330 = vmatprep.subr.mxu0 0.0
        %2331 = vmatpush1.msra.mxu0 0.0
        %2332 = vmatprep.subr.mxu0 0.0
        %2333 = vmatpush1.msra.mxu0 0.0
        %2334 = vmatprep.subr.mxu0 0.0
        %2335 = vmatpush1.msra.mxu0 0.0
        %2336 = vmatprep.subr.mxu0 0.0
        %2337 = vmatpush1.msra.mxu0 0.0
        %2338 = vmatprep.subr.mxu0 0.0
        %2339 = vmatpush1.msra.mxu0 0.0
        %2340 = vmatprep.mubr.f32.mxu0 0.0
        %2341 = vmatmul.mubr.f32.gmra.mrb[0].mxu0 %v2259
        %v2342 = vpop.f32.mrb[0].mxu0
        %v2343 = vadd.f32 0.0, %v2342
        %v2344 = vpop.f32.mrb[0].mxu0
        %2345 = vdwg.mxu0
        %v2346 = vadd.f32 %v2170, %v2343
        %v2347 = vld [vmem:[#allocation2 + $0x5] sm:$0xf]
        %v2348 = vld [vmem:[%s1084] sm:$0xff]
        %v2349 = vld [vmem:[%s1084 + $0x8] sm:$0xff]
        %v2350 = vld [vmem:[%s1084 + $0x10] sm:$0xff]
        %v2351 = vld [vmem:[%s1084 + $0x18] sm:$0xff]
        %v2352 = vld [vmem:[%s1084 + $0x20] sm:$0xff]
        %v2353 = vld [vmem:[%s1084 + $0x28] sm:$0xff]
        %v2354 = vld [vmem:[%s1084 + $0x30] sm:$0xff]
        %v2355 = vld [vmem:[%s1084 + $0x38] sm:$0xff]
        %v2356 = vld [vmem:[%s1084 + $0x40] sm:$0xff]
        %v2357 = vld [vmem:[%s1084 + $0x48] sm:$0xff]
        %v2358 = vld [vmem:[%s1084 + $0x50] sm:$0xff]
        %v2359 = vld [vmem:[%s1084 + $0x58] sm:$0xff]
        %v2360 = vld [vmem:[%s1084 + $0x60] sm:$0xff]
        %v2361 = vld [vmem:[%s1084 + $0x68] sm:$0xff]
        %v2362 = vld [vmem:[%s1084 + $0x70] sm:$0xff]
        %v2363 = vld [vmem:[%s1084 + $0x78] sm:$0xff]
        %2364 = vmatprep.subr.mxu0 0.0
        %2365 = vmatpush1.msra.mxu0 %v2348
        %2366 = vmatprep.subr.mxu0 0.0
        %2367 = vmatpush1.msra.mxu0 %v2349
        %2368 = vmatprep.subr.mxu0 0.0
        %2369 = vmatpush1.msra.mxu0 %v2350
        %2370 = vmatprep.subr.mxu0 0.0
        %2371 = vmatpush1.msra.mxu0 %v2351
        %2372 = vmatprep.subr.mxu0 0.0
        %2373 = vmatpush1.msra.mxu0 %v2352
        %2374 = vmatprep.subr.mxu0 0.0
        %2375 = vmatpush1.msra.mxu0 %v2353
        %2376 = vmatprep.subr.mxu0 0.0
        %2377 = vmatpush1.msra.mxu0 %v2354
        %2378 = vmatprep.subr.mxu0 0.0
        %2379 = vmatpush1.msra.mxu0 %v2355
        %2380 = vmatprep.subr.mxu0 0.0
        %2381 = vmatpush1.msra.mxu0 %v2356
        %2382 = vmatprep.subr.mxu0 0.0
        %2383 = vmatpush1.msra.mxu0 %v2357
        %2384 = vmatprep.subr.mxu0 0.0
        %2385 = vmatpush1.msra.mxu0 %v2358
        %2386 = vmatprep.subr.mxu0 0.0
        %2387 = vmatpush1.msra.mxu0 %v2359
        %2388 = vmatprep.subr.mxu0 0.0
        %2389 = vmatpush1.msra.mxu0 %v2360
        %2390 = vmatprep.subr.mxu0 0.0
        %2391 = vmatpush1.msra.mxu0 %v2361
        %2392 = vmatprep.subr.mxu0 0.0
        %2393 = vmatpush1.msra.mxu0 %v2362
        %2394 = vmatprep.subr.mxu0 0.0
        %2395 = vmatpush1.msra.mxu0 %v2363
        %2396 = vmatprep.subr.mxu0 0.0
        %2397 = vmatpush1.msra.mxu0 0.0
        %2398 = vmatprep.subr.mxu0 0.0
        %2399 = vmatpush1.msra.mxu0 0.0
        %2400 = vmatprep.subr.mxu0 0.0
        %2401 = vmatpush1.msra.mxu0 0.0
        %2402 = vmatprep.subr.mxu0 0.0
        %2403 = vmatpush1.msra.mxu0 0.0
        %2404 = vmatprep.subr.mxu0 0.0
        %2405 = vmatpush1.msra.mxu0 0.0
        %2406 = vmatprep.subr.mxu0 0.0
        %2407 = vmatpush1.msra.mxu0 0.0
        %2408 = vmatprep.subr.mxu0 0.0
        %2409 = vmatpush1.msra.mxu0 0.0
        %2410 = vmatprep.subr.mxu0 0.0
        %2411 = vmatpush1.msra.mxu0 0.0
        %2412 = vmatprep.subr.mxu0 0.0
        %2413 = vmatpush1.msra.mxu0 0.0
        %2414 = vmatprep.subr.mxu0 0.0
        %2415 = vmatpush1.msra.mxu0 0.0
        %2416 = vmatprep.subr.mxu0 0.0
        %2417 = vmatpush1.msra.mxu0 0.0
        %2418 = vmatprep.subr.mxu0 0.0
        %2419 = vmatpush1.msra.mxu0 0.0
        %2420 = vmatprep.subr.mxu0 0.0
        %2421 = vmatpush1.msra.mxu0 0.0
        %2422 = vmatprep.subr.mxu0 0.0
        %2423 = vmatpush1.msra.mxu0 0.0
        %2424 = vmatprep.subr.mxu0 0.0
        %2425 = vmatpush1.msra.mxu0 0.0
        %2426 = vmatprep.subr.mxu0 0.0
        %2427 = vmatpush1.msra.mxu0 0.0
        %2428 = vmatprep.mubr.f32.mxu0 0.0
        %2429 = vmatmul.mubr.f32.gmra.mrb[0].mxu0 %v2347
        %v2430 = vpop.f32.mrb[0].mxu0
        %v2431 = vadd.f32 0.0, %v2430
        %v2432 = vpop.f32.mrb[0].mxu0
        %2433 = vdwg.mxu0
        %v2434 = vadd.f32 %v2258, %v2431
        %v2435 = vld [vmem:[%s182 + $0x5] sm:$0xf]
        %v2436 = vld [vmem:[%s1173] sm:$0xff]
        %v2437 = vld [vmem:[%s1173 + $0x8] sm:$0xff]
        %v2438 = vld [vmem:[%s1173 + $0x10] sm:$0xff]
        %v2439 = vld [vmem:[%s1173 + $0x18] sm:$0xff]
        %v2440 = vld [vmem:[%s1173 + $0x20] sm:$0xff]
        %v2441 = vld [vmem:[%s1173 + $0x28] sm:$0xff]
        %v2442 = vld [vmem:[%s1173 + $0x30] sm:$0xff]
        %v2443 = vld [vmem:[%s1173 + $0x38] sm:$0xff]
        %v2444 = vld [vmem:[%s1173 + $0x40] sm:$0xff]
        %v2445 = vld [vmem:[%s1173 + $0x48] sm:$0xff]
        %v2446 = vld [vmem:[%s1173 + $0x50] sm:$0xff]
        %v2447 = vld [vmem:[%s1173 + $0x58] sm:$0xff]
        %v2448 = vld [vmem:[%s1173 + $0x60] sm:$0xff]
        %v2449 = vld [vmem:[%s1173 + $0x68] sm:$0xff]
        %v2450 = vld [vmem:[%s1173 + $0x70] sm:$0xff]
        %v2451 = vld [vmem:[%s1173 + $0x78] sm:$0xff]
        %2452 = vmatprep.subr.mxu0 0.0
        %2453 = vmatpush1.msra.mxu0 %v2436
        %2454 = vmatprep.subr.mxu0 0.0
        %2455 = vmatpush1.msra.mxu0 %v2437
        %2456 = vmatprep.subr.mxu0 0.0
        %2457 = vmatpush1.msra.mxu0 %v2438
        %2458 = vmatprep.subr.mxu0 0.0
        %2459 = vmatpush1.msra.mxu0 %v2439
        %2460 = vmatprep.subr.mxu0 0.0
        %2461 = vmatpush1.msra.mxu0 %v2440
        %2462 = vmatprep.subr.mxu0 0.0
        %2463 = vmatpush1.msra.mxu0 %v2441
        %2464 = vmatprep.subr.mxu0 0.0
        %2465 = vmatpush1.msra.mxu0 %v2442
        %2466 = vmatprep.subr.mxu0 0.0
        %2467 = vmatpush1.msra.mxu0 %v2443
        %2468 = vmatprep.subr.mxu0 0.0
        %2469 = vmatpush1.msra.mxu0 %v2444
        %2470 = vmatprep.subr.mxu0 0.0
        %2471 = vmatpush1.msra.mxu0 %v2445
        %2472 = vmatprep.subr.mxu0 0.0
        %2473 = vmatpush1.msra.mxu0 %v2446
        %2474 = vmatprep.subr.mxu0 0.0
        %2475 = vmatpush1.msra.mxu0 %v2447
        %2476 = vmatprep.subr.mxu0 0.0
        %2477 = vmatpush1.msra.mxu0 %v2448
        %2478 = vmatprep.subr.mxu0 0.0
        %2479 = vmatpush1.msra.mxu0 %v2449
        %2480 = vmatprep.subr.mxu0 0.0
        %2481 = vmatpush1.msra.mxu0 %v2450
        %2482 = vmatprep.subr.mxu0 0.0
        %2483 = vmatpush1.msra.mxu0 %v2451
        %2484 = vmatprep.subr.mxu0 0.0
        %2485 = vmatpush1.msra.mxu0 0.0
        %2486 = vmatprep.subr.mxu0 0.0
        %2487 = vmatpush1.msra.mxu0 0.0
        %2488 = vmatprep.subr.mxu0 0.0
        %2489 = vmatpush1.msra.mxu0 0.0
        %2490 = vmatprep.subr.mxu0 0.0
        %2491 = vmatpush1.msra.mxu0 0.0
        %2492 = vmatprep.subr.mxu0 0.0
        %2493 = vmatpush1.msra.mxu0 0.0
        %2494 = vmatprep.subr.mxu0 0.0
        %2495 = vmatpush1.msra.mxu0 0.0
        %2496 = vmatprep.subr.mxu0 0.0
        %2497 = vmatpush1.msra.mxu0 0.0
        %2498 = vmatprep.subr.mxu0 0.0
        %2499 = vmatpush1.msra.mxu0 0.0
        %2500 = vmatprep.subr.mxu0 0.0
        %2501 = vmatpush1.msra.mxu0 0.0
        %2502 = vmatprep.subr.mxu0 0.0
        %2503 = vmatpush1.msra.mxu0 0.0
        %2504 = vmatprep.subr.mxu0 0.0
        %2505 = vmatpush1.msra.mxu0 0.0
        %2506 = vmatprep.subr.mxu0 0.0
        %2507 = vmatpush1.msra.mxu0 0.0
        %2508 = vmatprep.subr.mxu0 0.0
        %2509 = vmatpush1.msra.mxu0 0.0
        %2510 = vmatprep.subr.mxu0 0.0
        %2511 = vmatpush1.msra.mxu0 0.0
        %2512 = vmatprep.subr.mxu0 0.0
        %2513 = vmatpush1.msra.mxu0 0.0
        %2514 = vmatprep.subr.mxu0 0.0
        %2515 = vmatpush1.msra.mxu0 0.0
        %2516 = vmatprep.mubr.f32.mxu0 0.0
        %2517 = vmatmul.mubr.f32.gmra.mrb[0].mxu0 %v2435
        %v2518 = vpop.f32.mrb[0].mxu0
        %v2519 = vadd.f32 0.0, %v2518
        %v2520 = vpop.f32.mrb[0].mxu0
        %2521 = vdwg.mxu0
        %v2522 = vadd.f32 %v2346, %v2519
        %v2523 = vld [vmem:[#allocation2 + $0x6] sm:$0xf]
        %v2524 = vld [vmem:[%s1262] sm:$0xff]
        %v2525 = vld [vmem:[%s1262 + $0x8] sm:$0xff]
        %v2526 = vld [vmem:[%s1262 + $0x10] sm:$0xff]
        %v2527 = vld [vmem:[%s1262 + $0x18] sm:$0xff]
        %v2528 = vld [vmem:[%s1262 + $0x20] sm:$0xff]
        %v2529 = vld [vmem:[%s1262 + $0x28] sm:$0xff]
        %v2530 = vld [vmem:[%s1262 + $0x30] sm:$0xff]
        %v2531 = vld [vmem:[%s1262 + $0x38] sm:$0xff]
        %v2532 = vld [vmem:[%s1262 + $0x40] sm:$0xff]
        %v2533 = vld [vmem:[%s1262 + $0x48] sm:$0xff]
        %v2534 = vld [vmem:[%s1262 + $0x50] sm:$0xff]
        %v2535 = vld [vmem:[%s1262 + $0x58] sm:$0xff]
        %v2536 = vld [vmem:[%s1262 + $0x60] sm:$0xff]
        %v2537 = vld [vmem:[%s1262 + $0x68] sm:$0xff]
        %v2538 = vld [vmem:[%s1262 + $0x70] sm:$0xff]
        %v2539 = vld [vmem:[%s1262 + $0x78] sm:$0xff]
        %2540 = vmatprep.subr.mxu0 0.0
        %2541 = vmatpush1.msra.mxu0 %v2524
        %2542 = vmatprep.subr.mxu0 0.0
        %2543 = vmatpush1.msra.mxu0 %v2525
        %2544 = vmatprep.subr.mxu0 0.0
        %2545 = vmatpush1.msra.mxu0 %v2526
        %2546 = vmatprep.subr.mxu0 0.0
        %2547 = vmatpush1.msra.mxu0 %v2527
        %2548 = vmatprep.subr.mxu0 0.0
        %2549 = vmatpush1.msra.mxu0 %v2528
        %2550 = vmatprep.subr.mxu0 0.0
        %2551 = vmatpush1.msra.mxu0 %v2529
        %2552 = vmatprep.subr.mxu0 0.0
        %2553 = vmatpush1.msra.mxu0 %v2530
        %2554 = vmatprep.subr.mxu0 0.0
        %2555 = vmatpush1.msra.mxu0 %v2531
        %2556 = vmatprep.subr.mxu0 0.0
        %2557 = vmatpush1.msra.mxu0 %v2532
        %2558 = vmatprep.subr.mxu0 0.0
        %2559 = vmatpush1.msra.mxu0 %v2533
        %2560 = vmatprep.subr.mxu0 0.0
        %2561 = vmatpush1.msra.mxu0 %v2534
        %2562 = vmatprep.subr.mxu0 0.0
        %2563 = vmatpush1.msra.mxu0 %v2535
        %2564 = vmatprep.subr.mxu0 0.0
        %2565 = vmatpush1.msra.mxu0 %v2536
        %2566 = vmatprep.subr.mxu0 0.0
        %2567 = vmatpush1.msra.mxu0 %v2537
        %2568 = vmatprep.subr.mxu0 0.0
        %2569 = vmatpush1.msra.mxu0 %v2538
        %2570 = vmatprep.subr.mxu0 0.0
        %2571 = vmatpush1.msra.mxu0 %v2539
        %2572 = vmatprep.subr.mxu0 0.0
        %2573 = vmatpush1.msra.mxu0 0.0
        %2574 = vmatprep.subr.mxu0 0.0
        %2575 = vmatpush1.msra.mxu0 0.0
        %2576 = vmatprep.subr.mxu0 0.0
        %2577 = vmatpush1.msra.mxu0 0.0
        %2578 = vmatprep.subr.mxu0 0.0
        %2579 = vmatpush1.msra.mxu0 0.0
        %2580 = vmatprep.subr.mxu0 0.0
        %2581 = vmatpush1.msra.mxu0 0.0
        %2582 = vmatprep.subr.mxu0 0.0
        %2583 = vmatpush1.msra.mxu0 0.0
        %2584 = vmatprep.subr.mxu0 0.0
        %2585 = vmatpush1.msra.mxu0 0.0
        %2586 = vmatprep.subr.mxu0 0.0
        %2587 = vmatpush1.msra.mxu0 0.0
        %2588 = vmatprep.subr.mxu0 0.0
        %2589 = vmatpush1.msra.mxu0 0.0
        %2590 = vmatprep.subr.mxu0 0.0
        %2591 = vmatpush1.msra.mxu0 0.0
        %2592 = vmatprep.subr.mxu0 0.0
        %2593 = vmatpush1.msra.mxu0 0.0
        %2594 = vmatprep.subr.mxu0 0.0
        %2595 = vmatpush1.msra.mxu0 0.0
        %2596 = vmatprep.subr.mxu0 0.0
        %2597 = vmatpush1.msra.mxu0 0.0
        %2598 = vmatprep.subr.mxu0 0.0
        %2599 = vmatpush1.msra.mxu0 0.0
        %2600 = vmatprep.subr.mxu0 0.0
        %2601 = vmatpush1.msra.mxu0 0.0
        %2602 = vmatprep.subr.mxu0 0.0
        %2603 = vmatpush1.msra.mxu0 0.0
        %2604 = vmatprep.mubr.f32.mxu0 0.0
        %2605 = vmatmul.mubr.f32.gmra.mrb[0].mxu0 %v2523
        %v2606 = vpop.f32.mrb[0].mxu0
        %v2607 = vadd.f32 0.0, %v2606
        %v2608 = vpop.f32.mrb[0].mxu0
        %2609 = vdwg.mxu0
        %v2610 = vadd.f32 %v2434, %v2607
        %v2611 = vld [vmem:[%s182 + $0x6] sm:$0xf]
        %v2612 = vld [vmem:[%s1351] sm:$0xff]
        %v2613 = vld [vmem:[%s1351 + $0x8] sm:$0xff]
        %v2614 = vld [vmem:[%s1351 + $0x10] sm:$0xff]
        %v2615 = vld [vmem:[%s1351 + $0x18] sm:$0xff]
        %v2616 = vld [vmem:[%s1351 + $0x20] sm:$0xff]
        %v2617 = vld [vmem:[%s1351 + $0x28] sm:$0xff]
        %v2618 = vld [vmem:[%s1351 + $0x30] sm:$0xff]
        %v2619 = vld [vmem:[%s1351 + $0x38] sm:$0xff]
        %v2620 = vld [vmem:[%s1351 + $0x40] sm:$0xff]
        %v2621 = vld [vmem:[%s1351 + $0x48] sm:$0xff]
        %v2622 = vld [vmem:[%s1351 + $0x50] sm:$0xff]
        %v2623 = vld [vmem:[%s1351 + $0x58] sm:$0xff]
        %v2624 = vld [vmem:[%s1351 + $0x60] sm:$0xff]
        %v2625 = vld [vmem:[%s1351 + $0x68] sm:$0xff]
        %v2626 = vld [vmem:[%s1351 + $0x70] sm:$0xff]
        %v2627 = vld [vmem:[%s1351 + $0x78] sm:$0xff]
        %2628 = vmatprep.subr.mxu0 0.0
        %2629 = vmatpush1.msra.mxu0 %v2612
        %2630 = vmatprep.subr.mxu0 0.0
        %2631 = vmatpush1.msra.mxu0 %v2613
        %2632 = vmatprep.subr.mxu0 0.0
        %2633 = vmatpush1.msra.mxu0 %v2614
        %2634 = vmatprep.subr.mxu0 0.0
        %2635 = vmatpush1.msra.mxu0 %v2615
        %2636 = vmatprep.subr.mxu0 0.0
        %2637 = vmatpush1.msra.mxu0 %v2616
        %2638 = vmatprep.subr.mxu0 0.0
        %2639 = vmatpush1.msra.mxu0 %v2617
        %2640 = vmatprep.subr.mxu0 0.0
        %2641 = vmatpush1.msra.mxu0 %v2618
        %2642 = vmatprep.subr.mxu0 0.0
        %2643 = vmatpush1.msra.mxu0 %v2619
        %2644 = vmatprep.subr.mxu0 0.0
        %2645 = vmatpush1.msra.mxu0 %v2620
        %2646 = vmatprep.subr.mxu0 0.0
        %2647 = vmatpush1.msra.mxu0 %v2621
        %2648 = vmatprep.subr.mxu0 0.0
        %2649 = vmatpush1.msra.mxu0 %v2622
        %2650 = vmatprep.subr.mxu0 0.0
        %2651 = vmatpush1.msra.mxu0 %v2623
        %2652 = vmatprep.subr.mxu0 0.0
        %2653 = vmatpush1.msra.mxu0 %v2624
        %2654 = vmatprep.subr.mxu0 0.0
        %2655 = vmatpush1.msra.mxu0 %v2625
        %2656 = vmatprep.subr.mxu0 0.0
        %2657 = vmatpush1.msra.mxu0 %v2626
        %2658 = vmatprep.subr.mxu0 0.0
        %2659 = vmatpush1.msra.mxu0 %v2627
        %2660 = vmatprep.subr.mxu0 0.0
        %2661 = vmatpush1.msra.mxu0 0.0
        %2662 = vmatprep.subr.mxu0 0.0
        %2663 = vmatpush1.msra.mxu0 0.0
        %2664 = vmatprep.subr.mxu0 0.0
        %2665 = vmatpush1.msra.mxu0 0.0
        %2666 = vmatprep.subr.mxu0 0.0
        %2667 = vmatpush1.msra.mxu0 0.0
        %2668 = vmatprep.subr.mxu0 0.0
        %2669 = vmatpush1.msra.mxu0 0.0
        %2670 = vmatprep.subr.mxu0 0.0
        %2671 = vmatpush1.msra.mxu0 0.0
        %2672 = vmatprep.subr.mxu0 0.0
        %2673 = vmatpush1.msra.mxu0 0.0
        %2674 = vmatprep.subr.mxu0 0.0
        %2675 = vmatpush1.msra.mxu0 0.0
        %2676 = vmatprep.subr.mxu0 0.0
        %2677 = vmatpush1.msra.mxu0 0.0
        %2678 = vmatprep.subr.mxu0 0.0
        %2679 = vmatpush1.msra.mxu0 0.0
        %2680 = vmatprep.subr.mxu0 0.0
        %2681 = vmatpush1.msra.mxu0 0.0
        %2682 = vmatprep.subr.mxu0 0.0
        %2683 = vmatpush1.msra.mxu0 0.0
        %2684 = vmatprep.subr.mxu0 0.0
        %2685 = vmatpush1.msra.mxu0 0.0
        %2686 = vmatprep.subr.mxu0 0.0
        %2687 = vmatpush1.msra.mxu0 0.0
        %2688 = vmatprep.subr.mxu0 0.0
        %2689 = vmatpush1.msra.mxu0 0.0
        %2690 = vmatprep.subr.mxu0 0.0
        %2691 = vmatpush1.msra.mxu0 0.0
        %2692 = vmatprep.mubr.f32.mxu0 0.0
        %2693 = vmatmul.mubr.f32.gmra.mrb[0].mxu0 %v2611
        %v2694 = vpop.f32.mrb[0].mxu0
        %v2695 = vadd.f32 0.0, %v2694
        %v2696 = vpop.f32.mrb[0].mxu0
        %2697 = vdwg.mxu0
        %v2698 = vadd.f32 %v2522, %v2695
        %v2699 = vadd.f32 %v2610, %v2698
        %v2700 = vxor.u32 %v2699, 2147483648
        %v2701 = vmul.f32 %v2700, 1.442695
        %v2702 = vpow.pop %v2701
        %v2703 = vadd.f32 %v2702, 1.0
        %v2704 = vrcp.pop %v2703
        %v2705 = vmul.f32 1.0, %v2704
        %v2707 = vrot.slane %v2705, 4
        %v2709 = vsel %vm1449, %v2705, %v2707
        %v2710 = vld [vmem:[%s1457] sm:$0xff]
        %v2711 = vld [vmem:[%s1457 + $0x8] sm:$0xff]
        %v2712 = vmul.f32 %v2710, %v2709
        %v2713 = vmul.f32 %v2711, %v2709
        %s2714 = scalar_lea.vmem %s177, 16 [#allocation8]
        %2715 = vst [vmem:[%s2714] sm:$0xff] %v2712
        %2716 = vst [vmem:[%s2714 + $0x8] sm:$0xff] %v2713
        %s2717 = sand.u32 %s75, 1
        %s2718 = scalar_lea.sflag [#allocation5], %s2717
        %s2719 = sand.u32 %s75, 1
        %s2720 = smul.addr %s2719, 32
        %s2721 = scalar_lea.vmem [#allocation8], %s2720
        // Predicated region
        $region37: #{tpu_custom_call.1} parent=27 // pred_check
          %p2722 = pneg %p85
        $region38: #{tpu_custom_call.1} parent=27 // pred_check_branch
          %2724 = sbr.rel (%p2722) target = $region40
        $region39: #{tpu_custom_call.1} parent=27 // pred_region
          %s2725 = smul.u32 2, %s20
          %s2727 = ssub.s32 512, 512
          %2728 = vsyncadd %s2718, %s2727
          %s2729 = smul.addr %s2725, 2
          %s2730 = smul.addr %s2729, 128
          %s2731 = scalar_lea.hbm %s2, %s2730
          %s2732 = sshll.u32 %s2721, 4
          %s2733 = int_to_ptr.vmem [resolvable:$true] %s2732
          %2738 = dma.vmem_to_hbm [thread:$0]  %s2733, 512, %s2731, %s2718, 128, 128, 8
        $region40: #{tpu_custom_call.1} parent=27 // pred_fallthru
          _
      $region28: #{tpu_custom_call.1} parent=5 // pred_fallthru
        _
      %p2739 = scmp.le.s32.totalorder 2, %s15
      // Predicated region
      $region41: #{tpu_custom_call.1} parent=5 // pred_check
        %p2740 = pneg %p2739
      $region42: #{tpu_custom_call.1} parent=5 // pred_check_branch
        %2742 = sbr.rel (%p2740) target = $region44
      $region43: #{tpu_custom_call.1} parent=5 // pred_region
        %s2743 = ssub.s32 %s15, 2
        // Predicated region
        $region45: #{tpu_custom_call.1} parent=43 // pred_check
          %p2744 = pneg %p91
        $region46: #{tpu_custom_call.1} parent=43 // pred_check_branch
          %2746 = sbr.rel (%p2744) target = $region48
        $region47: #{tpu_custom_call.1} parent=43 // pred_region
          %s2747 = sand.u32 %s76, 1
          %s2748 = scalar_lea.sflag [#allocation5], %s2747
          %s2749 = sand.u32 %s76, 1
          %s2750 = smul.addr %s2749, 32
          %s2751 = scalar_lea.vmem [#allocation8], %s2750
          %2752 = dma.done %s2748, 512
        $region48: #{tpu_custom_call.1} parent=43 // pred_fallthru
          _
      $region44: #{tpu_custom_call.1} parent=5 // pred_fallthru
        _
    $region6: #{tpu_custom_call.1} parent=1 // loop_footer
      %s19 = sadd.s32 1, %s15
    $region7: #{tpu_custom_call.1} parent=1 // loop_footer_branch
      %14 = sbr.rel target = $region3
    $region8: #{tpu_custom_call.1} parent=1 // loop_exit
      _
    %2753 = vsyncpa [#allocation4], 1
    %s2754 = scalar_lea.sflag [#allocation4], 1
    %2755 = vsyncpa %s2754, 1
    %2756 = vsyncpa [#allocation7], 1
    %2757 = vsyncpa [#allocation5], 1
    %s2758 = scalar_lea.sflag [#allocation5], 1
    %2759 = vsyncpa %s2758, 1

</llo_original>
